<compile_context>
chip_gen: v5e
topology: v5e:2x2
jax: 0.10.0
libtpu: 0.0.40
codegen_flags: <defaults>
</compile_context>

<pallas_src>
import functools
import math

import jax
import jax.numpy as jnp
from jax.experimental import pallas as pl
from jax.experimental.pallas import tpu as pltpu


# ----------------------------------------------------------------------------
# Tile-size helpers (exact divisors -> no padding copies of activations)
# ----------------------------------------------------------------------------
def _sublane_tile(dim, cap=512):
    """Largest tile <= cap that divides dim and is a multiple of 8 (else full)."""
    if dim <= cap:
        return dim
    t = cap - cap % 8
    while t >= 8:
        if dim % t == 0:
            return t
        t -= 8
    return dim


def _lane_tile(dim, cap=512):
    """Largest tile <= cap that divides dim and is a multiple of 128 (else full)."""
    if dim <= cap:
        return dim
    t = cap - cap % 128
    while t >= 128:
        if dim % t == 0:
            return t
        t -= 128
    return dim


# ----------------------------------------------------------------------------
# Pallas kernels
# ----------------------------------------------------------------------------
def _mm_kernel(a_ref, b_ref, s_ref, c_ref, o_ref, acc_ref, *, relu):
    """Tiled MXU matmul with fused BN(scale,bias)+ReLU epilogue at last k."""
    @pl.when(pl.program_id(2) == 0)
    def _():
        acc_ref[...] = jnp.zeros_like(acc_ref)

    acc_ref[...] += jnp.dot(a_ref[...], b_ref[...],
                            preferred_element_type=jnp.float32)

    @pl.when(pl.program_id(2) == pl.num_programs(2) - 1)
    def _():
        y = acc_ref[...] * s_ref[...] + c_ref[...]
        if relu:
            y = jnp.maximum(y, 0.0)
        o_ref[...] = y.astype(o_ref.dtype)


def _mm_res_kernel(a_ref, b_ref, s_ref, c_ref, r_ref, o_ref, acc_ref, *, relu):
    """Same as _mm_kernel but also fuses the residual add into the epilogue."""
    @pl.when(pl.program_id(2) == 0)
    def _():
        acc_ref[...] = jnp.zeros_like(acc_ref)

    acc_ref[...] += jnp.dot(a_ref[...], b_ref[...],
                            preferred_element_type=jnp.float32)

    @pl.when(pl.program_id(2) == pl.num_programs(2) - 1)
    def _():
        y = acc_ref[...] * s_ref[...] + c_ref[...] + r_ref[...].astype(jnp.float32)
        if relu:
            y = jnp.maximum(y, 0.0)
        o_ref[...] = y.astype(o_ref.dtype)


def _conv_row_kernel(*refs, n_kh, n_kw, wd, relu):
    """KxK conv, one output image-row per grid step, BN+ReLU fused.

    refs = (a_0 .. a_{KH-1}, w, scale, bias, out)
      a_k : (1, Wp, Cin) -- row (h*stride + k) of the padded input (aliased views)
      w   : (KH, KW, Cin, tn)
      out : (1, 1, Wd, tn)  where Wd = Wp - KW + 1 (dense along W; wrapper
            subsamples columns for stride > 1).
    """
    a_refs = refs[:n_kh]
    w_ref, s_ref, b_ref, o_ref = refs[n_kh:n_kh + 4]
    tn = w_ref.shape[-1]
    acc = jnp.zeros((wd, tn), jnp.float32)
    for ih in range(n_kh):
        row = a_refs[ih][0]                                   # (Wp, Cin)
        for iw in range(n_kw):
            acc = acc + jnp.dot(row[iw:iw + wd, :], w_ref[ih, iw],
                                preferred_element_type=jnp.float32)
    y = acc * s_ref[...] + b_ref[...]
    if relu:
        y = jnp.maximum(y, 0.0)
    o_ref[0, 0] = y.astype(o_ref.dtype)


def _maxpool_row_kernel(a0_ref, a1_ref, a2_ref, o_ref):
    """3x3 max pool, one output row per grid step (running max, no 9x stack)."""
    r = jnp.maximum(jnp.maximum(a0_ref[0], a1_ref[0]), a2_ref[0])   # (Wp, C)
    wd = o_ref.shape[2]
    m = jnp.maximum(jnp.maximum(r[0:wd, :], r[1:wd + 1, :]), r[2:wd + 2, :])
    o_ref[0, 0] = m


def _avgpool_kernel(x_ref, o_ref, *, inv):
    s = jnp.sum(x_ref[0].astype(jnp.float32), axis=0, keepdims=True) * inv
    o_ref[0] = s


# ----------------------------------------------------------------------------
# Pallas wrappers
# ----------------------------------------------------------------------------
def matmul_fused(a, b, scale, bias, residual=None, relu=True,
                 out_dtype=jnp.bfloat16):
    """(M,K)@(K,N) with fused per-column scale/bias (+residual) + ReLU epilogue.

    Operands are cast to bf16 (f32 accumulation).  Tiles are exact divisors of
    the dims, so no padding / slicing copies of A or the output are needed.
    """
    M, K = a.shape
    Kb, Nn = b.shape
    assert K == Kb
    tm = _sublane_tile(M, 512)
    tk = _lane_tile(K, 512)
    tn = _lane_tile(Nn, 512)
    a = a.astype(jnp.bfloat16)
    b = b.astype(jnp.bfloat16)
    s2 = scale.reshape(1, Nn).astype(jnp.float32)
    c2 = bias.reshape(1, Nn).astype(jnp.float32)

    in_specs = [
        pl.BlockSpec((tm, tk), lambda i, j, k: (i, k)),
        pl.BlockSpec((tk, tn), lambda i, j, k: (k, j)),
        pl.BlockSpec((1, tn), lambda i, j, k: (0, j)),
        pl.BlockSpec((1, tn), lambda i, j, k: (0, j)),
    ]
    args = [a, b, s2, c2]
    if residual is not None:
        in_specs.append(pl.BlockSpec((tm, tn), lambda i, j, k: (i, j)))
        args.append(residual.astype(jnp.bfloat16))
        kern = functools.partial(_mm_res_kernel, relu=relu)
    else:
        kern = functools.partial(_mm_kernel, relu=relu)

    return pl.pallas_call(
        kern,
        out_shape=jax.ShapeDtypeStruct((M, Nn), out_dtype),
        grid_spec=pltpu.PrefetchScalarGridSpec(
            num_scalar_prefetch=0,
            grid=(M // tm, Nn // tn, K // tk),
            in_specs=in_specs,
            out_specs=pl.BlockSpec((tm, tn), lambda i, j, k: (i, j)),
            scratch_shapes=[pltpu.VMEM((tm, tn), jnp.float32)]),
        compiler_params=pltpu.CompilerParams(
            dimension_semantics=("parallel", "parallel", "arbitrary")),
    )(*args)


def conv_spatial_fused(x, w, stride, padding, scale, bias, relu=True):
    """KxK conv (NHWC, HWIO) with fused BN+ReLU; no im2col materialization.

    The padded input is flattened to (N*Hp, Wp, Cin) once; KH aliased views of
    that array (row offsets n*Hp + h*stride + k via index_map) feed a
    one-output-row-per-step kernel.  For stride > 1 the kernel computes the
    dense-width result and the wrapper subsamples columns.
    """
    N, H, W, Cin = x.shape
    KH, KW, _, Cout = w.shape
    Ho = (H + 2 * padding - KH) // stride + 1
    Wo = (W + 2 * padding - KW) // stride + 1
    Hp = H + 2 * padding
    Wp = W + 2 * padding
    Wd = Wp - KW + 1
    xp = jnp.pad(x, ((0, 0), (padding, padding), (padding, padding), (0, 0)))
    xf = xp.reshape(N * Hp, Wp, Cin)
    w = w.astype(jnp.bfloat16)
    s2 = scale.reshape(1, Cout).astype(jnp.float32)
    b2 = bias.reshape(1, Cout).astype(jnp.float32)
    tn = Cout if Cout <= 256 else 256

    a_specs = [
        pl.BlockSpec((1, Wp, Cin),
                     lambda j, n, h, koff=koff: (n * Hp + h * stride + koff, 0, 0))
        for koff in range(KH)
    ]
    in_specs = a_specs + [
        pl.BlockSpec((KH, KW, Cin, tn), lambda j, n, h: (0, 0, 0, j)),
        pl.BlockSpec((1, tn), lambda j, n, h: (0, j)),
        pl.BlockSpec((1, tn), lambda j, n, h: (0, j)),
    ]
    out = pl.pallas_call(
        functools.partial(_conv_row_kernel, n_kh=KH, n_kw=KW, wd=Wd, relu=relu),
        out_shape=jax.ShapeDtypeStruct((N, Ho, Wd, Cout), jnp.bfloat16),
        grid_spec=pltpu.PrefetchScalarGridSpec(
            num_scalar_prefetch=0,
            grid=(Cout // tn, N, Ho),        # Cout outermost: weights fetched once/tile
            in_specs=in_specs,
            out_specs=pl.BlockSpec((1, 1, Wd, tn), lambda j, n, h: (n, h, 0, j)),
        ),
        compiler_params=pltpu.CompilerParams(
            dimension_semantics=("parallel", "parallel", "parallel")),
    )(*([xf] * KH), w, s2, b2)
    if stride > 1:
        out = out[:, :, ::stride, :]
    return out[:, :, :Wo, :]


def maxpool3x3s2(x):
    """3x3 stride-2 pad-1 max pool, NHWC, running max with a real grid."""
    N, H, W, C = x.shape
    k, s, p = 3, 2, 1
    Ho = (H + 2 * p - k) // s + 1
    Wo = (W + 2 * p - k) // s + 1
    Hp, Wp = H + 2 * p, W + 2 * p
    Wd = Wp - k + 1
    xp = jnp.pad(x, ((0, 0), (p, p), (p, p), (0, 0)),
                 constant_values=-jnp.inf)
    xf = xp.reshape(N * Hp, Wp, C)
    a_specs = [
        pl.BlockSpec((1, Wp, C),
                     lambda n, h, koff=koff: (n * Hp + h * s + koff, 0, 0))
        for koff in range(k)
    ]
    out = pl.pallas_call(
        _maxpool_row_kernel,
        out_shape=jax.ShapeDtypeStruct((N, Ho, Wd, C), x.dtype),
        grid_spec=pltpu.PrefetchScalarGridSpec(
            num_scalar_prefetch=0,
            grid=(N, Ho),
            in_specs=a_specs,
            out_specs=pl.BlockSpec((1, 1, Wd, C), lambda n, h: (n, h, 0, 0)),
        ),
        compiler_params=pltpu.CompilerParams(
            dimension_semantics=("parallel", "parallel")),
    )(xf, xf, xf)
    out = out[:, :, ::s, :]
    return out[:, :, :Wo, :]


def global_avgpool(x):
    """(N,H,W,C) -> (N,C) mean, gridded over the batch."""
    N, H, W, C = x.shape
    x3 = x.reshape(N, H * W, C)
    out = pl.pallas_call(
        functools.partial(_avgpool_kernel, inv=1.0 / float(H * W)),
        out_shape=jax.ShapeDtypeStruct((N, 1, C), jnp.float32),
        grid_spec=pltpu.PrefetchScalarGridSpec(
            num_scalar_prefetch=0,
            grid=(N,),
            in_specs=[pl.BlockSpec((1, H * W, C), lambda n: (n, 0, 0))],
            out_specs=pl.BlockSpec((1, 1, C), lambda n: (n, 0, 0)),
        ),
        compiler_params=pltpu.CompilerParams(dimension_semantics=("parallel",)),
    )(x3)
    return out.reshape(N, C)


# ----------------------------------------------------------------------------
# Deterministic synthetic ResNet-50 parameters
# ----------------------------------------------------------------------------
class ParamGen:
    def __init__(self, seed=0):
        self.key = jax.random.PRNGKey(seed)
        self.count = 0

    def _next(self):
        self.count += 1
        return jax.random.fold_in(self.key, self.count)

    def conv_hwio(self, kh, kw, cin, cout):
        fan_in = kh * kw * cin
        w = jax.random.normal(self._next(), (kh, kw, cin, cout), jnp.float32)
        return (w * (1.0 / math.sqrt(fan_in))).astype(jnp.bfloat16)

    def conv_1x1(self, cin, cout):
        w = jax.random.normal(self._next(), (cin, cout), jnp.float32)
        return (w * (1.0 / math.sqrt(cin))).astype(jnp.bfloat16)

    def bn(self, c):
        # eval-mode BN folded into per-channel (scale, bias); kept in f32.
        g = 1.0 + 0.1 * jax.random.normal(self._next(), (c,), jnp.float32)
        beta = 0.1 * jax.random.normal(self._next(), (c,), jnp.float32)
        mean = 0.1 * jax.random.normal(self._next(), (c,), jnp.float32)
        var = 1.0 + 0.1 * jnp.abs(jax.random.normal(self._next(), (c,), jnp.float32))
        eps = 1e-5
        scale = g / jnp.sqrt(var + eps)
        bias = beta - mean * scale
        return scale, bias

    def linear(self, cin, cout):
        w = (jax.random.normal(self._next(), (cin, cout), jnp.float32)
             * (1.0 / math.sqrt(cin))).astype(jnp.bfloat16)
        b = 0.1 * jax.random.normal(self._next(), (cout,), jnp.float32)
        return w, b


def make_resnet50_params(num_class, seed=0):
    pg = ParamGen(seed)
    params = {"conv1_w": pg.conv_hwio(7, 7, 3, 64), "bn1": pg.bn(64)}
    layer_cfg = [(3, 64, 1), (4, 128, 2), (6, 256, 2), (3, 512, 2)]
    inplanes = 64
    layers = []
    for nblocks, planes, stride in layer_cfg:
        blocks = []
        for bi in range(nblocks):
            s = stride if bi == 0 else 1
            blk = {
                "stride": s,
                "conv1_w": pg.conv_1x1(inplanes, planes),
                "bn1": pg.bn(planes),
                "conv2_w": pg.conv_hwio(3, 3, planes, planes),
                "bn2": pg.bn(planes),
                "conv3_w": pg.conv_1x1(planes, planes * 4),
                "bn3": pg.bn(planes * 4),
            }
            if s != 1 or inplanes != planes * 4:
                blk["down_w"] = pg.conv_1x1(inplanes, planes * 4)
                blk["down_bn"] = pg.bn(planes * 4)
            blocks.append(blk)
            inplanes = planes * 4
        layers.append(blocks)
    params["layers"] = layers
    params["fc_w"], params["fc_b"] = pg.linear(2048, num_class)
    return params


# ----------------------------------------------------------------------------
# ResNet-50 forward (DINO.forward == self.model(x))
# ----------------------------------------------------------------------------
def bottleneck(x, p):
    N, H, W, Cin = x.shape
    s = p["stride"]

    # conv1 (1x1) + BN + ReLU -- fully fused matmul epilogue.
    y = matmul_fused(x.reshape(N * H * W, Cin), p["conv1_w"], *p["bn1"],
                     relu=True)
    planes = p["conv1_w"].shape[1]
    y = y.reshape(N, H, W, planes)

    # conv2 (3x3, stride at the 3x3 as in torchvision) + BN + ReLU.
    y = conv_spatial_fused(y, p["conv2_w"], stride=s, padding=1,
                           scale=p["bn2"][0], bias=p["bn2"][1], relu=True)
    _, Ho, Wo, _ = y.shape

    # identity / downsample path (1x1 stride-s conv == subsample + matmul).
    if "down_w" in p:
        xs = x[:, ::s, ::s, :] if s > 1 else x
        ident = matmul_fused(xs.reshape(N * Ho * Wo, Cin), p["down_w"],
                             *p["down_bn"], relu=False)
    else:
        ident = x.reshape(N * H * W, Cin)

    # conv3 (1x1) + BN + residual + ReLU -- all fused in one matmul epilogue.
    out = matmul_fused(y.reshape(N * Ho * Wo, planes), p["conv3_w"], *p["bn3"],
                       residual=ident, relu=True)
    return out.reshape(N, Ho, Wo, planes * 4)


def dino_forward(params, x_nchw):
    # NCHW (PyTorch) -> NHWC (kernel layout), bf16 activations throughout.
    x = jnp.transpose(x_nchw, (0, 2, 3, 1)).astype(jnp.bfloat16)

    # stem: 7x7/2 conv + BN + ReLU (fused), then 3x3/2 max pool.
    y = conv_spatial_fused(x, params["conv1_w"], stride=2, padding=3,
                           scale=params["bn1"][0], bias=params["bn1"][1],
                           relu=True)
    y = maxpool3x3s2(y)

    # residual stages
    for layer in params["layers"]:
        for blk in layer:
            y = bottleneck(y, blk)

    # head
    feat = global_avgpool(y)                                   # (N, 2048) f32
    nc = params["fc_w"].shape[1]
    ones = jnp.ones((nc,), jnp.float32)
    logits = matmul_fused(feat, params["fc_w"], ones, params["fc_b"],
                          relu=False, out_dtype=jnp.float32)   # fused bias add
    return logits


# ----------------------------------------------------------------------------
if __name__ == "__main__":
    num_class = 10
    key = jax.random.PRNGKey(0)
    # Small NCHW input consistent with the conv backbone (64x64 keeps every
    # stage's spatial extent >= 2).
    x = jax.random.normal(key, (2, 3, 64, 64), jnp.float32)

    params = make_resnet50_params(num_class, seed=0)
    logits = dino_forward(params, x)
    logits = jax.block_until_ready(logits)
    assert logits.shape == (2, num_class)
    assert bool(jnp.all(jnp.isfinite(logits)))
    print("KERNEL_OK")
</pallas_src>

<mosaic_0001>
module attributes {stable_mosaic.version = 11 : i64} {
  func.func @_conv_row_kernel(%arg0: i32, %arg1: i32, %arg2: i32, %arg3: memref<1x70x3xbf16, #tpu.memory_space<vmem>>, %arg4: memref<1x70x3xbf16, #tpu.memory_space<vmem>>, %arg5: memref<1x70x3xbf16, #tpu.memory_space<vmem>>, %arg6: memref<1x70x3xbf16, #tpu.memory_space<vmem>>, %arg7: memref<1x70x3xbf16, #tpu.memory_space<vmem>>, %arg8: memref<1x70x3xbf16, #tpu.memory_space<vmem>>, %arg9: memref<1x70x3xbf16, #tpu.memory_space<vmem>>, %arg10: memref<7x7x3x64xbf16, #tpu.memory_space<vmem>>, %arg11: memref<1x64xf32, #tpu.memory_space<vmem>>, %arg12: memref<1x64xf32, #tpu.memory_space<vmem>>, %arg13: memref<1x1x64x64xbf16, #tpu.memory_space<vmem>>) attributes {dimension_semantics = [#tpu.dimension_semantics<parallel>, #tpu.dimension_semantics<parallel>, #tpu.dimension_semantics<parallel>], iteration_bounds = array<i64: 1, 2, 32>, scalar_prefetch = 0 : i64, scratch_operands = 0 : i64, tpu.core_type = #tpu.core_type<tc>, window_params = [{transform_indices = @transform_0, window_bounds = array<i64: 1, 70, 3>}, {transform_indices = @transform_1, window_bounds = array<i64: 1, 70, 3>}, {transform_indices = @transform_2, window_bounds = array<i64: 1, 70, 3>}, {transform_indices = @transform_3, window_bounds = array<i64: 1, 70, 3>}, {transform_indices = @transform_4, window_bounds = array<i64: 1, 70, 3>}, {transform_indices = @transform_5, window_bounds = array<i64: 1, 70, 3>}, {transform_indices = @transform_6, window_bounds = array<i64: 1, 70, 3>}, {transform_indices = @transform_7, window_bounds = array<i64: 7, 7, 3, 64>}, {transform_indices = @transform_8, window_bounds = array<i64: 1, 64>}, {transform_indices = @transform_9, window_bounds = array<i64: 1, 64>}, {transform_indices = @transform_10, window_bounds = array<i64: 1, 1, 64, 64>}]} {
    %cst = arith.constant 0.000000e+00 : f32
    %0 = vector.broadcast %cst : f32 to vector<64x64xf32>
    %c0 = arith.constant 0 : index
    %c0_0 = arith.constant 0 : index
    %c0_1 = arith.constant 0 : index
    %1 = vector.load %arg3[%c0, %c0_0, %c0_1] : memref<1x70x3xbf16, #tpu.memory_space<vmem>>, vector<1x70x3xbf16>
    %2 = vector.shape_cast %1 : vector<1x70x3xbf16> to vector<70x3xbf16>
    %3 = vector.extract_strided_slice %2 {offsets = [0, 0], sizes = [64, 3], strides = [1, 1]} : vector<70x3xbf16> to vector<64x3xbf16>
    %c0_2 = arith.constant 0 : index
    %c0_3 = arith.constant 0 : index
    %c0_4 = arith.constant 0 : index
    %c0_5 = arith.constant 0 : index
    %4 = vector.load %arg10[%c0_2, %c0_3, %c0_4, %c0_5] : memref<7x7x3x64xbf16, #tpu.memory_space<vmem>>, vector<1x1x3x64xbf16>
    %5 = vector.shape_cast %4 : vector<1x1x3x64xbf16> to vector<3x64xbf16>
    %cst_6 = arith.constant dense<0.000000e+00> : vector<64x64xf32>
    %6 = tpu.matmul %3, %5, %cst_6 {dimension_numbers = #tpu.dot_dimension_numbers<[1], [0], [0], [1], [0, 0, 1, 1], [], []>} : vector<64x3xbf16>, vector<3x64xbf16>, vector<64x64xf32> -> vector<64x64xf32>
    %7 = arith.addf %0, %6 : vector<64x64xf32>
    %8 = vector.extract_strided_slice %2 {offsets = [1, 0], sizes = [64, 3], strides = [1, 1]} : vector<70x3xbf16> to vector<64x3xbf16>
    %c0_7 = arith.constant 0 : index
    %c1 = arith.constant 1 : index
    %c0_8 = arith.constant 0 : index
    %c0_9 = arith.constant 0 : index
    %9 = vector.load %arg10[%c0_7, %c1, %c0_8, %c0_9] : memref<7x7x3x64xbf16, #tpu.memory_space<vmem>>, vector<1x1x3x64xbf16>
    %10 = vector.shape_cast %9 : vector<1x1x3x64xbf16> to vector<3x64xbf16>
    %cst_10 = arith.constant dense<0.000000e+00> : vector<64x64xf32>
    %11 = tpu.matmul %8, %10, %cst_10 {dimension_numbers = #tpu.dot_dimension_numbers<[1], [0], [0], [1], [0, 0, 1, 1], [], []>} : vector<64x3xbf16>, vector<3x64xbf16>, vector<64x64xf32> -> vector<64x64xf32>
    %12 = arith.addf %7, %11 : vector<64x64xf32>
    %13 = vector.extract_strided_slice %2 {offsets = [2, 0], sizes = [64, 3], strides = [1, 1]} : vector<70x3xbf16> to vector<64x3xbf16>
    %c0_11 = arith.constant 0 : index
    %c2 = arith.constant 2 : index
    %c0_12 = arith.constant 0 : index
    %c0_13 = arith.constant 0 : index
    %14 = vector.load %arg10[%c0_11, %c2, %c0_12, %c0_13] : memref<7x7x3x64xbf16, #tpu.memory_space<vmem>>, vector<1x1x3x64xbf16>
    %15 = vector.shape_cast %14 : vector<1x1x3x64xbf16> to vector<3x64xbf16>
    %cst_14 = arith.constant dense<0.000000e+00> : vector<64x64xf32>
    %16 = tpu.matmul %13, %15, %cst_14 {dimension_numbers = #tpu.dot_dimension_numbers<[1], [0], [0], [1], [0, 0, 1, 1], [], []>} : vector<64x3xbf16>, vector<3x64xbf16>, vector<64x64xf32> -> vector<64x64xf32>
    %17 = arith.addf %12, %16 : vector<64x64xf32>
    %18 = vector.extract_strided_slice %2 {offsets = [3, 0], sizes = [64, 3], strides = [1, 1]} : vector<70x3xbf16> to vector<64x3xbf16>
    %c0_15 = arith.constant 0 : index
    %c3 = arith.constant 3 : index
    %c0_16 = arith.constant 0 : index
    %c0_17 = arith.constant 0 : index
    %19 = vector.load %arg10[%c0_15, %c3, %c0_16, %c0_17] : memref<7x7x3x64xbf16, #tpu.memory_space<vmem>>, vector<1x1x3x64xbf16>
    %20 = vector.shape_cast %19 : vector<1x1x3x64xbf16> to vector<3x64xbf16>
    %cst_18 = arith.constant dense<0.000000e+00> : vector<64x64xf32>
    %21 = tpu.matmul %18, %20, %cst_18 {dimension_numbers = #tpu.dot_dimension_numbers<[1], [0], [0], [1], [0, 0, 1, 1], [], []>} : vector<64x3xbf16>, vector<3x64xbf16>, vector<64x64xf32> -> vector<64x64xf32>
    %22 = arith.addf %17, %21 : vector<64x64xf32>
    %23 = vector.extract_strided_slice %2 {offsets = [4, 0], sizes = [64, 3], strides = [1, 1]} : vector<70x3xbf16> to vector<64x3xbf16>
    %c0_19 = arith.constant 0 : index
    %c4 = arith.constant 4 : index
    %c0_20 = arith.constant 0 : index
    %c0_21 = arith.constant 0 : index
    %24 = vector.load %arg10[%c0_19, %c4, %c0_20, %c0_21] : memref<7x7x3x64xbf16, #tpu.memory_space<vmem>>, vector<1x1x3x64xbf16>
    %25 = vector.shape_cast %24 : vector<1x1x3x64xbf16> to vector<3x64xbf16>
    %cst_22 = arith.constant dense<0.000000e+00> : vector<64x64xf32>
    %26 = tpu.matmul %23, %25, %cst_22 {dimension_numbers = #tpu.dot_dimension_numbers<[1], [0], [0], [1], [0, 0, 1, 1], [], []>} : vector<64x3xbf16>, vector<3x64xbf16>, vector<64x64xf32> -> vector<64x64xf32>
    %27 = arith.addf %22, %26 : vector<64x64xf32>
    %28 = vector.extract_strided_slice %2 {offsets = [5, 0], sizes = [64, 3], strides = [1, 1]} : vector<70x3xbf16> to vector<64x3xbf16>
    %c0_23 = arith.constant 0 : index
    %c5 = arith.constant 5 : index
    %c0_24 = arith.constant 0 : index
    %c0_25 = arith.constant 0 : index
    %29 = vector.load %arg10[%c0_23, %c5, %c0_24, %c0_25] : memref<7x7x3x64xbf16, #tpu.memory_space<vmem>>, vector<1x1x3x64xbf16>
    %30 = vector.shape_cast %29 : vector<1x1x3x64xbf16> to vector<3x64xbf16>
    %cst_26 = arith.constant dense<0.000000e+00> : vector<64x64xf32>
    %31 = tpu.matmul %28, %30, %cst_26 {dimension_numbers = #tpu.dot_dimension_numbers<[1], [0], [0], [1], [0, 0, 1, 1], [], []>} : vector<64x3xbf16>, vector<3x64xbf16>, vector<64x64xf32> -> vector<64x64xf32>
    %32 = arith.addf %27, %31 : vector<64x64xf32>
    %33 = vector.extract_strided_slice %2 {offsets = [6, 0], sizes = [64, 3], strides = [1, 1]} : vector<70x3xbf16> to vector<64x3xbf16>
    %c0_27 = arith.constant 0 : index
    %c6 = arith.constant 6 : index
    %c0_28 = arith.constant 0 : index
    %c0_29 = arith.constant 0 : index
    %34 = vector.load %arg10[%c0_27, %c6, %c0_28, %c0_29] : memref<7x7x3x64xbf16, #tpu.memory_space<vmem>>, vector<1x1x3x64xbf16>
    %35 = vector.shape_cast %34 : vector<1x1x3x64xbf16> to vector<3x64xbf16>
    %cst_30 = arith.constant dense<0.000000e+00> : vector<64x64xf32>
    %36 = tpu.matmul %33, %35, %cst_30 {dimension_numbers = #tpu.dot_dimension_numbers<[1], [0], [0], [1], [0, 0, 1, 1], [], []>} : vector<64x3xbf16>, vector<3x64xbf16>, vector<64x64xf32> -> vector<64x64xf32>
    %37 = arith.addf %32, %36 : vector<64x64xf32>
    %c0_31 = arith.constant 0 : index
    %c0_32 = arith.constant 0 : index
    %c0_33 = arith.constant 0 : index
    %38 = vector.load %arg4[%c0_31, %c0_32, %c0_33] : memref<1x70x3xbf16, #tpu.memory_space<vmem>>, vector<1x70x3xbf16>
    %39 = vector.shape_cast %38 : vector<1x70x3xbf16> to vector<70x3xbf16>
    %40 = vector.extract_strided_slice %39 {offsets = [0, 0], sizes = [64, 3], strides = [1, 1]} : vector<70x3xbf16> to vector<64x3xbf16>
    %c1_34 = arith.constant 1 : index
    %c0_35 = arith.constant 0 : index
    %c0_36 = arith.constant 0 : index
    %c0_37 = arith.constant 0 : index
    %41 = vector.load %arg10[%c1_34, %c0_35, %c0_36, %c0_37] : memref<7x7x3x64xbf16, #tpu.memory_space<vmem>>, vector<1x1x3x64xbf16>
    %42 = vector.shape_cast %41 : vector<1x1x3x64xbf16> to vector<3x64xbf16>
    %cst_38 = arith.constant dense<0.000000e+00> : vector<64x64xf32>
    %43 = tpu.matmul %40, %42, %cst_38 {dimension_numbers = #tpu.dot_dimension_numbers<[1], [0], [0], [1], [0, 0, 1, 1], [], []>} : vector<64x3xbf16>, vector<3x64xbf16>, vector<64x64xf32> -> vector<64x64xf32>
    %44 = arith.addf %37, %43 : vector<64x64xf32>
    %45 = vector.extract_strided_slice %39 {offsets = [1, 0], sizes = [64, 3], strides = [1, 1]} : vector<70x3xbf16> to vector<64x3xbf16>
    %c1_39 = arith.constant 1 : index
    %c1_40 = arith.constant 1 : index
    %c0_41 = arith.constant 0 : index
    %c0_42 = arith.constant 0 : index
    %46 = vector.load %arg10[%c1_39, %c1_40, %c0_41, %c0_42] : memref<7x7x3x64xbf16, #tpu.memory_space<vmem>>, vector<1x1x3x64xbf16>
    %47 = vector.shape_cast %46 : vector<1x1x3x64xbf16> to vector<3x64xbf16>
    %cst_43 = arith.constant dense<0.000000e+00> : vector<64x64xf32>
    %48 = tpu.matmul %45, %47, %cst_43 {dimension_numbers = #tpu.dot_dimension_numbers<[1], [0], [0], [1], [0, 0, 1, 1], [], []>} : vector<64x3xbf16>, vector<3x64xbf16>, vector<64x64xf32> -> vector<64x64xf32>
    %49 = arith.addf %44, %48 : vector<64x64xf32>
    %50 = vector.extract_strided_slice %39 {offsets = [2, 0], sizes = [64, 3], strides = [1, 1]} : vector<70x3xbf16> to vector<64x3xbf16>
    %c1_44 = arith.constant 1 : index
    %c2_45 = arith.constant 2 : index
    %c0_46 = arith.constant 0 : index
    %c0_47 = arith.constant 0 : index
    %51 = vector.load %arg10[%c1_44, %c2_45, %c0_46, %c0_47] : memref<7x7x3x64xbf16, #tpu.memory_space<vmem>>, vector<1x1x3x64xbf16>
    %52 = vector.shape_cast %51 : vector<1x1x3x64xbf16> to vector<3x64xbf16>
    %cst_48 = arith.constant dense<0.000000e+00> : vector<64x64xf32>
    %53 = tpu.matmul %50, %52, %cst_48 {dimension_numbers = #tpu.dot_dimension_numbers<[1], [0], [0], [1], [0, 0, 1, 1], [], []>} : vector<64x3xbf16>, vector<3x64xbf16>, vector<64x64xf32> -> vector<64x64xf32>
    %54 = arith.addf %49, %53 : vector<64x64xf32>
    %55 = vector.extract_strided_slice %39 {offsets = [3, 0], sizes = [64, 3], strides = [1, 1]} : vector<70x3xbf16> to vector<64x3xbf16>
    %c1_49 = arith.constant 1 : index
    %c3_50 = arith.constant 3 : index
    %c0_51 = arith.constant 0 : index
    %c0_52 = arith.constant 0 : index
    %56 = vector.load %arg10[%c1_49, %c3_50, %c0_51, %c0_52] : memref<7x7x3x64xbf16, #tpu.memory_space<vmem>>, vector<1x1x3x64xbf16>
    %57 = vector.shape_cast %56 : vector<1x1x3x64xbf16> to vector<3x64xbf16>
    %cst_53 = arith.constant dense<0.000000e+00> : vector<64x64xf32>
    %58 = tpu.matmul %55, %57, %cst_53 {dimension_numbers = #tpu.dot_dimension_numbers<[1], [0], [0], [1], [0, 0, 1, 1], [], []>} : vector<64x3xbf16>, vector<3x64xbf16>, vector<64x64xf32> -> vector<64x64xf32>
    %59 = arith.addf %54, %58 : vector<64x64xf32>
    %60 = vector.extract_strided_slice %39 {offsets = [4, 0], sizes = [64, 3], strides = [1, 1]} : vector<70x3xbf16> to vector<64x3xbf16>
    %c1_54 = arith.constant 1 : index
    %c4_55 = arith.constant 4 : index
    %c0_56 = arith.constant 0 : index
    %c0_57 = arith.constant 0 : index
    %61 = vector.load %arg10[%c1_54, %c4_55, %c0_56, %c0_57] : memref<7x7x3x64xbf16, #tpu.memory_space<vmem>>, vector<1x1x3x64xbf16>
    %62 = vector.shape_cast %61 : vector<1x1x3x64xbf16> to vector<3x64xbf16>
    %cst_58 = arith.constant dense<0.000000e+00> : vector<64x64xf32>
    %63 = tpu.matmul %60, %62, %cst_58 {dimension_numbers = #tpu.dot_dimension_numbers<[1], [0], [0], [1], [0, 0, 1, 1], [], []>} : vector<64x3xbf16>, vector<3x64xbf16>, vector<64x64xf32> -> vector<64x64xf32>
    %64 = arith.addf %59, %63 : vector<64x64xf32>
    %65 = vector.extract_strided_slice %39 {offsets = [5, 0], sizes = [64, 3], strides = [1, 1]} : vector<70x3xbf16> to vector<64x3xbf16>
    %c1_59 = arith.constant 1 : index
    %c5_60 = arith.constant 5 : index
    %c0_61 = arith.constant 0 : index
    %c0_62 = arith.constant 0 : index
    %66 = vector.load %arg10[%c1_59, %c5_60, %c0_61, %c0_62] : memref<7x7x3x64xbf16, #tpu.memory_space<vmem>>, vector<1x1x3x64xbf16>
    %67 = vector.shape_cast %66 : vector<1x1x3x64xbf16> to vector<3x64xbf16>
    %cst_63 = arith.constant dense<0.000000e+00> : vector<64x64xf32>
    %68 = tpu.matmul %65, %67, %cst_63 {dimension_numbers = #tpu.dot_dimension_numbers<[1], [0], [0], [1], [0, 0, 1, 1], [], []>} : vector<64x3xbf16>, vector<3x64xbf16>, vector<64x64xf32> -> vector<64x64xf32>
    %69 = arith.addf %64, %68 : vector<64x64xf32>
    %70 = vector.extract_strided_slice %39 {offsets = [6, 0], sizes = [64, 3], strides = [1, 1]} : vector<70x3xbf16> to vector<64x3xbf16>
    %c1_64 = arith.constant 1 : index
    %c6_65 = arith.constant 6 : index
    %c0_66 = arith.constant 0 : index
    %c0_67 = arith.constant 0 : index
    %71 = vector.load %arg10[%c1_64, %c6_65, %c0_66, %c0_67] : memref<7x7x3x64xbf16, #tpu.memory_space<vmem>>, vector<1x1x3x64xbf16>
    %72 = vector.shape_cast %71 : vector<1x1x3x64xbf16> to vector<3x64xbf16>
    %cst_68 = arith.constant dense<0.000000e+00> : vector<64x64xf32>
    %73 = tpu.matmul %70, %72, %cst_68 {dimension_numbers = #tpu.dot_dimension_numbers<[1], [0], [0], [1], [0, 0, 1, 1], [], []>} : vector<64x3xbf16>, vector<3x64xbf16>, vector<64x64xf32> -> vector<64x64xf32>
    %74 = arith.addf %69, %73 : vector<64x64xf32>
    %c0_69 = arith.constant 0 : index
    %c0_70 = arith.constant 0 : index
    %c0_71 = arith.constant 0 : index
    %75 = vector.load %arg5[%c0_69, %c0_70, %c0_71] : memref<1x70x3xbf16, #tpu.memory_space<vmem>>, vector<1x70x3xbf16>
    %76 = vector.shape_cast %75 : vector<1x70x3xbf16> to vector<70x3xbf16>
    %77 = vector.extract_strided_slice %76 {offsets = [0, 0], sizes = [64, 3], strides = [1, 1]} : vector<70x3xbf16> to vector<64x3xbf16>
    %c2_72 = arith.constant 2 : index
    %c0_73 = arith.constant 0 : index
    %c0_74 = arith.constant 0 : index
    %c0_75 = arith.constant 0 : index
    %78 = vector.load %arg10[%c2_72, %c0_73, %c0_74, %c0_75] : memref<7x7x3x64xbf16, #tpu.memory_space<vmem>>, vector<1x1x3x64xbf16>
    %79 = vector.shape_cast %78 : vector<1x1x3x64xbf16> to vector<3x64xbf16>
    %cst_76 = arith.constant dense<0.000000e+00> : vector<64x64xf32>
    %80 = tpu.matmul %77, %79, %cst_76 {dimension_numbers = #tpu.dot_dimension_numbers<[1], [0], [0], [1], [0, 0, 1, 1], [], []>} : vector<64x3xbf16>, vector<3x64xbf16>, vector<64x64xf32> -> vector<64x64xf32>
    %81 = arith.addf %74, %80 : vector<64x64xf32>
    %82 = vector.extract_strided_slice %76 {offsets = [1, 0], sizes = [64, 3], strides = [1, 1]} : vector<70x3xbf16> to vector<64x3xbf16>
    %c2_77 = arith.constant 2 : index
    %c1_78 = arith.constant 1 : index
    %c0_79 = arith.constant 0 : index
    %c0_80 = arith.constant 0 : index
    %83 = vector.load %arg10[%c2_77, %c1_78, %c0_79, %c0_80] : memref<7x7x3x64xbf16, #tpu.memory_space<vmem>>, vector<1x1x3x64xbf16>
    %84 = vector.shape_cast %83 : vector<1x1x3x64xbf16> to vector<3x64xbf16>
    %cst_81 = arith.constant dense<0.000000e+00> : vector<64x64xf32>
    %85 = tpu.matmul %82, %84, %cst_81 {dimension_numbers = #tpu.dot_dimension_numbers<[1], [0], [0], [1], [0, 0, 1, 1], [], []>} : vector<64x3xbf16>, vector<3x64xbf16>, vector<64x64xf32> -> vector<64x64xf32>
    %86 = arith.addf %81, %85 : vector<64x64xf32>
    %87 = vector.extract_strided_slice %76 {offsets = [2, 0], sizes = [64, 3], strides = [1, 1]} : vector<70x3xbf16> to vector<64x3xbf16>
    %c2_82 = arith.constant 2 : index
    %c2_83 = arith.constant 2 : index
    %c0_84 = arith.constant 0 : index
    %c0_85 = arith.constant 0 : index
    %88 = vector.load %arg10[%c2_82, %c2_83, %c0_84, %c0_85] : memref<7x7x3x64xbf16, #tpu.memory_space<vmem>>, vector<1x1x3x64xbf16>
    %89 = vector.shape_cast %88 : vector<1x1x3x64xbf16> to vector<3x64xbf16>
    %cst_86 = arith.constant dense<0.000000e+00> : vector<64x64xf32>
    %90 = tpu.matmul %87, %89, %cst_86 {dimension_numbers = #tpu.dot_dimension_numbers<[1], [0], [0], [1], [0, 0, 1, 1], [], []>} : vector<64x3xbf16>, vector<3x64xbf16>, vector<64x64xf32> -> vector<64x64xf32>
    %91 = arith.addf %86, %90 : vector<64x64xf32>
    %92 = vector.extract_strided_slice %76 {offsets = [3, 0], sizes = [64, 3], strides = [1, 1]} : vector<70x3xbf16> to vector<64x3xbf16>
    %c2_87 = arith.constant 2 : index
    %c3_88 = arith.constant 3 : index
    %c0_89 = arith.constant 0 : index
    %c0_90 = arith.constant 0 : index
    %93 = vector.load %arg10[%c2_87, %c3_88, %c0_89, %c0_90] : memref<7x7x3x64xbf16, #tpu.memory_space<vmem>>, vector<1x1x3x64xbf16>
    %94 = vector.shape_cast %93 : vector<1x1x3x64xbf16> to vector<3x64xbf16>
    %cst_91 = arith.constant dense<0.000000e+00> : vector<64x64xf32>
    %95 = tpu.matmul %92, %94, %cst_91 {dimension_numbers = #tpu.dot_dimension_numbers<[1], [0], [0], [1], [0, 0, 1, 1], [], []>} : vector<64x3xbf16>, vector<3x64xbf16>, vector<64x64xf32> -> vector<64x64xf32>
    %96 = arith.addf %91, %95 : vector<64x64xf32>
    %97 = vector.extract_strided_slice %76 {offsets = [4, 0], sizes = [64, 3], strides = [1, 1]} : vector<70x3xbf16> to vector<64x3xbf16>
    %c2_92 = arith.constant 2 : index
    %c4_93 = arith.constant 4 : index
    %c0_94 = arith.constant 0 : index
    %c0_95 = arith.constant 0 : index
    %98 = vector.load %arg10[%c2_92, %c4_93, %c0_94, %c0_95] : memref<7x7x3x64xbf16, #tpu.memory_space<vmem>>, vector<1x1x3x64xbf16>
    %99 = vector.shape_cast %98 : vector<1x1x3x64xbf16> to vector<3x64xbf16>
    %cst_96 = arith.constant dense<0.000000e+00> : vector<64x64xf32>
    %100 = tpu.matmul %97, %99, %cst_96 {dimension_numbers = #tpu.dot_dimension_numbers<[1], [0], [0], [1], [0, 0, 1, 1], [], []>} : vector<64x3xbf16>, vector<3x64xbf16>, vector<64x64xf32> -> vector<64x64xf32>
    %101 = arith.addf %96, %100 : vector<64x64xf32>
    %102 = vector.extract_strided_slice %76 {offsets = [5, 0], sizes = [64, 3], strides = [1, 1]} : vector<70x3xbf16> to vector<64x3xbf16>
    %c2_97 = arith.constant 2 : index
    %c5_98 = arith.constant 5 : index
    %c0_99 = arith.constant 0 : index
    %c0_100 = arith.constant 0 : index
    %103 = vector.load %arg10[%c2_97, %c5_98, %c0_99, %c0_100] : memref<7x7x3x64xbf16, #tpu.memory_space<vmem>>, vector<1x1x3x64xbf16>
    %104 = vector.shape_cast %103 : vector<1x1x3x64xbf16> to vector<3x64xbf16>
    %cst_101 = arith.constant dense<0.000000e+00> : vector<64x64xf32>
    %105 = tpu.matmul %102, %104, %cst_101 {dimension_numbers = #tpu.dot_dimension_numbers<[1], [0], [0], [1], [0, 0, 1, 1], [], []>} : vector<64x3xbf16>, vector<3x64xbf16>, vector<64x64xf32> -> vector<64x64xf32>
    %106 = arith.addf %101, %105 : vector<64x64xf32>
    %107 = vector.extract_strided_slice %76 {offsets = [6, 0], sizes = [64, 3], strides = [1, 1]} : vector<70x3xbf16> to vector<64x3xbf16>
    %c2_102 = arith.constant 2 : index
    %c6_103 = arith.constant 6 : index
    %c0_104 = arith.constant 0 : index
    %c0_105 = arith.constant 0 : index
    %108 = vector.load %arg10[%c2_102, %c6_103, %c0_104, %c0_105] : memref<7x7x3x64xbf16, #tpu.memory_space<vmem>>, vector<1x1x3x64xbf16>
    %109 = vector.shape_cast %108 : vector<1x1x3x64xbf16> to vector<3x64xbf16>
    %cst_106 = arith.constant dense<0.000000e+00> : vector<64x64xf32>
    %110 = tpu.matmul %107, %109, %cst_106 {dimension_numbers = #tpu.dot_dimension_numbers<[1], [0], [0], [1], [0, 0, 1, 1], [], []>} : vector<64x3xbf16>, vector<3x64xbf16>, vector<64x64xf32> -> vector<64x64xf32>
    %111 = arith.addf %106, %110 : vector<64x64xf32>
    %c0_107 = arith.constant 0 : index
    %c0_108 = arith.constant 0 : index
    %c0_109 = arith.constant 0 : index
    %112 = vector.load %arg6[%c0_107, %c0_108, %c0_109] : memref<1x70x3xbf16, #tpu.memory_space<vmem>>, vector<1x70x3xbf16>
    %113 = vector.shape_cast %112 : vector<1x70x3xbf16> to vector<70x3xbf16>
    %114 = vector.extract_strided_slice %113 {offsets = [0, 0], sizes = [64, 3], strides = [1, 1]} : vector<70x3xbf16> to vector<64x3xbf16>
    %c3_110 = arith.constant 3 : index
    %c0_111 = arith.constant 0 : index
    %c0_112 = arith.constant 0 : index
    %c0_113 = arith.constant 0 : index
    %115 = vector.load %arg10[%c3_110, %c0_111, %c0_112, %c0_113] : memref<7x7x3x64xbf16, #tpu.memory_space<vmem>>, vector<1x1x3x64xbf16>
    %116 = vector.shape_cast %115 : vector<1x1x3x64xbf16> to vector<3x64xbf16>
    %cst_114 = arith.constant dense<0.000000e+00> : vector<64x64xf32>
    %117 = tpu.matmul %114, %116, %cst_114 {dimension_numbers = #tpu.dot_dimension_numbers<[1], [0], [0], [1], [0, 0, 1, 1], [], []>} : vector<64x3xbf16>, vector<3x64xbf16>, vector<64x64xf32> -> vector<64x64xf32>
    %118 = arith.addf %111, %117 : vector<64x64xf32>
    %119 = vector.extract_strided_slice %113 {offsets = [1, 0], sizes = [64, 3], strides = [1, 1]} : vector<70x3xbf16> to vector<64x3xbf16>
    %c3_115 = arith.constant 3 : index
    %c1_116 = arith.constant 1 : index
    %c0_117 = arith.constant 0 : index
    %c0_118 = arith.constant 0 : index
    %120 = vector.load %arg10[%c3_115, %c1_116, %c0_117, %c0_118] : memref<7x7x3x64xbf16, #tpu.memory_space<vmem>>, vector<1x1x3x64xbf16>
    %121 = vector.shape_cast %120 : vector<1x1x3x64xbf16> to vector<3x64xbf16>
    %cst_119 = arith.constant dense<0.000000e+00> : vector<64x64xf32>
    %122 = tpu.matmul %119, %121, %cst_119 {dimension_numbers = #tpu.dot_dimension_numbers<[1], [0], [0], [1], [0, 0, 1, 1], [], []>} : vector<64x3xbf16>, vector<3x64xbf16>, vector<64x64xf32> -> vector<64x64xf32>
    %123 = arith.addf %118, %122 : vector<64x64xf32>
    %124 = vector.extract_strided_slice %113 {offsets = [2, 0], sizes = [64, 3], strides = [1, 1]} : vector<70x3xbf16> to vector<64x3xbf16>
    %c3_120 = arith.constant 3 : index
    %c2_121 = arith.constant 2 : index
    %c0_122 = arith.constant 0 : index
    %c0_123 = arith.constant 0 : index
    %125 = vector.load %arg10[%c3_120, %c2_121, %c0_122, %c0_123] : memref<7x7x3x64xbf16, #tpu.memory_space<vmem>>, vector<1x1x3x64xbf16>
    %126 = vector.shape_cast %125 : vector<1x1x3x64xbf16> to vector<3x64xbf16>
    %cst_124 = arith.constant dense<0.000000e+00> : vector<64x64xf32>
    %127 = tpu.matmul %124, %126, %cst_124 {dimension_numbers = #tpu.dot_dimension_numbers<[1], [0], [0], [1], [0, 0, 1, 1], [], []>} : vector<64x3xbf16>, vector<3x64xbf16>, vector<64x64xf32> -> vector<64x64xf32>
    %128 = arith.addf %123, %127 : vector<64x64xf32>
    %129 = vector.extract_strided_slice %113 {offsets = [3, 0], sizes = [64, 3], strides = [1, 1]} : vector<70x3xbf16> to vector<64x3xbf16>
    %c3_125 = arith.constant 3 : index
    %c3_126 = arith.constant 3 : index
    %c0_127 = arith.constant 0 : index
    %c0_128 = arith.constant 0 : index
    %130 = vector.load %arg10[%c3_125, %c3_126, %c0_127, %c0_128] : memref<7x7x3x64xbf16, #tpu.memory_space<vmem>>, vector<1x1x3x64xbf16>
    %131 = vector.shape_cast %130 : vector<1x1x3x64xbf16> to vector<3x64xbf16>
    %cst_129 = arith.constant dense<0.000000e+00> : vector<64x64xf32>
    %132 = tpu.matmul %129, %131, %cst_129 {dimension_numbers = #tpu.dot_dimension_numbers<[1], [0], [0], [1], [0, 0, 1, 1], [], []>} : vector<64x3xbf16>, vector<3x64xbf16>, vector<64x64xf32> -> vector<64x64xf32>
    %133 = arith.addf %128, %132 : vector<64x64xf32>
    %134 = vector.extract_strided_slice %113 {offsets = [4, 0], sizes = [64, 3], strides = [1, 1]} : vector<70x3xbf16> to vector<64x3xbf16>
    %c3_130 = arith.constant 3 : index
    %c4_131 = arith.constant 4 : index
    %c0_132 = arith.constant 0 : index
    %c0_133 = arith.constant 0 : index
    %135 = vector.load %arg10[%c3_130, %c4_131, %c0_132, %c0_133] : memref<7x7x3x64xbf16, #tpu.memory_space<vmem>>, vector<1x1x3x64xbf16>
    %136 = vector.shape_cast %135 : vector<1x1x3x64xbf16> to vector<3x64xbf16>
    %cst_134 = arith.constant dense<0.000000e+00> : vector<64x64xf32>
    %137 = tpu.matmul %134, %136, %cst_134 {dimension_numbers = #tpu.dot_dimension_numbers<[1], [0], [0], [1], [0, 0, 1, 1], [], []>} : vector<64x3xbf16>, vector<3x64xbf16>, vector<64x64xf32> -> vector<64x64xf32>
    %138 = arith.addf %133, %137 : vector<64x64xf32>
    %139 = vector.extract_strided_slice %113 {offsets = [5, 0], sizes = [64, 3], strides = [1, 1]} : vector<70x3xbf16> to vector<64x3xbf16>
    %c3_135 = arith.constant 3 : index
    %c5_136 = arith.constant 5 : index
    %c0_137 = arith.constant 0 : index
    %c0_138 = arith.constant 0 : index
    %140 = vector.load %arg10[%c3_135, %c5_136, %c0_137, %c0_138] : memref<7x7x3x64xbf16, #tpu.memory_space<vmem>>, vector<1x1x3x64xbf16>
    %141 = vector.shape_cast %140 : vector<1x1x3x64xbf16> to vector<3x64xbf16>
    %cst_139 = arith.constant dense<0.000000e+00> : vector<64x64xf32>
    %142 = tpu.matmul %139, %141, %cst_139 {dimension_numbers = #tpu.dot_dimension_numbers<[1], [0], [0], [1], [0, 0, 1, 1], [], []>} : vector<64x3xbf16>, vector<3x64xbf16>, vector<64x64xf32> -> vector<64x64xf32>
    %143 = arith.addf %138, %142 : vector<64x64xf32>
    %144 = vector.extract_strided_slice %113 {offsets = [6, 0], sizes = [64, 3], strides = [1, 1]} : vector<70x3xbf16> to vector<64x3xbf16>
    %c3_140 = arith.constant 3 : index
    %c6_141 = arith.constant 6 : index
    %c0_142 = arith.constant 0 : index
    %c0_143 = arith.constant 0 : index
    %145 = vector.load %arg10[%c3_140, %c6_141, %c0_142, %c0_143] : memref<7x7x3x64xbf16, #tpu.memory_space<vmem>>, vector<1x1x3x64xbf16>
    %146 = vector.shape_cast %145 : vector<1x1x3x64xbf16> to vector<3x64xbf16>
    %cst_144 = arith.constant dense<0.000000e+00> : vector<64x64xf32>
    %147 = tpu.matmul %144, %146, %cst_144 {dimension_numbers = #tpu.dot_dimension_numbers<[1], [0], [0], [1], [0, 0, 1, 1], [], []>} : vector<64x3xbf16>, vector<3x64xbf16>, vector<64x64xf32> -> vector<64x64xf32>
    %148 = arith.addf %143, %147 : vector<64x64xf32>
    %c0_145 = arith.constant 0 : index
    %c0_146 = arith.constant 0 : index
    %c0_147 = arith.constant 0 : index
    %149 = vector.load %arg7[%c0_145, %c0_146, %c0_147] : memref<1x70x3xbf16, #tpu.memory_space<vmem>>, vector<1x70x3xbf16>
    %150 = vector.shape_cast %149 : vector<1x70x3xbf16> to vector<70x3xbf16>
    %151 = vector.extract_strided_slice %150 {offsets = [0, 0], sizes = [64, 3], strides = [1, 1]} : vector<70x3xbf16> to vector<64x3xbf16>
    %c4_148 = arith.constant 4 : index
    %c0_149 = arith.constant 0 : index
    %c0_150 = arith.constant 0 : index
    %c0_151 = arith.constant 0 : index
    %152 = vector.load %arg10[%c4_148, %c0_149, %c0_150, %c0_151] : memref<7x7x3x64xbf16, #tpu.memory_space<vmem>>, vector<1x1x3x64xbf16>
    %153 = vector.shape_cast %152 : vector<1x1x3x64xbf16> to vector<3x64xbf16>
    %cst_152 = arith.constant dense<0.000000e+00> : vector<64x64xf32>
    %154 = tpu.matmul %151, %153, %cst_152 {dimension_numbers = #tpu.dot_dimension_numbers<[1], [0], [0], [1], [0, 0, 1, 1], [], []>} : vector<64x3xbf16>, vector<3x64xbf16>, vector<64x64xf32> -> vector<64x64xf32>
    %155 = arith.addf %148, %154 : vector<64x64xf32>
    %156 = vector.extract_strided_slice %150 {offsets = [1, 0], sizes = [64, 3], strides = [1, 1]} : vector<70x3xbf16> to vector<64x3xbf16>
    %c4_153 = arith.constant 4 : index
    %c1_154 = arith.constant 1 : index
    %c0_155 = arith.constant 0 : index
    %c0_156 = arith.constant 0 : index
    %157 = vector.load %arg10[%c4_153, %c1_154, %c0_155, %c0_156] : memref<7x7x3x64xbf16, #tpu.memory_space<vmem>>, vector<1x1x3x64xbf16>
    %158 = vector.shape_cast %157 : vector<1x1x3x64xbf16> to vector<3x64xbf16>
    %cst_157 = arith.constant dense<0.000000e+00> : vector<64x64xf32>
    %159 = tpu.matmul %156, %158, %cst_157 {dimension_numbers = #tpu.dot_dimension_numbers<[1], [0], [0], [1], [0, 0, 1, 1], [], []>} : vector<64x3xbf16>, vector<3x64xbf16>, vector<64x64xf32> -> vector<64x64xf32>
    %160 = arith.addf %155, %159 : vector<64x64xf32>
    %161 = vector.extract_strided_slice %150 {offsets = [2, 0], sizes = [64, 3], strides = [1, 1]} : vector<70x3xbf16> to vector<64x3xbf16>
    %c4_158 = arith.constant 4 : index
    %c2_159 = arith.constant 2 : index
    %c0_160 = arith.constant 0 : index
    %c0_161 = arith.constant 0 : index
    %162 = vector.load %arg10[%c4_158, %c2_159, %c0_160, %c0_161] : memref<7x7x3x64xbf16, #tpu.memory_space<vmem>>, vector<1x1x3x64xbf16>
    %163 = vector.shape_cast %162 : vector<1x1x3x64xbf16> to vector<3x64xbf16>
    %cst_162 = arith.constant dense<0.000000e+00> : vector<64x64xf32>
    %164 = tpu.matmul %161, %163, %cst_162 {dimension_numbers = #tpu.dot_dimension_numbers<[1], [0], [0], [1], [0, 0, 1, 1], [], []>} : vector<64x3xbf16>, vector<3x64xbf16>, vector<64x64xf32> -> vector<64x64xf32>
    %165 = arith.addf %160, %164 : vector<64x64xf32>
    %166 = vector.extract_strided_slice %150 {offsets = [3, 0], sizes = [64, 3], strides = [1, 1]} : vector<70x3xbf16> to vector<64x3xbf16>
    %c4_163 = arith.constant 4 : index
    %c3_164 = arith.constant 3 : index
    %c0_165 = arith.constant 0 : index
    %c0_166 = arith.constant 0 : index
    %167 = vector.load %arg10[%c4_163, %c3_164, %c0_165, %c0_166] : memref<7x7x3x64xbf16, #tpu.memory_space<vmem>>, vector<1x1x3x64xbf16>
    %168 = vector.shape_cast %167 : vector<1x1x3x64xbf16> to vector<3x64xbf16>
    %cst_167 = arith.constant dense<0.000000e+00> : vector<64x64xf32>
    %169 = tpu.matmul %166, %168, %cst_167 {dimension_numbers = #tpu.dot_dimension_numbers<[1], [0], [0], [1], [0, 0, 1, 1], [], []>} : vector<64x3xbf16>, vector<3x64xbf16>, vector<64x64xf32> -> vector<64x64xf32>
    %170 = arith.addf %165, %169 : vector<64x64xf32>
    %171 = vector.extract_strided_slice %150 {offsets = [4, 0], sizes = [64, 3], strides = [1, 1]} : vector<70x3xbf16> to vector<64x3xbf16>
    %c4_168 = arith.constant 4 : index
    %c4_169 = arith.constant 4 : index
    %c0_170 = arith.constant 0 : index
    %c0_171 = arith.constant 0 : index
    %172 = vector.load %arg10[%c4_168, %c4_169, %c0_170, %c0_171] : memref<7x7x3x64xbf16, #tpu.memory_space<vmem>>, vector<1x1x3x64xbf16>
    %173 = vector.shape_cast %172 : vector<1x1x3x64xbf16> to vector<3x64xbf16>
    %cst_172 = arith.constant dense<0.000000e+00> : vector<64x64xf32>
    %174 = tpu.matmul %171, %173, %cst_172 {dimension_numbers = #tpu.dot_dimension_numbers<[1], [0], [0], [1], [0, 0, 1, 1], [], []>} : vector<64x3xbf16>, vector<3x64xbf16>, vector<64x64xf32> -> vector<64x64xf32>
    %175 = arith.addf %170, %174 : vector<64x64xf32>
    %176 = vector.extract_strided_slice %150 {offsets = [5, 0], sizes = [64, 3], strides = [1, 1]} : vector<70x3xbf16> to vector<64x3xbf16>
    %c4_173 = arith.constant 4 : index
    %c5_174 = arith.constant 5 : index
    %c0_175 = arith.constant 0 : index
    %c0_176 = arith.constant 0 : index
    %177 = vector.load %arg10[%c4_173, %c5_174, %c0_175, %c0_176] : memref<7x7x3x64xbf16, #tpu.memory_space<vmem>>, vector<1x1x3x64xbf16>
    %178 = vector.shape_cast %177 : vector<1x1x3x64xbf16> to vector<3x64xbf16>
    %cst_177 = arith.constant dense<0.000000e+00> : vector<64x64xf32>
    %179 = tpu.matmul %176, %178, %cst_177 {dimension_numbers = #tpu.dot_dimension_numbers<[1], [0], [0], [1], [0, 0, 1, 1], [], []>} : vector<64x3xbf16>, vector<3x64xbf16>, vector<64x64xf32> -> vector<64x64xf32>
    %180 = arith.addf %175, %179 : vector<64x64xf32>
    %181 = vector.extract_strided_slice %150 {offsets = [6, 0], sizes = [64, 3], strides = [1, 1]} : vector<70x3xbf16> to vector<64x3xbf16>
    %c4_178 = arith.constant 4 : index
    %c6_179 = arith.constant 6 : index
    %c0_180 = arith.constant 0 : index
    %c0_181 = arith.constant 0 : index
    %182 = vector.load %arg10[%c4_178, %c6_179, %c0_180, %c0_181] : memref<7x7x3x64xbf16, #tpu.memory_space<vmem>>, vector<1x1x3x64xbf16>
    %183 = vector.shape_cast %182 : vector<1x1x3x64xbf16> to vector<3x64xbf16>
    %cst_182 = arith.constant dense<0.000000e+00> : vector<64x64xf32>
    %184 = tpu.matmul %181, %183, %cst_182 {dimension_numbers = #tpu.dot_dimension_numbers<[1], [0], [0], [1], [0, 0, 1, 1], [], []>} : vector<64x3xbf16>, vector<3x64xbf16>, vector<64x64xf32> -> vector<64x64xf32>
    %185 = arith.addf %180, %184 : vector<64x64xf32>
    %c0_183 = arith.constant 0 : index
    %c0_184 = arith.constant 0 : index
    %c0_185 = arith.constant 0 : index
    %186 = vector.load %arg8[%c0_183, %c0_184, %c0_185] : memref<1x70x3xbf16, #tpu.memory_space<vmem>>, vector<1x70x3xbf16>
    %187 = vector.shape_cast %186 : vector<1x70x3xbf16> to vector<70x3xbf16>
    %188 = vector.extract_strided_slice %187 {offsets = [0, 0], sizes = [64, 3], strides = [1, 1]} : vector<70x3xbf16> to vector<64x3xbf16>
    %c5_186 = arith.constant 5 : index
    %c0_187 = arith.constant 0 : index
    %c0_188 = arith.constant 0 : index
    %c0_189 = arith.constant 0 : index
    %189 = vector.load %arg10[%c5_186, %c0_187, %c0_188, %c0_189] : memref<7x7x3x64xbf16, #tpu.memory_space<vmem>>, vector<1x1x3x64xbf16>
    %190 = vector.shape_cast %189 : vector<1x1x3x64xbf16> to vector<3x64xbf16>
    %cst_190 = arith.constant dense<0.000000e+00> : vector<64x64xf32>
    %191 = tpu.matmul %188, %190, %cst_190 {dimension_numbers = #tpu.dot_dimension_numbers<[1], [0], [0], [1], [0, 0, 1, 1], [], []>} : vector<64x3xbf16>, vector<3x64xbf16>, vector<64x64xf32> -> vector<64x64xf32>
    %192 = arith.addf %185, %191 : vector<64x64xf32>
    %193 = vector.extract_strided_slice %187 {offsets = [1, 0], sizes = [64, 3], strides = [1, 1]} : vector<70x3xbf16> to vector<64x3xbf16>
    %c5_191 = arith.constant 5 : index
    %c1_192 = arith.constant 1 : index
    %c0_193 = arith.constant 0 : index
    %c0_194 = arith.constant 0 : index
    %194 = vector.load %arg10[%c5_191, %c1_192, %c0_193, %c0_194] : memref<7x7x3x64xbf16, #tpu.memory_space<vmem>>, vector<1x1x3x64xbf16>
    %195 = vector.shape_cast %194 : vector<1x1x3x64xbf16> to vector<3x64xbf16>
    %cst_195 = arith.constant dense<0.000000e+00> : vector<64x64xf32>
    %196 = tpu.matmul %193, %195, %cst_195 {dimension_numbers = #tpu.dot_dimension_numbers<[1], [0], [0], [1], [0, 0, 1, 1], [], []>} : vector<64x3xbf16>, vector<3x64xbf16>, vector<64x64xf32> -> vector<64x64xf32>
    %197 = arith.addf %192, %196 : vector<64x64xf32>
    %198 = vector.extract_strided_slice %187 {offsets = [2, 0], sizes = [64, 3], strides = [1, 1]} : vector<70x3xbf16> to vector<64x3xbf16>
    %c5_196 = arith.constant 5 : index
    %c2_197 = arith.constant 2 : index
    %c0_198 = arith.constant 0 : index
    %c0_199 = arith.constant 0 : index
    %199 = vector.load %arg10[%c5_196, %c2_197, %c0_198, %c0_199] : memref<7x7x3x64xbf16, #tpu.memory_space<vmem>>, vector<1x1x3x64xbf16>
    %200 = vector.shape_cast %199 : vector<1x1x3x64xbf16> to vector<3x64xbf16>
    %cst_200 = arith.constant dense<0.000000e+00> : vector<64x64xf32>
    %201 = tpu.matmul %198, %200, %cst_200 {dimension_numbers = #tpu.dot_dimension_numbers<[1], [0], [0], [1], [0, 0, 1, 1], [], []>} : vector<64x3xbf16>, vector<3x64xbf16>, vector<64x64xf32> -> vector<64x64xf32>
    %202 = arith.addf %197, %201 : vector<64x64xf32>
    %203 = vector.extract_strided_slice %187 {offsets = [3, 0], sizes = [64, 3], strides = [1, 1]} : vector<70x3xbf16> to vector<64x3xbf16>
    %c5_201 = arith.constant 5 : index
    %c3_202 = arith.constant 3 : index
    %c0_203 = arith.constant 0 : index
    %c0_204 = arith.constant 0 : index
    %204 = vector.load %arg10[%c5_201, %c3_202, %c0_203, %c0_204] : memref<7x7x3x64xbf16, #tpu.memory_space<vmem>>, vector<1x1x3x64xbf16>
    %205 = vector.shape_cast %204 : vector<1x1x3x64xbf16> to vector<3x64xbf16>
    %cst_205 = arith.constant dense<0.000000e+00> : vector<64x64xf32>
    %206 = tpu.matmul %203, %205, %cst_205 {dimension_numbers = #tpu.dot_dimension_numbers<[1], [0], [0], [1], [0, 0, 1, 1], [], []>} : vector<64x3xbf16>, vector<3x64xbf16>, vector<64x64xf32> -> vector<64x64xf32>
    %207 = arith.addf %202, %206 : vector<64x64xf32>
    %208 = vector.extract_strided_slice %187 {offsets = [4, 0], sizes = [64, 3], strides = [1, 1]} : vector<70x3xbf16> to vector<64x3xbf16>
    %c5_206 = arith.constant 5 : index
    %c4_207 = arith.constant 4 : index
    %c0_208 = arith.constant 0 : index
    %c0_209 = arith.constant 0 : index
    %209 = vector.load %arg10[%c5_206, %c4_207, %c0_208, %c0_209] : memref<7x7x3x64xbf16, #tpu.memory_space<vmem>>, vector<1x1x3x64xbf16>
    %210 = vector.shape_cast %209 : vector<1x1x3x64xbf16> to vector<3x64xbf16>
    %cst_210 = arith.constant dense<0.000000e+00> : vector<64x64xf32>
    %211 = tpu.matmul %208, %210, %cst_210 {dimension_numbers = #tpu.dot_dimension_numbers<[1], [0], [0], [1], [0, 0, 1, 1], [], []>} : vector<64x3xbf16>, vector<3x64xbf16>, vector<64x64xf32> -> vector<64x64xf32>
    %212 = arith.addf %207, %211 : vector<64x64xf32>
    %213 = vector.extract_strided_slice %187 {offsets = [5, 0], sizes = [64, 3], strides = [1, 1]} : vector<70x3xbf16> to vector<64x3xbf16>
    %c5_211 = arith.constant 5 : index
    %c5_212 = arith.constant 5 : index
    %c0_213 = arith.constant 0 : index
    %c0_214 = arith.constant 0 : index
    %214 = vector.load %arg10[%c5_211, %c5_212, %c0_213, %c0_214] : memref<7x7x3x64xbf16, #tpu.memory_space<vmem>>, vector<1x1x3x64xbf16>
    %215 = vector.shape_cast %214 : vector<1x1x3x64xbf16> to vector<3x64xbf16>
    %cst_215 = arith.constant dense<0.000000e+00> : vector<64x64xf32>
    %216 = tpu.matmul %213, %215, %cst_215 {dimension_numbers = #tpu.dot_dimension_numbers<[1], [0], [0], [1], [0, 0, 1, 1], [], []>} : vector<64x3xbf16>, vector<3x64xbf16>, vector<64x64xf32> -> vector<64x64xf32>
    %217 = arith.addf %212, %216 : vector<64x64xf32>
    %218 = vector.extract_strided_slice %187 {offsets = [6, 0], sizes = [64, 3], strides = [1, 1]} : vector<70x3xbf16> to vector<64x3xbf16>
    %c5_216 = arith.constant 5 : index
    %c6_217 = arith.constant 6 : index
    %c0_218 = arith.constant 0 : index
    %c0_219 = arith.constant 0 : index
    %219 = vector.load %arg10[%c5_216, %c6_217, %c0_218, %c0_219] : memref<7x7x3x64xbf16, #tpu.memory_space<vmem>>, vector<1x1x3x64xbf16>
    %220 = vector.shape_cast %219 : vector<1x1x3x64xbf16> to vector<3x64xbf16>
    %cst_220 = arith.constant dense<0.000000e+00> : vector<64x64xf32>
    %221 = tpu.matmul %218, %220, %cst_220 {dimension_numbers = #tpu.dot_dimension_numbers<[1], [0], [0], [1], [0, 0, 1, 1], [], []>} : vector<64x3xbf16>, vector<3x64xbf16>, vector<64x64xf32> -> vector<64x64xf32>
    %222 = arith.addf %217, %221 : vector<64x64xf32>
    %c0_221 = arith.constant 0 : index
    %c0_222 = arith.constant 0 : index
    %c0_223 = arith.constant 0 : index
    %223 = vector.load %arg9[%c0_221, %c0_222, %c0_223] : memref<1x70x3xbf16, #tpu.memory_space<vmem>>, vector<1x70x3xbf16>
    %224 = vector.shape_cast %223 : vector<1x70x3xbf16> to vector<70x3xbf16>
    %225 = vector.extract_strided_slice %224 {offsets = [0, 0], sizes = [64, 3], strides = [1, 1]} : vector<70x3xbf16> to vector<64x3xbf16>
    %c6_224 = arith.constant 6 : index
    %c0_225 = arith.constant 0 : index
    %c0_226 = arith.constant 0 : index
    %c0_227 = arith.constant 0 : index
    %226 = vector.load %arg10[%c6_224, %c0_225, %c0_226, %c0_227] : memref<7x7x3x64xbf16, #tpu.memory_space<vmem>>, vector<1x1x3x64xbf16>
    %227 = vector.shape_cast %226 : vector<1x1x3x64xbf16> to vector<3x64xbf16>
    %cst_228 = arith.constant dense<0.000000e+00> : vector<64x64xf32>
    %228 = tpu.matmul %225, %227, %cst_228 {dimension_numbers = #tpu.dot_dimension_numbers<[1], [0], [0], [1], [0, 0, 1, 1], [], []>} : vector<64x3xbf16>, vector<3x64xbf16>, vector<64x64xf32> -> vector<64x64xf32>
    %229 = arith.addf %222, %228 : vector<64x64xf32>
    %230 = vector.extract_strided_slice %224 {offsets = [1, 0], sizes = [64, 3], strides = [1, 1]} : vector<70x3xbf16> to vector<64x3xbf16>
    %c6_229 = arith.constant 6 : index
    %c1_230 = arith.constant 1 : index
    %c0_231 = arith.constant 0 : index
    %c0_232 = arith.constant 0 : index
    %231 = vector.load %arg10[%c6_229, %c1_230, %c0_231, %c0_232] : memref<7x7x3x64xbf16, #tpu.memory_space<vmem>>, vector<1x1x3x64xbf16>
    %232 = vector.shape_cast %231 : vector<1x1x3x64xbf16> to vector<3x64xbf16>
    %cst_233 = arith.constant dense<0.000000e+00> : vector<64x64xf32>
    %233 = tpu.matmul %230, %232, %cst_233 {dimension_numbers = #tpu.dot_dimension_numbers<[1], [0], [0], [1], [0, 0, 1, 1], [], []>} : vector<64x3xbf16>, vector<3x64xbf16>, vector<64x64xf32> -> vector<64x64xf32>
    %234 = arith.addf %229, %233 : vector<64x64xf32>
    %235 = vector.extract_strided_slice %224 {offsets = [2, 0], sizes = [64, 3], strides = [1, 1]} : vector<70x3xbf16> to vector<64x3xbf16>
    %c6_234 = arith.constant 6 : index
    %c2_235 = arith.constant 2 : index
    %c0_236 = arith.constant 0 : index
    %c0_237 = arith.constant 0 : index
    %236 = vector.load %arg10[%c6_234, %c2_235, %c0_236, %c0_237] : memref<7x7x3x64xbf16, #tpu.memory_space<vmem>>, vector<1x1x3x64xbf16>
    %237 = vector.shape_cast %236 : vector<1x1x3x64xbf16> to vector<3x64xbf16>
    %cst_238 = arith.constant dense<0.000000e+00> : vector<64x64xf32>
    %238 = tpu.matmul %235, %237, %cst_238 {dimension_numbers = #tpu.dot_dimension_numbers<[1], [0], [0], [1], [0, 0, 1, 1], [], []>} : vector<64x3xbf16>, vector<3x64xbf16>, vector<64x64xf32> -> vector<64x64xf32>
    %239 = arith.addf %234, %238 : vector<64x64xf32>
    %240 = vector.extract_strided_slice %224 {offsets = [3, 0], sizes = [64, 3], strides = [1, 1]} : vector<70x3xbf16> to vector<64x3xbf16>
    %c6_239 = arith.constant 6 : index
    %c3_240 = arith.constant 3 : index
    %c0_241 = arith.constant 0 : index
    %c0_242 = arith.constant 0 : index
    %241 = vector.load %arg10[%c6_239, %c3_240, %c0_241, %c0_242] : memref<7x7x3x64xbf16, #tpu.memory_space<vmem>>, vector<1x1x3x64xbf16>
    %242 = vector.shape_cast %241 : vector<1x1x3x64xbf16> to vector<3x64xbf16>
    %cst_243 = arith.constant dense<0.000000e+00> : vector<64x64xf32>
    %243 = tpu.matmul %240, %242, %cst_243 {dimension_numbers = #tpu.dot_dimension_numbers<[1], [0], [0], [1], [0, 0, 1, 1], [], []>} : vector<64x3xbf16>, vector<3x64xbf16>, vector<64x64xf32> -> vector<64x64xf32>
    %244 = arith.addf %239, %243 : vector<64x64xf32>
    %245 = vector.extract_strided_slice %224 {offsets = [4, 0], sizes = [64, 3], strides = [1, 1]} : vector<70x3xbf16> to vector<64x3xbf16>
    %c6_244 = arith.constant 6 : index
    %c4_245 = arith.constant 4 : index
    %c0_246 = arith.constant 0 : index
    %c0_247 = arith.constant 0 : index
    %246 = vector.load %arg10[%c6_244, %c4_245, %c0_246, %c0_247] : memref<7x7x3x64xbf16, #tpu.memory_space<vmem>>, vector<1x1x3x64xbf16>
    %247 = vector.shape_cast %246 : vector<1x1x3x64xbf16> to vector<3x64xbf16>
    %cst_248 = arith.constant dense<0.000000e+00> : vector<64x64xf32>
    %248 = tpu.matmul %245, %247, %cst_248 {dimension_numbers = #tpu.dot_dimension_numbers<[1], [0], [0], [1], [0, 0, 1, 1], [], []>} : vector<64x3xbf16>, vector<3x64xbf16>, vector<64x64xf32> -> vector<64x64xf32>
    %249 = arith.addf %244, %248 : vector<64x64xf32>
    %250 = vector.extract_strided_slice %224 {offsets = [5, 0], sizes = [64, 3], strides = [1, 1]} : vector<70x3xbf16> to vector<64x3xbf16>
    %c6_249 = arith.constant 6 : index
    %c5_250 = arith.constant 5 : index
    %c0_251 = arith.constant 0 : index
    %c0_252 = arith.constant 0 : index
    %251 = vector.load %arg10[%c6_249, %c5_250, %c0_251, %c0_252] : memref<7x7x3x64xbf16, #tpu.memory_space<vmem>>, vector<1x1x3x64xbf16>
    %252 = vector.shape_cast %251 : vector<1x1x3x64xbf16> to vector<3x64xbf16>
    %cst_253 = arith.constant dense<0.000000e+00> : vector<64x64xf32>
    %253 = tpu.matmul %250, %252, %cst_253 {dimension_numbers = #tpu.dot_dimension_numbers<[1], [0], [0], [1], [0, 0, 1, 1], [], []>} : vector<64x3xbf16>, vector<3x64xbf16>, vector<64x64xf32> -> vector<64x64xf32>
    %254 = arith.addf %249, %253 : vector<64x64xf32>
    %255 = vector.extract_strided_slice %224 {offsets = [6, 0], sizes = [64, 3], strides = [1, 1]} : vector<70x3xbf16> to vector<64x3xbf16>
    %c6_254 = arith.constant 6 : index
    %c6_255 = arith.constant 6 : index
    %c0_256 = arith.constant 0 : index
    %c0_257 = arith.constant 0 : index
    %256 = vector.load %arg10[%c6_254, %c6_255, %c0_256, %c0_257] : memref<7x7x3x64xbf16, #tpu.memory_space<vmem>>, vector<1x1x3x64xbf16>
    %257 = vector.shape_cast %256 : vector<1x1x3x64xbf16> to vector<3x64xbf16>
    %cst_258 = arith.constant dense<0.000000e+00> : vector<64x64xf32>
    %258 = tpu.matmul %255, %257, %cst_258 {dimension_numbers = #tpu.dot_dimension_numbers<[1], [0], [0], [1], [0, 0, 1, 1], [], []>} : vector<64x3xbf16>, vector<3x64xbf16>, vector<64x64xf32> -> vector<64x64xf32>
    %259 = arith.addf %254, %258 : vector<64x64xf32>
    %c0_259 = arith.constant 0 : index
    %c0_260 = arith.constant 0 : index
    %260 = vector.load %arg11[%c0_259, %c0_260] : memref<1x64xf32, #tpu.memory_space<vmem>>, vector<1x64xf32>
    %261 = vector.broadcast %260 : vector<1x64xf32> to vector<64x64xf32>
    %262 = arith.mulf %259, %261 : vector<64x64xf32>
    %c0_261 = arith.constant 0 : index
    %c0_262 = arith.constant 0 : index
    %263 = vector.load %arg12[%c0_261, %c0_262] : memref<1x64xf32, #tpu.memory_space<vmem>>, vector<1x64xf32>
    %264 = vector.broadcast %263 : vector<1x64xf32> to vector<64x64xf32>
    %265 = arith.addf %262, %264 : vector<64x64xf32>
    %cst_263 = arith.constant 0.000000e+00 : f32
    %266 = vector.broadcast %cst_263 : f32 to vector<64x64xf32>
    %267 = arith.maximumf %265, %266 : vector<64x64xf32>
    %268 = arith.truncf %267 : vector<64x64xf32> to vector<64x64xbf16>
    %c0_264 = arith.constant 0 : index
    %c0_265 = arith.constant 0 : index
    %c0_266 = arith.constant 0 : index
    %c0_267 = arith.constant 0 : index
    %269 = vector.load %arg13[%c0_264, %c0_265, %c0_266, %c0_267] : memref<1x1x64x64xbf16, #tpu.memory_space<vmem>>, vector<1x1x64x64xbf16>
    %270 = vector.shape_cast %269 : vector<1x1x64x64xbf16> to vector<64x64xbf16>
    %271 = vector.shape_cast %268 : vector<64x64xbf16> to vector<1x1x64x64xbf16>
    tpu.vector_store %arg13[%c0_264, %c0_265, %c0_266, %c0_267], %271 {strides = array<i32>} : memref<1x1x64x64xbf16, #tpu.memory_space<vmem>>, vector<1x1x64x64xbf16>,
    return
  }
  func.func @transform_0(%arg0: i32, %arg1: i32, %arg2: i32) -> (i32, i32, i32) {
    %c70_i32 = arith.constant 70 : i32
    %0 = arith.muli %arg1, %c70_i32 : i32
    %c2_i32 = arith.constant 2 : i32
    %1 = arith.muli %arg2, %c2_i32 : i32
    %2 = arith.addi %0, %1 : i32
    %c0_i32 = arith.constant 0 : i32
    %3 = arith.addi %2, %c0_i32 : i32
    %c0_i32_0 = arith.constant 0 : i32
    %c0_i32_1 = arith.constant 0 : i32
    %c0_i32_2 = arith.constant 0 : i32
    return %3, %c0_i32_0, %c0_i32_1 : i32, i32, i32
  }
  func.func @transform_1(%arg0: i32, %arg1: i32, %arg2: i32) -> (i32, i32, i32) {
    %c70_i32 = arith.constant 70 : i32
    %0 = arith.muli %arg1, %c70_i32 : i32
    %c2_i32 = arith.constant 2 : i32
    %1 = arith.muli %arg2, %c2_i32 : i32
    %2 = arith.addi %0, %1 : i32
    %c1_i32 = arith.constant 1 : i32
    %3 = arith.addi %2, %c1_i32 : i32
    %c0_i32 = arith.constant 0 : i32
    %c0_i32_0 = arith.constant 0 : i32
    %c0_i32_1 = arith.constant 0 : i32
    return %3, %c0_i32, %c0_i32_0 : i32, i32, i32
  }
  func.func @transform_2(%arg0: i32, %arg1: i32, %arg2: i32) -> (i32, i32, i32) {
    %c70_i32 = arith.constant 70 : i32
    %0 = arith.muli %arg1, %c70_i32 : i32
    %c2_i32 = arith.constant 2 : i32
    %1 = arith.muli %arg2, %c2_i32 : i32
    %2 = arith.addi %0, %1 : i32
    %c2_i32_0 = arith.constant 2 : i32
    %3 = arith.addi %2, %c2_i32_0 : i32
    %c0_i32 = arith.constant 0 : i32
    %c0_i32_1 = arith.constant 0 : i32
    %c0_i32_2 = arith.constant 0 : i32
    return %3, %c0_i32, %c0_i32_1 : i32, i32, i32
  }
  func.func @transform_3(%arg0: i32, %arg1: i32, %arg2: i32) -> (i32, i32, i32) {
    %c70_i32 = arith.constant 70 : i32
    %0 = arith.muli %arg1, %c70_i32 : i32
    %c2_i32 = arith.constant 2 : i32
    %1 = arith.muli %arg2, %c2_i32 : i32
    %2 = arith.addi %0, %1 : i32
    %c3_i32 = arith.constant 3 : i32
    %3 = arith.addi %2, %c3_i32 : i32
    %c0_i32 = arith.constant 0 : i32
    %c0_i32_0 = arith.constant 0 : i32
    %c0_i32_1 = arith.constant 0 : i32
    return %3, %c0_i32, %c0_i32_0 : i32, i32, i32
  }
  func.func @transform_4(%arg0: i32, %arg1: i32, %arg2: i32) -> (i32, i32, i32) {
    %c70_i32 = arith.constant 70 : i32
    %0 = arith.muli %arg1, %c70_i32 : i32
    %c2_i32 = arith.constant 2 : i32
    %1 = arith.muli %arg2, %c2_i32 : i32
    %2 = arith.addi %0, %1 : i32
    %c4_i32 = arith.constant 4 : i32
    %3 = arith.addi %2, %c4_i32 : i32
    %c0_i32 = arith.constant 0 : i32
    %c0_i32_0 = arith.constant 0 : i32
    %c0_i32_1 = arith.constant 0 : i32
    return %3, %c0_i32, %c0_i32_0 : i32, i32, i32
  }
  func.func @transform_5(%arg0: i32, %arg1: i32, %arg2: i32) -> (i32, i32, i32) {
    %c70_i32 = arith.constant 70 : i32
    %0 = arith.muli %arg1, %c70_i32 : i32
    %c2_i32 = arith.constant 2 : i32
    %1 = arith.muli %arg2, %c2_i32 : i32
    %2 = arith.addi %0, %1 : i32
    %c5_i32 = arith.constant 5 : i32
    %3 = arith.addi %2, %c5_i32 : i32
    %c0_i32 = arith.constant 0 : i32
    %c0_i32_0 = arith.constant 0 : i32
    %c0_i32_1 = arith.constant 0 : i32
    return %3, %c0_i32, %c0_i32_0 : i32, i32, i32
  }
  func.func @transform_6(%arg0: i32, %arg1: i32, %arg2: i32) -> (i32, i32, i32) {
    %c70_i32 = arith.constant 70 : i32
    %0 = arith.muli %arg1, %c70_i32 : i32
    %c2_i32 = arith.constant 2 : i32
    %1 = arith.muli %arg2, %c2_i32 : i32
    %2 = arith.addi %0, %1 : i32
    %c6_i32 = arith.constant 6 : i32
    %3 = arith.addi %2, %c6_i32 : i32
    %c0_i32 = arith.constant 0 : i32
    %c0_i32_0 = arith.constant 0 : i32
    %c0_i32_1 = arith.constant 0 : i32
    return %3, %c0_i32, %c0_i32_0 : i32, i32, i32
  }
  func.func @transform_7(%arg0: i32, %arg1: i32, %arg2: i32) -> (i32, i32, i32, i32) {
    %c0_i32 = arith.constant 0 : i32
    %c0_i32_0 = arith.constant 0 : i32
    %c0_i32_1 = arith.constant 0 : i32
    %c0_i32_2 = arith.constant 0 : i32
    return %c0_i32, %c0_i32_0, %c0_i32_1, %arg0 : i32, i32, i32, i32
  }
  func.func @transform_8(%arg0: i32, %arg1: i32, %arg2: i32) -> (i32, i32) {
    %c0_i32 = arith.constant 0 : i32
    %c0_i32_0 = arith.constant 0 : i32
    return %c0_i32, %arg0 : i32, i32
  }
  func.func @transform_9(%arg0: i32, %arg1: i32, %arg2: i32) -> (i32, i32) {
    %c0_i32 = arith.constant 0 : i32
    %c0_i32_0 = arith.constant 0 : i32
    return %c0_i32, %arg0 : i32, i32
  }
  func.func @transform_10(%arg0: i32, %arg1: i32, %arg2: i32) -> (i32, i32, i32, i32) {
    %c0_i32 = arith.constant 0 : i32
    %c0_i32_0 = arith.constant 0 : i32
    return %arg1, %arg2, %c0_i32, %arg0 : i32, i32, i32, i32
  }
}

</mosaic_0001>

<llo_original>
// kernel: tpu_custom_call.1
$region0: #{tpu_custom_call.1}
  #allocation0 [shape = 'u32[]', space=smem, size = 0x4, offset = 0x4, fixed_abs, tag = 'smem constant byte address 0x4 - core index']
  #allocation1 [shape = 'u32[72,128]{1,0:T(1,128)}', space=vmem, size = 0x9000, scoped, tag = 'internal scratch']
  %s0 = inlined_call_operand.vmem [shape: bf16[140,70,3], index: 0, kind: input, shape index: {}]
  %s1 = inlined_call_operand.vmem [shape: bf16[140,70,3], index: 1, kind: input, shape index: {}]
  %s2 = inlined_call_operand.vmem [shape: bf16[140,70,3], index: 2, kind: input, shape index: {}]
  %s3 = inlined_call_operand.vmem [shape: bf16[140,70,3], index: 3, kind: input, shape index: {}]
  %s4 = inlined_call_operand.vmem [shape: bf16[140,70,3], index: 4, kind: input, shape index: {}]
  %s5 = inlined_call_operand.vmem [shape: bf16[140,70,3], index: 5, kind: input, shape index: {}]
  %s6 = inlined_call_operand.vmem [shape: bf16[140,70,3], index: 6, kind: input, shape index: {}]
  %s7 = inlined_call_operand.vmem [shape: bf16[7,7,3,64], index: 7, kind: input, shape index: {}]
  %s8 = inlined_call_operand.vmem [shape: f32[1,64], index: 8, kind: input, shape index: {}]
  %s9 = inlined_call_operand.vmem [shape: f32[1,64], index: 9, kind: input, shape index: {}]
  %s10 = inlined_call_operand.hbm [shape: bf16[2,32,64,64], index: 10, kind: output, shape index: {}]
  %s11 = sld [smem:[#allocation0]]
  $region73: #{tpu_custom_call.1} parent=0
    _
  %s13 = ssub.s32 1, %s11
  %s14 = scalar_select 0, %s13, %s11
  $region1: #{tpu_custom_call.1} parent=0
    #allocation2 [shape = 'u8[32768]{0}', space=vmem, size = 0x8000, scoped, tag = 'output window, operand 0']
    #allocation3 [shape = 's32[2]{0}', space=sflag, size = 0x8, scoped, tag = 'scoped memory for tpu_custom_call.1']
    %15 = vsyncpa [#allocation3], 0
    %s16 = scalar_lea.sflag [#allocation3], 1
    %17 = vsyncpa %s16, 0
    loop: start=0, step=1, limit=66
    $region2: #{tpu_custom_call.1} parent=1 // loop_pre_header
      _
    $region3: #{tpu_custom_call.1} parent=1 // loop_header
      %s19 = sphi 0, %s23
      %p20 = scmp.ge.s32.totalorder %s19, 66
      %s26 = sphi 0, %s45
      %s27 = sphi 0, %s41
      %s28 = sphi 0, %s37
      %s29 = sphi 0, %s26
      %s30 = sphi 0, %s27
      %s31 = sphi 0, %s28
      %s32 = sphi 0, %s29
      %s33 = sphi 0, %s30
      %s34 = sphi 0, %s31
      %s54 = sphi 0, %s56
      %s57 = sphi 0, %s54
      %s58 = sphi 0, %s57
      %s74 = sphi 0, %s58
      %s88 = sphi 0, %s90
      %s91 = sphi 0, %s88
      %s92 = sphi 0, %s91
      %s108 = sphi 0, %s92
      %s122 = sphi 0, %s124
      %s125 = sphi 0, %s122
      %s126 = sphi 0, %s125
      %s142 = sphi 0, %s126
      %s156 = sphi 0, %s158
      %s159 = sphi 0, %s156
      %s160 = sphi 0, %s159
      %s176 = sphi 0, %s160
      %s190 = sphi 0, %s192
      %s193 = sphi 0, %s190
      %s194 = sphi 0, %s193
      %s210 = sphi 0, %s194
      %s224 = sphi 0, %s226
      %s227 = sphi 0, %s224
      %s228 = sphi 0, %s227
      %s244 = sphi 0, %s228
      %s258 = sphi 0, %s260
      %s261 = sphi 0, %s258
      %s262 = sphi 0, %s261
      %s278 = sphi 0, %s262
      %s284 = sphi 0, %s286
      %s287 = sphi 0, %s284
      %s288 = sphi 0, %s287
      %s304 = sphi 0, %s288
      %s310 = sphi 0, %s312
      %s313 = sphi 0, %s310
      %s314 = sphi 0, %s313
      %s330 = sphi 0, %s314
      %s336 = sphi 0, %s338
      %s339 = sphi 0, %s336
      %s340 = sphi 0, %s339
      %s356 = sphi 0, %s340
      %s366 = sphi 0, %s368
      %s369 = sphi 0, %s366
      %s370 = sphi 0, %s369
      %s386 = sphi 0, %s370
    $region4: #{tpu_custom_call.1} parent=1 // loop_header_branch
      %22 = sbr.rel (%p20) target = $region8
    $region5: #{tpu_custom_call.1} parent=1 // loop_body
      %s24 = ssub.s32 %s19, 1
      %s25 = ssub.s32 %s19, 2
      %s35 = sadd.s32 1, %s28
      %p36 = scmp.ge.s32.totalorder %s35, 32
      %s37 = scalar_select %p36, 0, %s35
      %s38 = sadd.s32 1, %s27
      %s39 = scalar_select %p36, %s38, %s27
      %p40 = scmp.ge.s32.totalorder %s39, 2
      %s41 = scalar_select %p40, 0, %s39
      %s42 = sadd.s32 1, %s26
      %s43 = scalar_select %p40, %s42, %s26
      %p44 = scmp.ge.s32.totalorder %s43, 1
      %s45 = scalar_select %p44, 0, %s43
      %s46 = smul.u32 %s27, 70
      %s47 = smul.u32 %s28, 2
      %s48 = sadd.s32 %s46, %s47
      %s49 = smul.u32 %s41, 70
      %s50 = smul.u32 %s37, 2
      %s51 = sadd.s32 %s49, %s50
      %s52 = ssub.s32 %s48, %s51
      %p53 = scmp.eq.s32.totalorder %s52, 0
      %s55 = sadd.s32 %s54, 1
      %s56 = scalar_select %p53, %s54, %s55
      %p59 = pneg %p53
      %p60 = scmp.eq.s32.totalorder %s19, 63
      %p61 = por %p59, %p60
      %p62 = scmp.ne.s32.totalorder %s54, %s57
      %p63 = scmp.eq.s32.totalorder %s19, 0
      %p64 = por %p62, %p63
      %p65 = scmp.ne.s32.totalorder %s54, %s57
      %p66 = scmp.eq.s32.totalorder %s24, 63
      %p67 = por %p65, %p66
      %p68 = scmp.ne.s32.totalorder %s57, %s58
      %p69 = scmp.eq.s32.totalorder %s24, 0
      %p70 = por %p68, %p69
      %p71 = scmp.ne.s32.totalorder %s57, %s58
      %p72 = scmp.eq.s32.totalorder %s25, 63
      %p73 = por %p71, %p72
      %p75 = scmp.ne.s32.totalorder %s58, %s74
      %p76 = scmp.eq.s32.totalorder %s25, 0
      %p77 = por %p75, %p76
      %s78 = smul.u32 %s27, 70
      %s79 = smul.u32 %s28, 2
      %s80 = sadd.s32 %s78, %s79
      %s81 = sadd.s32 %s80, 1
      %s82 = smul.u32 %s41, 70
      %s83 = smul.u32 %s37, 2
      %s84 = sadd.s32 %s82, %s83
      %s85 = sadd.s32 %s84, 1
      %s86 = ssub.s32 %s81, %s85
      %p87 = scmp.eq.s32.totalorder %s86, 0
      %s89 = sadd.s32 %s88, 1
      %s90 = scalar_select %p87, %s88, %s89
      %p93 = pneg %p87
      %p94 = scmp.eq.s32.totalorder %s19, 63
      %p95 = por %p93, %p94
      %p96 = scmp.ne.s32.totalorder %s88, %s91
      %p97 = scmp.eq.s32.totalorder %s19, 0
      %p98 = por %p96, %p97
      %p99 = scmp.ne.s32.totalorder %s88, %s91
      %p100 = scmp.eq.s32.totalorder %s24, 63
      %p101 = por %p99, %p100
      %p102 = scmp.ne.s32.totalorder %s91, %s92
      %p103 = scmp.eq.s32.totalorder %s24, 0
      %p104 = por %p102, %p103
      %p105 = scmp.ne.s32.totalorder %s91, %s92
      %p106 = scmp.eq.s32.totalorder %s25, 63
      %p107 = por %p105, %p106
      %p109 = scmp.ne.s32.totalorder %s92, %s108
      %p110 = scmp.eq.s32.totalorder %s25, 0
      %p111 = por %p109, %p110
      %s112 = smul.u32 %s27, 70
      %s113 = smul.u32 %s28, 2
      %s114 = sadd.s32 %s112, %s113
      %s115 = sadd.s32 %s114, 2
      %s116 = smul.u32 %s41, 70
      %s117 = smul.u32 %s37, 2
      %s118 = sadd.s32 %s116, %s117
      %s119 = sadd.s32 %s118, 2
      %s120 = ssub.s32 %s115, %s119
      %p121 = scmp.eq.s32.totalorder %s120, 0
      %s123 = sadd.s32 %s122, 1
      %s124 = scalar_select %p121, %s122, %s123
      %p127 = pneg %p121
      %p128 = scmp.eq.s32.totalorder %s19, 63
      %p129 = por %p127, %p128
      %p130 = scmp.ne.s32.totalorder %s122, %s125
      %p131 = scmp.eq.s32.totalorder %s19, 0
      %p132 = por %p130, %p131
      %p133 = scmp.ne.s32.totalorder %s122, %s125
      %p134 = scmp.eq.s32.totalorder %s24, 63
      %p135 = por %p133, %p134
      %p136 = scmp.ne.s32.totalorder %s125, %s126
      %p137 = scmp.eq.s32.totalorder %s24, 0
      %p138 = por %p136, %p137
      %p139 = scmp.ne.s32.totalorder %s125, %s126
      %p140 = scmp.eq.s32.totalorder %s25, 63
      %p141 = por %p139, %p140
      %p143 = scmp.ne.s32.totalorder %s126, %s142
      %p144 = scmp.eq.s32.totalorder %s25, 0
      %p145 = por %p143, %p144
      %s146 = smul.u32 %s27, 70
      %s147 = smul.u32 %s28, 2
      %s148 = sadd.s32 %s146, %s147
      %s149 = sadd.s32 %s148, 3
      %s150 = smul.u32 %s41, 70
      %s151 = smul.u32 %s37, 2
      %s152 = sadd.s32 %s150, %s151
      %s153 = sadd.s32 %s152, 3
      %s154 = ssub.s32 %s149, %s153
      %p155 = scmp.eq.s32.totalorder %s154, 0
      %s157 = sadd.s32 %s156, 1
      %s158 = scalar_select %p155, %s156, %s157
      %p161 = pneg %p155
      %p162 = scmp.eq.s32.totalorder %s19, 63
      %p163 = por %p161, %p162
      %p164 = scmp.ne.s32.totalorder %s156, %s159
      %p165 = scmp.eq.s32.totalorder %s19, 0
      %p166 = por %p164, %p165
      %p167 = scmp.ne.s32.totalorder %s156, %s159
      %p168 = scmp.eq.s32.totalorder %s24, 63
      %p169 = por %p167, %p168
      %p170 = scmp.ne.s32.totalorder %s159, %s160
      %p171 = scmp.eq.s32.totalorder %s24, 0
      %p172 = por %p170, %p171
      %p173 = scmp.ne.s32.totalorder %s159, %s160
      %p174 = scmp.eq.s32.totalorder %s25, 63
      %p175 = por %p173, %p174
      %p177 = scmp.ne.s32.totalorder %s160, %s176
      %p178 = scmp.eq.s32.totalorder %s25, 0
      %p179 = por %p177, %p178
      %s180 = smul.u32 %s27, 70
      %s181 = smul.u32 %s28, 2
      %s182 = sadd.s32 %s180, %s181
      %s183 = sadd.s32 %s182, 4
      %s184 = smul.u32 %s41, 70
      %s185 = smul.u32 %s37, 2
      %s186 = sadd.s32 %s184, %s185
      %s187 = sadd.s32 %s186, 4
      %s188 = ssub.s32 %s183, %s187
      %p189 = scmp.eq.s32.totalorder %s188, 0
      %s191 = sadd.s32 %s190, 1
      %s192 = scalar_select %p189, %s190, %s191
      %p195 = pneg %p189
      %p196 = scmp.eq.s32.totalorder %s19, 63
      %p197 = por %p195, %p196
      %p198 = scmp.ne.s32.totalorder %s190, %s193
      %p199 = scmp.eq.s32.totalorder %s19, 0
      %p200 = por %p198, %p199
      %p201 = scmp.ne.s32.totalorder %s190, %s193
      %p202 = scmp.eq.s32.totalorder %s24, 63
      %p203 = por %p201, %p202
      %p204 = scmp.ne.s32.totalorder %s193, %s194
      %p205 = scmp.eq.s32.totalorder %s24, 0
      %p206 = por %p204, %p205
      %p207 = scmp.ne.s32.totalorder %s193, %s194
      %p208 = scmp.eq.s32.totalorder %s25, 63
      %p209 = por %p207, %p208
      %p211 = scmp.ne.s32.totalorder %s194, %s210
      %p212 = scmp.eq.s32.totalorder %s25, 0
      %p213 = por %p211, %p212
      %s214 = smul.u32 %s27, 70
      %s215 = smul.u32 %s28, 2
      %s216 = sadd.s32 %s214, %s215
      %s217 = sadd.s32 %s216, 5
      %s218 = smul.u32 %s41, 70
      %s219 = smul.u32 %s37, 2
      %s220 = sadd.s32 %s218, %s219
      %s221 = sadd.s32 %s220, 5
      %s222 = ssub.s32 %s217, %s221
      %p223 = scmp.eq.s32.totalorder %s222, 0
      %s225 = sadd.s32 %s224, 1
      %s226 = scalar_select %p223, %s224, %s225
      %p229 = pneg %p223
      %p230 = scmp.eq.s32.totalorder %s19, 63
      %p231 = por %p229, %p230
      %p232 = scmp.ne.s32.totalorder %s224, %s227
      %p233 = scmp.eq.s32.totalorder %s19, 0
      %p234 = por %p232, %p233
      %p235 = scmp.ne.s32.totalorder %s224, %s227
      %p236 = scmp.eq.s32.totalorder %s24, 63
      %p237 = por %p235, %p236
      %p238 = scmp.ne.s32.totalorder %s227, %s228
      %p239 = scmp.eq.s32.totalorder %s24, 0
      %p240 = por %p238, %p239
      %p241 = scmp.ne.s32.totalorder %s227, %s228
      %p242 = scmp.eq.s32.totalorder %s25, 63
      %p243 = por %p241, %p242
      %p245 = scmp.ne.s32.totalorder %s228, %s244
      %p246 = scmp.eq.s32.totalorder %s25, 0
      %p247 = por %p245, %p246
      %s248 = smul.u32 %s27, 70
      %s249 = smul.u32 %s28, 2
      %s250 = sadd.s32 %s248, %s249
      %s251 = sadd.s32 %s250, 6
      %s252 = smul.u32 %s41, 70
      %s253 = smul.u32 %s37, 2
      %s254 = sadd.s32 %s252, %s253
      %s255 = sadd.s32 %s254, 6
      %s256 = ssub.s32 %s251, %s255
      %p257 = scmp.eq.s32.totalorder %s256, 0
      %s259 = sadd.s32 %s258, 1
      %s260 = scalar_select %p257, %s258, %s259
      %p263 = pneg %p257
      %p264 = scmp.eq.s32.totalorder %s19, 63
      %p265 = por %p263, %p264
      %p266 = scmp.ne.s32.totalorder %s258, %s261
      %p267 = scmp.eq.s32.totalorder %s19, 0
      %p268 = por %p266, %p267
      %p269 = scmp.ne.s32.totalorder %s258, %s261
      %p270 = scmp.eq.s32.totalorder %s24, 63
      %p271 = por %p269, %p270
      %p272 = scmp.ne.s32.totalorder %s261, %s262
      %p273 = scmp.eq.s32.totalorder %s24, 0
      %p274 = por %p272, %p273
      %p275 = scmp.ne.s32.totalorder %s261, %s262
      %p276 = scmp.eq.s32.totalorder %s25, 63
      %p277 = por %p275, %p276
      %p279 = scmp.ne.s32.totalorder %s262, %s278
      %p280 = scmp.eq.s32.totalorder %s25, 0
      %p281 = por %p279, %p280
      %s282 = ssub.s32 %s26, %s45
      %p283 = scmp.eq.s32.totalorder %s282, 0
      %s285 = sadd.s32 %s284, 1
      %s286 = scalar_select %p283, %s284, %s285
      %p289 = pneg %p283
      %p290 = scmp.eq.s32.totalorder %s19, 63
      %p291 = por %p289, %p290
      %p292 = scmp.ne.s32.totalorder %s284, %s287
      %p293 = scmp.eq.s32.totalorder %s19, 0
      %p294 = por %p292, %p293
      %p295 = scmp.ne.s32.totalorder %s284, %s287
      %p296 = scmp.eq.s32.totalorder %s24, 63
      %p297 = por %p295, %p296
      %p298 = scmp.ne.s32.totalorder %s287, %s288
      %p299 = scmp.eq.s32.totalorder %s24, 0
      %p300 = por %p298, %p299
      %p301 = scmp.ne.s32.totalorder %s287, %s288
      %p302 = scmp.eq.s32.totalorder %s25, 63
      %p303 = por %p301, %p302
      %p305 = scmp.ne.s32.totalorder %s288, %s304
      %p306 = scmp.eq.s32.totalorder %s25, 0
      %p307 = por %p305, %p306
      %s308 = ssub.s32 %s26, %s45
      %p309 = scmp.eq.s32.totalorder %s308, 0
      %s311 = sadd.s32 %s310, 1
      %s312 = scalar_select %p309, %s310, %s311
      %p315 = pneg %p309
      %p316 = scmp.eq.s32.totalorder %s19, 63
      %p317 = por %p315, %p316
      %p318 = scmp.ne.s32.totalorder %s310, %s313
      %p319 = scmp.eq.s32.totalorder %s19, 0
      %p320 = por %p318, %p319
      %p321 = scmp.ne.s32.totalorder %s310, %s313
      %p322 = scmp.eq.s32.totalorder %s24, 63
      %p323 = por %p321, %p322
      %p324 = scmp.ne.s32.totalorder %s313, %s314
      %p325 = scmp.eq.s32.totalorder %s24, 0
      %p326 = por %p324, %p325
      %p327 = scmp.ne.s32.totalorder %s313, %s314
      %p328 = scmp.eq.s32.totalorder %s25, 63
      %p329 = por %p327, %p328
      %p331 = scmp.ne.s32.totalorder %s314, %s330
      %p332 = scmp.eq.s32.totalorder %s25, 0
      %p333 = por %p331, %p332
      %s334 = ssub.s32 %s26, %s45
      %p335 = scmp.eq.s32.totalorder %s334, 0
      %s337 = sadd.s32 %s336, 1
      %s338 = scalar_select %p335, %s336, %s337
      %p341 = pneg %p335
      %p342 = scmp.eq.s32.totalorder %s19, 63
      %p343 = por %p341, %p342
      %p344 = scmp.ne.s32.totalorder %s336, %s339
      %p345 = scmp.eq.s32.totalorder %s19, 0
      %p346 = por %p344, %p345
      %p347 = scmp.ne.s32.totalorder %s336, %s339
      %p348 = scmp.eq.s32.totalorder %s24, 63
      %p349 = por %p347, %p348
      %p350 = scmp.ne.s32.totalorder %s339, %s340
      %p351 = scmp.eq.s32.totalorder %s24, 0
      %p352 = por %p350, %p351
      %p353 = scmp.ne.s32.totalorder %s339, %s340
      %p354 = scmp.eq.s32.totalorder %s25, 63
      %p355 = por %p353, %p354
      %p357 = scmp.ne.s32.totalorder %s340, %s356
      %p358 = scmp.eq.s32.totalorder %s25, 0
      %p359 = por %p357, %p358
      %s360 = ssub.s32 %s27, %s41
      %s361 = ssub.s32 %s28, %s37
      %s362 = sor.u32 %s360, %s361
      %s363 = ssub.s32 %s26, %s45
      %s364 = sor.u32 %s362, %s363
      %p365 = scmp.eq.s32.totalorder %s364, 0
      %s367 = sadd.s32 %s366, 1
      %s368 = scalar_select %p365, %s366, %s367
      %p371 = pneg %p365
      %p372 = scmp.eq.s32.totalorder %s19, 63
      %p373 = por %p371, %p372
      %p374 = scmp.ne.s32.totalorder %s366, %s369
      %p375 = scmp.eq.s32.totalorder %s19, 0
      %p376 = por %p374, %p375
      %p377 = scmp.ne.s32.totalorder %s366, %s369
      %p378 = scmp.eq.s32.totalorder %s24, 63
      %p379 = por %p377, %p378
      %p380 = scmp.ne.s32.totalorder %s369, %s370
      %p381 = scmp.eq.s32.totalorder %s24, 0
      %p382 = por %p380, %p381
      %p383 = scmp.ne.s32.totalorder %s369, %s370
      %p384 = scmp.eq.s32.totalorder %s25, 63
      %p385 = por %p383, %p384
      %p387 = scmp.ne.s32.totalorder %s370, %s386
      %p388 = scmp.eq.s32.totalorder %s25, 0
      %p389 = por %p387, %p388
      %p390 = scmp.le.s32.totalorder 1, %s19
      %p391 = scmp.lt.s32.totalorder %s19, 65
      %p392 = pnand %p390, %p391
      %p393 = pneg %p392
      // Predicated region
      $region9: #{tpu_custom_call.1} parent=5 // pred_check
        _
      $region10: #{tpu_custom_call.1} parent=5 // pred_check_branch
        %395 = sbr.rel (%p392) target = $region12
      $region11: #{tpu_custom_call.1} parent=5 // pred_region
        %s396 = ssub.s32 %s19, 1
        // Predicated region
        $region13: #{tpu_custom_call.1} parent=11 // pred_check
          %p397 = pneg %p300
        $region14: #{tpu_custom_call.1} parent=11 // pred_check_branch
          %399 = sbr.rel (%p397) target = $region16
        $region15: #{tpu_custom_call.1} parent=11 // pred_region
          %p400 = scmp.lt.s32.totalorder %s29, 0
          %s401 = scalar_select %p400, %s29, 0
          %s402 = smul.addr %s401, 2
          %s403 = scalar_lea.vmem %s7, %s402
        $region16: #{tpu_custom_call.1} parent=11 // pred_fallthru
          _
        // Predicated region
        $region17: #{tpu_custom_call.1} parent=11 // pred_check
          %p404 = pneg %p326
        $region18: #{tpu_custom_call.1} parent=11 // pred_check_branch
          %406 = sbr.rel (%p404) target = $region20
        $region19: #{tpu_custom_call.1} parent=11 // pred_region
          %p407 = scmp.lt.s32.totalorder %s29, 0
          %s408 = scalar_select %p407, %s29, 0
          %s409 = scalar_lea.vmem %s8, %s408
        $region20: #{tpu_custom_call.1} parent=11 // pred_fallthru
          _
        // Predicated region
        $region21: #{tpu_custom_call.1} parent=11 // pred_check
          %p410 = pneg %p352
        $region22: #{tpu_custom_call.1} parent=11 // pred_check_branch
          %412 = sbr.rel (%p410) target = $region24
        $region23: #{tpu_custom_call.1} parent=11 // pred_region
          %p413 = scmp.lt.s32.totalorder %s29, 0
          %s414 = scalar_select %p413, %s29, 0
          %s415 = scalar_lea.vmem %s9, %s414
        $region24: #{tpu_custom_call.1} parent=11 // pred_fallthru
          _
      $region12: #{tpu_custom_call.1} parent=5 // pred_fallthru
        _
      %p416 = scmp.lt.s32.totalorder %s19, 64
      // Predicated region
      $region25: #{tpu_custom_call.1} parent=5 // pred_check
        %p417 = pneg %p416
      $region26: #{tpu_custom_call.1} parent=5 // pred_check_branch
        %419 = sbr.rel (%p417) target = $region28
      $region27: #{tpu_custom_call.1} parent=5 // pred_region
        // Predicated region
        $region29: #{tpu_custom_call.1} parent=27 // pred_check
          %p420 = pneg %p64
        $region30: #{tpu_custom_call.1} parent=27 // pred_check_branch
          %422 = sbr.rel (%p420) target = $region32
        $region31: #{tpu_custom_call.1} parent=27 // pred_region
          %s423 = smul.u32 %s27, 70
          %s424 = smul.u32 %s28, 2
          %s425 = sadd.s32 %s423, %s424
          %p426 = scmp.lt.s32.totalorder %s425, 139
          %s427 = scalar_select %p426, %s425, 139
          %s428 = smul.addr %s427, 9
          %s429 = smul.addr %s428, 4
          %s430 = scalar_lea.vmem %s0, %s429
          %s431 = smul.u32 %s27, 70
          %s432 = smul.u32 %s28, 2
          %s433 = sadd.s32 %s431, %s432
        $region32: #{tpu_custom_call.1} parent=27 // pred_fallthru
          _
        // Predicated region
        $region33: #{tpu_custom_call.1} parent=27 // pred_check
          %p434 = pneg %p98
        $region34: #{tpu_custom_call.1} parent=27 // pred_check_branch
          %436 = sbr.rel (%p434) target = $region36
        $region35: #{tpu_custom_call.1} parent=27 // pred_region
          %s437 = smul.u32 %s27, 70
          %s438 = smul.u32 %s28, 2
          %s439 = sadd.s32 %s437, %s438
          %s440 = sadd.s32 %s439, 1
          %p441 = scmp.lt.s32.totalorder %s440, 139
          %s442 = scalar_select %p441, %s440, 139
          %s443 = smul.addr %s442, 9
          %s444 = smul.addr %s443, 4
          %s445 = scalar_lea.vmem %s1, %s444
          %s446 = smul.u32 %s27, 70
          %s447 = smul.u32 %s28, 2
          %s448 = sadd.s32 %s446, %s447
          %s449 = sadd.s32 %s448, 1
        $region36: #{tpu_custom_call.1} parent=27 // pred_fallthru
          _
        // Predicated region
        $region37: #{tpu_custom_call.1} parent=27 // pred_check
          %p450 = pneg %p132
        $region38: #{tpu_custom_call.1} parent=27 // pred_check_branch
          %452 = sbr.rel (%p450) target = $region40
        $region39: #{tpu_custom_call.1} parent=27 // pred_region
          %s453 = smul.u32 %s27, 70
          %s454 = smul.u32 %s28, 2
          %s455 = sadd.s32 %s453, %s454
          %s456 = sadd.s32 %s455, 2
          %p457 = scmp.lt.s32.totalorder %s456, 139
          %s458 = scalar_select %p457, %s456, 139
          %s459 = smul.addr %s458, 9
          %s460 = smul.addr %s459, 4
          %s461 = scalar_lea.vmem %s2, %s460
          %s462 = smul.u32 %s27, 70
          %s463 = smul.u32 %s28, 2
          %s464 = sadd.s32 %s462, %s463
          %s465 = sadd.s32 %s464, 2
        $region40: #{tpu_custom_call.1} parent=27 // pred_fallthru
          _
        // Predicated region
        $region41: #{tpu_custom_call.1} parent=27 // pred_check
          %p466 = pneg %p166
        $region42: #{tpu_custom_call.1} parent=27 // pred_check_branch
          %468 = sbr.rel (%p466) target = $region44
        $region43: #{tpu_custom_call.1} parent=27 // pred_region
          %s469 = smul.u32 %s27, 70
          %s470 = smul.u32 %s28, 2
          %s471 = sadd.s32 %s469, %s470
          %s472 = sadd.s32 %s471, 3
          %p473 = scmp.lt.s32.totalorder %s472, 139
          %s474 = scalar_select %p473, %s472, 139
          %s475 = smul.addr %s474, 9
          %s476 = smul.addr %s475, 4
          %s477 = scalar_lea.vmem %s3, %s476
          %s478 = smul.u32 %s27, 70
          %s479 = smul.u32 %s28, 2
          %s480 = sadd.s32 %s478, %s479
          %s481 = sadd.s32 %s480, 3
        $region44: #{tpu_custom_call.1} parent=27 // pred_fallthru
          _
        // Predicated region
        $region45: #{tpu_custom_call.1} parent=27 // pred_check
          %p482 = pneg %p200
        $region46: #{tpu_custom_call.1} parent=27 // pred_check_branch
          %484 = sbr.rel (%p482) target = $region48
        $region47: #{tpu_custom_call.1} parent=27 // pred_region
          %s485 = smul.u32 %s27, 70
          %s486 = smul.u32 %s28, 2
          %s487 = sadd.s32 %s485, %s486
          %s488 = sadd.s32 %s487, 4
          %p489 = scmp.lt.s32.totalorder %s488, 139
          %s490 = scalar_select %p489, %s488, 139
          %s491 = smul.addr %s490, 9
          %s492 = smul.addr %s491, 4
          %s493 = scalar_lea.vmem %s4, %s492
          %s494 = smul.u32 %s27, 70
          %s495 = smul.u32 %s28, 2
          %s496 = sadd.s32 %s494, %s495
          %s497 = sadd.s32 %s496, 4
        $region48: #{tpu_custom_call.1} parent=27 // pred_fallthru
          _
        // Predicated region
        $region49: #{tpu_custom_call.1} parent=27 // pred_check
          %p498 = pneg %p234
        $region50: #{tpu_custom_call.1} parent=27 // pred_check_branch
          %500 = sbr.rel (%p498) target = $region52
        $region51: #{tpu_custom_call.1} parent=27 // pred_region
          %s501 = smul.u32 %s27, 70
          %s502 = smul.u32 %s28, 2
          %s503 = sadd.s32 %s501, %s502
          %s504 = sadd.s32 %s503, 5
          %p505 = scmp.lt.s32.totalorder %s504, 139
          %s506 = scalar_select %p505, %s504, 139
          %s507 = smul.addr %s506, 9
          %s508 = smul.addr %s507, 4
          %s509 = scalar_lea.vmem %s5, %s508
          %s510 = smul.u32 %s27, 70
          %s511 = smul.u32 %s28, 2
          %s512 = sadd.s32 %s510, %s511
          %s513 = sadd.s32 %s512, 5
        $region52: #{tpu_custom_call.1} parent=27 // pred_fallthru
          _
        // Predicated region
        $region53: #{tpu_custom_call.1} parent=27 // pred_check
          %p514 = pneg %p268
        $region54: #{tpu_custom_call.1} parent=27 // pred_check_branch
          %516 = sbr.rel (%p514) target = $region56
        $region55: #{tpu_custom_call.1} parent=27 // pred_region
          %s517 = smul.u32 %s27, 70
          %s518 = smul.u32 %s28, 2
          %s519 = sadd.s32 %s517, %s518
          %s520 = sadd.s32 %s519, 6
          %p521 = scmp.lt.s32.totalorder %s520, 139
          %s522 = scalar_select %p521, %s520, 139
          %s523 = smul.addr %s522, 9
          %s524 = smul.addr %s523, 4
          %s525 = scalar_lea.vmem %s6, %s524
          %s526 = smul.u32 %s27, 70
          %s527 = smul.u32 %s28, 2
          %s528 = sadd.s32 %s526, %s527
          %s529 = sadd.s32 %s528, 6
        $region56: #{tpu_custom_call.1} parent=27 // pred_fallthru
          _
      $region28: #{tpu_custom_call.1} parent=5 // pred_fallthru
        _
      %p530 = scmp.le.s32.totalorder 1, %s19
      %p531 = scmp.lt.s32.totalorder %s19, 65
      %p532 = pnand %p530, %p531
      %p533 = pneg %p532
      // Predicated region
      $region57: #{tpu_custom_call.1} parent=5 // pred_check
        _
      $region58: #{tpu_custom_call.1} parent=5 // pred_check_branch
        %535 = sbr.rel (%p532) target = $region60
      $region59: #{tpu_custom_call.1} parent=5 // pred_region
        %s536 = ssub.s32 %s19, 1
        %s537 = smul.u32 %s30, 70
        %s538 = smul.u32 %s31, 2
        %s539 = sadd.s32 %s537, %s538
        %p540 = scmp.lt.s32.totalorder %s539, 139
        %s541 = scalar_select %p540, %s539, 139
        %s542 = smul.addr %s541, 9
        %s543 = smul.addr %s542, 4
        %s544 = scalar_lea.vmem %s0, %s543
        %p545 = pneg %p70
        %p546 = pneg %p67
        %s547 = smul.u32 %s30, 70
        %s548 = smul.u32 %s31, 2
        %s549 = sadd.s32 %s547, %s548
        %s550 = sadd.s32 %s549, 1
        %p551 = scmp.lt.s32.totalorder %s550, 139
        %s552 = scalar_select %p551, %s550, 139
        %s553 = smul.addr %s552, 9
        %s554 = smul.addr %s553, 4
        %s555 = scalar_lea.vmem %s1, %s554
        %p556 = pneg %p104
        %p557 = pneg %p101
        %s558 = smul.u32 %s30, 70
        %s559 = smul.u32 %s31, 2
        %s560 = sadd.s32 %s558, %s559
        %s561 = sadd.s32 %s560, 2
        %p562 = scmp.lt.s32.totalorder %s561, 139
        %s563 = scalar_select %p562, %s561, 139
        %s564 = smul.addr %s563, 9
        %s565 = smul.addr %s564, 4
        %s566 = scalar_lea.vmem %s2, %s565
        %p567 = pneg %p138
        %p568 = pneg %p135
        %s569 = smul.u32 %s30, 70
        %s570 = smul.u32 %s31, 2
        %s571 = sadd.s32 %s569, %s570
        %s572 = sadd.s32 %s571, 3
        %p573 = scmp.lt.s32.totalorder %s572, 139
        %s574 = scalar_select %p573, %s572, 139
        %s575 = smul.addr %s574, 9
        %s576 = smul.addr %s575, 4
        %s577 = scalar_lea.vmem %s3, %s576
        %p578 = pneg %p172
        %p579 = pneg %p169
        %s580 = smul.u32 %s30, 70
        %s581 = smul.u32 %s31, 2
        %s582 = sadd.s32 %s580, %s581
        %s583 = sadd.s32 %s582, 4
        %p584 = scmp.lt.s32.totalorder %s583, 139
        %s585 = scalar_select %p584, %s583, 139
        %s586 = smul.addr %s585, 9
        %s587 = smul.addr %s586, 4
        %s588 = scalar_lea.vmem %s4, %s587
        %p589 = pneg %p206
        %p590 = pneg %p203
        %s591 = smul.u32 %s30, 70
        %s592 = smul.u32 %s31, 2
        %s593 = sadd.s32 %s591, %s592
        %s594 = sadd.s32 %s593, 5
        %p595 = scmp.lt.s32.totalorder %s594, 139
        %s596 = scalar_select %p595, %s594, 139
        %s597 = smul.addr %s596, 9
        %s598 = smul.addr %s597, 4
        %s599 = scalar_lea.vmem %s5, %s598
        %p600 = pneg %p240
        %p601 = pneg %p237
        %s602 = smul.u32 %s30, 70
        %s603 = smul.u32 %s31, 2
        %s604 = sadd.s32 %s602, %s603
        %s605 = sadd.s32 %s604, 6
        %p606 = scmp.lt.s32.totalorder %s605, 139
        %s607 = scalar_select %p606, %s605, 139
        %s608 = smul.addr %s607, 9
        %s609 = smul.addr %s608, 4
        %s610 = scalar_lea.vmem %s6, %s609
        %p611 = pneg %p274
        %p612 = pneg %p271
        %p613 = scmp.lt.s32.totalorder %s29, 0
        %s614 = scalar_select %p613, %s29, 0
        %s615 = smul.addr %s614, 2
        %s616 = scalar_lea.vmem %s7, %s615
        %p617 = pneg %p300
        %p618 = pneg %p297
        %p619 = scmp.lt.s32.totalorder %s29, 0
        %s620 = scalar_select %p619, %s29, 0
        %s621 = scalar_lea.vmem %s8, %s620
        %p622 = pneg %p326
        %p623 = pneg %p323
        %p624 = scmp.lt.s32.totalorder %s29, 0
        %s625 = scalar_select %p624, %s29, 0
        %s626 = scalar_lea.vmem %s9, %s625
        %p627 = pneg %p352
        %p628 = pneg %p349
        %p629 = pneg %p382
        %p630 = pneg %p379
        %s631 = sand.u32 %s369, 1
        %s632 = scalar_lea.sflag [#allocation3], %s631
        %s633 = sand.u32 %s369, 1
        %s634 = smul.addr %s633, 32
        %s635 = scalar_lea.vmem [#allocation2], %s634
        %s636 = smul.u32 %s30, 70
        %s637 = smul.u32 %s31, 2
        %s638 = sadd.s32 %s636, %s637
        %p639 = scmp.lt.s32.totalorder %s638, 139
        %s640 = scalar_select %p639, %s638, 139
        %s641 = smul.addr %s640, 9
        %s642 = smul.addr %s641, 4
        %s643 = scalar_lea.vmem %s0, %s642
        %s644 = smul.u32 %s30, 70
        %s645 = smul.u32 %s31, 2
        %s646 = sadd.s32 %s644, %s645
        %s647 = smul.u32 %s30, 70
        %s648 = smul.u32 %s31, 2
        %s649 = sadd.s32 %s647, %s648
        %s650 = sadd.s32 %s649, 1
        %p651 = scmp.lt.s32.totalorder %s650, 139
        %s652 = scalar_select %p651, %s650, 139
        %s653 = smul.addr %s652, 9
        %s654 = smul.addr %s653, 4
        %s655 = scalar_lea.vmem %s1, %s654
        %s656 = smul.u32 %s30, 70
        %s657 = smul.u32 %s31, 2
        %s658 = sadd.s32 %s656, %s657
        %s659 = sadd.s32 %s658, 1
        %s660 = smul.u32 %s30, 70
        %s661 = smul.u32 %s31, 2
        %s662 = sadd.s32 %s660, %s661
        %s663 = sadd.s32 %s662, 2
        %p664 = scmp.lt.s32.totalorder %s663, 139
        %s665 = scalar_select %p664, %s663, 139
        %s666 = smul.addr %s665, 9
        %s667 = smul.addr %s666, 4
        %s668 = scalar_lea.vmem %s2, %s667
        %s669 = smul.u32 %s30, 70
        %s670 = smul.u32 %s31, 2
        %s671 = sadd.s32 %s669, %s670
        %s672 = sadd.s32 %s671, 2
        %s673 = smul.u32 %s30, 70
        %s674 = smul.u32 %s31, 2
        %s675 = sadd.s32 %s673, %s674
        %s676 = sadd.s32 %s675, 3
        %p677 = scmp.lt.s32.totalorder %s676, 139
        %s678 = scalar_select %p677, %s676, 139
        %s679 = smul.addr %s678, 9
        %s680 = smul.addr %s679, 4
        %s681 = scalar_lea.vmem %s3, %s680
        %s682 = smul.u32 %s30, 70
        %s683 = smul.u32 %s31, 2
        %s684 = sadd.s32 %s682, %s683
        %s685 = sadd.s32 %s684, 3
        %s686 = smul.u32 %s30, 70
        %s687 = smul.u32 %s31, 2
        %s688 = sadd.s32 %s686, %s687
        %s689 = sadd.s32 %s688, 4
        %p690 = scmp.lt.s32.totalorder %s689, 139
        %s691 = scalar_select %p690, %s689, 139
        %s692 = smul.addr %s691, 9
        %s693 = smul.addr %s692, 4
        %s694 = scalar_lea.vmem %s4, %s693
        %s695 = smul.u32 %s30, 70
        %s696 = smul.u32 %s31, 2
        %s697 = sadd.s32 %s695, %s696
        %s698 = sadd.s32 %s697, 4
        %s699 = smul.u32 %s30, 70
        %s700 = smul.u32 %s31, 2
        %s701 = sadd.s32 %s699, %s700
        %s702 = sadd.s32 %s701, 5
        %p703 = scmp.lt.s32.totalorder %s702, 139
        %s704 = scalar_select %p703, %s702, 139
        %s705 = smul.addr %s704, 9
        %s706 = smul.addr %s705, 4
        %s707 = scalar_lea.vmem %s5, %s706
        %s708 = smul.u32 %s30, 70
        %s709 = smul.u32 %s31, 2
        %s710 = sadd.s32 %s708, %s709
        %s711 = sadd.s32 %s710, 5
        %s712 = smul.u32 %s30, 70
        %s713 = smul.u32 %s31, 2
        %s714 = sadd.s32 %s712, %s713
        %s715 = sadd.s32 %s714, 6
        %p716 = scmp.lt.s32.totalorder %s715, 139
        %s717 = scalar_select %p716, %s715, 139
        %s718 = smul.addr %s717, 9
        %s719 = smul.addr %s718, 4
        %s720 = scalar_lea.vmem %s6, %s719
        %s721 = smul.u32 %s30, 70
        %s722 = smul.u32 %s31, 2
        %s723 = sadd.s32 %s721, %s722
        %s724 = sadd.s32 %s723, 6
        %p725 = scmp.lt.s32.totalorder %s29, 0
        %s726 = scalar_select %p725, %s29, 0
        %s727 = smul.addr %s726, 2
        %s728 = scalar_lea.vmem %s7, %s727
        %p729 = scmp.lt.s32.totalorder %s29, 0
        %s730 = scalar_select %p729, %s29, 0
        %s731 = scalar_lea.vmem %s8, %s730
        %p732 = scmp.lt.s32.totalorder %s29, 0
        %s733 = scalar_select %p732, %s29, 0
        %s734 = scalar_lea.vmem %s9, %s733
        %v736 = vld [vmem:[%s643] sm:$0xf]
        %v737 = vld [vmem:[%s643 + $0x4] sm:$0xf]
        %v738 = vld [vmem:[%s643 + $0x8] sm:$0xf]
        %v739 = vld [vmem:[%s643 + $0xc] sm:$0xf]
        %v740 = vld [vmem:[%s643 + $0x10] sm:$0xf]
        %v741 = vld [vmem:[%s643 + $0x14] sm:$0xf]
        %v742 = vld [vmem:[%s643 + $0x18] sm:$0xf]
        %v743 = vld [vmem:[%s643 + $0x1c] sm:$0xf]
        %v744 = vld [vmem:[%s643 + $0x20] sm:$0x7]
        %v745 = vld [vmem:[%s728] sm:$0x3]
        %s746 = scalar_lea.vmem %s728, 2
        %v747 = vld [vmem:[%s746] sm:$0x3]
        %v757 = vunpack.c.l.b16 %v736
        %v758 = vunpack.c.l.b16 %v737
        %v759 = vunpack.c.l.b16 %v738
        %v760 = vunpack.c.l.b16 %v739
        %v761 = vunpack.c.l.b16 %v740
        %v762 = vunpack.c.l.b16 %v741
        %v763 = vunpack.c.l.b16 %v742
        %v764 = vunpack.c.l.b16 %v743
        %v765 = vunpack.c.l.b16 %v744
        %v766 = vpack.c.b16 %v758, %v757
        %v767 = vpack.c.b16 %v760, %v759
        %v768 = vpack.c.b16 %v762, %v761
        %v769 = vpack.c.b16 %v764, %v763
        %v770 = vpack.c.b16 %v765, %v765
        %vm771 = vsmask.f32 7424
        %v773 = vshrl.u32 %v766, 16
        %v775 = vshll.u32 %v766, 16
        %v777 = vrot.slane %v775, 1
        %v778 = vor.u32 %v773, %v777
        %v780 = vshll.u32 %v767, 16
        %v782 = vrot.slane %v780, 1
        %v783 = vsel %vm771, %v778, %v782
        %v784 = vshrl.u32 %v767, 16
        %v786 = vor.u32 %v784, %v782
        %v788 = vshll.u32 %v768, 16
        %v790 = vrot.slane %v788, 1
        %v791 = vsel %vm771, %v786, %v790
        %v792 = vshrl.u32 %v768, 16
        %v794 = vor.u32 %v792, %v790
        %v796 = vshll.u32 %v769, 16
        %v798 = vrot.slane %v796, 1
        %v799 = vsel %vm771, %v794, %v798
        %v800 = vshrl.u32 %v769, 16
        %v802 = vor.u32 %v800, %v798
        %v804 = vshll.u32 %v770, 16
        %v806 = vrot.slane %v804, 1
        %v807 = vsel %vm771, %v802, %v806
        %vm808 = vcmask 23552
        %v810 = vsel %vm808, %v783, 0
        %v813 = vsel %vm808, %v791, 0
        %v816 = vsel %vm808, %v799, 0
        %v819 = vsel %vm808, %v807, 0
        %vm821 = vcmask 1040384
        %vm822 = vcmask 1041408
        %v823 = vsel %vm821, 4294967295, 65535
        %v824 = vsel %vm822, %v823, 0
        %v826 = vand.u32 %v747, %v824
        %828 = vmatpush.bf16.msra.mxu0 0
        %829 = vmatpush.bf16.msra.mxu0 0
        %830 = vmatpush.bf16.msra.mxu0 0
        %831 = vmatpush.bf16.msra.mxu0 0
        %832 = vmatpush.bf16.msra.mxu0 0
        %833 = vmatpush.bf16.msra.mxu0 0
        %834 = vmatpush.bf16.msra.mxu0 0
        %835 = vmatpush.bf16.msra.mxu0 %v826
        %836 = vmatmul.bf16.gmra.mxu0 %v810
        %v837 = vpop.f32.mrf.mxu0
        %v838 = vadd.f32 0.0, %v837
        %v839 = vpop.f32.mrf.mxu0
        %v840 = vadd.f32 0.0, %v839
        %841 = vmatmul.bf16.gmra.mxu0 %v813
        %v842 = vpop.f32.mrf.mxu0
        %v843 = vadd.f32 0.0, %v842
        %v844 = vpop.f32.mrf.mxu0
        %v845 = vadd.f32 0.0, %v844
        %846 = vmatmul.bf16.gmra.mxu0 %v816
        %v847 = vpop.f32.mrf.mxu0
        %v848 = vadd.f32 0.0, %v847
        %v849 = vpop.f32.mrf.mxu0
        %v850 = vadd.f32 0.0, %v849
        %851 = vmatmul.bf16.gmra.mxu0 %v819
        %v852 = vpop.f32.mrf.mxu0
        %v853 = vadd.f32 0.0, %v852
        %v854 = vpop.f32.mrf.mxu0
        %v855 = vadd.f32 0.0, %v854
        %856 = vdwg.mxu0
        %v857 = vsel %vm808, %v766, 0
        %v859 = vsel %vm808, %v767, 0
        %v861 = vsel %vm808, %v768, 0
        %v863 = vsel %vm808, %v769, 0
        %v866 = vand.u32 %v745, %v824
        %868 = vmatpush.bf16.msra.mxu0 0
        %869 = vmatpush.bf16.msra.mxu0 0
        %870 = vmatpush.bf16.msra.mxu0 0
        %871 = vmatpush.bf16.msra.mxu0 0
        %872 = vmatpush.bf16.msra.mxu0 0
        %873 = vmatpush.bf16.msra.mxu0 0
        %874 = vmatpush.bf16.msra.mxu0 0
        %875 = vmatpush.bf16.msra.mxu0 %v866
        %876 = vmatmul.bf16.gmra.mxu0 %v857
        %v877 = vpop.f32.mrf.mxu0
        %v878 = vadd.f32 %v838, %v877
        %v879 = vpop.f32.mrf.mxu0
        %v880 = vadd.f32 %v840, %v879
        %881 = vmatmul.bf16.gmra.mxu0 %v859
        %v882 = vpop.f32.mrf.mxu0
        %v883 = vadd.f32 %v843, %v882
        %v884 = vpop.f32.mrf.mxu0
        %v885 = vadd.f32 %v845, %v884
        %886 = vmatmul.bf16.gmra.mxu0 %v861
        %v887 = vpop.f32.mrf.mxu0
        %v888 = vadd.f32 %v848, %v887
        %v889 = vpop.f32.mrf.mxu0
        %v890 = vadd.f32 %v850, %v889
        %891 = vmatmul.bf16.gmra.mxu0 %v863
        %v892 = vpop.f32.mrf.mxu0
        %v893 = vadd.f32 %v853, %v892
        %v894 = vpop.f32.mrf.mxu0
        %v895 = vadd.f32 %v855, %v894
        %896 = vdwg.mxu0
        %s897 = scalar_lea.vmem %s728, 4
        %v898 = vld [vmem:[%s897] sm:$0x3]
        %vm899 = vcmask 1046528
        %v900 = vrot.slane %v766, 1
        %v901 = vrot.slane %v767, 1
        %v902 = vsel %vm899, %v900, %v901
        %v903 = vrot.slane %v768, 1
        %v904 = vsel %vm899, %v901, %v903
        %v905 = vrot.slane %v769, 1
        %v906 = vsel %vm899, %v903, %v905
        %v907 = vrot.slane %v770, 1
        %v908 = vsel %vm899, %v905, %v907
        %v910 = vsel %vm808, %v902, 0
        %v913 = vsel %vm808, %v904, 0
        %v916 = vsel %vm808, %v906, 0
        %v919 = vsel %vm808, %v908, 0
        %v922 = vand.u32 %v898, %v824
        %924 = vmatpush.bf16.msra.mxu0 0
        %925 = vmatpush.bf16.msra.mxu0 0
        %926 = vmatpush.bf16.msra.mxu0 0
        %927 = vmatpush.bf16.msra.mxu0 0
        %928 = vmatpush.bf16.msra.mxu0 0
        %929 = vmatpush.bf16.msra.mxu0 0
        %930 = vmatpush.bf16.msra.mxu0 0
        %931 = vmatpush.bf16.msra.mxu0 %v922
        %932 = vmatmul.bf16.gmra.mxu0 %v910
        %v933 = vpop.f32.mrf.mxu0
        %v934 = vadd.f32 0.0, %v933
        %v935 = vpop.f32.mrf.mxu0
        %v936 = vadd.f32 0.0, %v935
        %937 = vmatmul.bf16.gmra.mxu0 %v913
        %v938 = vpop.f32.mrf.mxu0
        %v939 = vadd.f32 0.0, %v938
        %v940 = vpop.f32.mrf.mxu0
        %v941 = vadd.f32 0.0, %v940
        %942 = vmatmul.bf16.gmra.mxu0 %v916
        %v943 = vpop.f32.mrf.mxu0
        %v944 = vadd.f32 0.0, %v943
        %v945 = vpop.f32.mrf.mxu0
        %v946 = vadd.f32 0.0, %v945
        %947 = vmatmul.bf16.gmra.mxu0 %v919
        %v948 = vpop.f32.mrf.mxu0
        %v949 = vadd.f32 0.0, %v948
        %v950 = vpop.f32.mrf.mxu0
        %v951 = vadd.f32 0.0, %v950
        %952 = vdwg.mxu0
        %v953 = vadd.f32 %v878, %v934
        %v954 = vadd.f32 %v880, %v936
        %v955 = vadd.f32 %v883, %v939
        %v956 = vadd.f32 %v885, %v941
        %v957 = vadd.f32 %v888, %v944
        %v958 = vadd.f32 %v890, %v946
        %v959 = vadd.f32 %v893, %v949
        %v960 = vadd.f32 %v895, %v951
        %s961 = scalar_lea.vmem %s728, 6
        %v962 = vld [vmem:[%s961] sm:$0x3]
        %vm963 = vsmask.f32 6400
        %v964 = vrot.slane %v773, 1
        %v965 = vrot.slane %v775, 2
        %v966 = vor.u32 %v964, %v965
        %v967 = vrot.slane %v784, 1
        %v968 = vrot.slane %v780, 2
        %v969 = vor.u32 %v967, %v968
        %v970 = vsel %vm963, %v966, %v969
        %v971 = vrot.slane %v792, 1
        %v972 = vrot.slane %v788, 2
        %v973 = vor.u32 %v971, %v972
        %v974 = vsel %vm963, %v969, %v973
        %v975 = vrot.slane %v800, 1
        %v976 = vrot.slane %v796, 2
        %v977 = vor.u32 %v975, %v976
        %v978 = vsel %vm963, %v973, %v977
        %v979 = vshrl.u32 %v770, 16
        %v981 = vrot.slane %v979, 1
        %v982 = vrot.slane %v804, 2
        %v983 = vor.u32 %v981, %v982
        %v984 = vsel %vm963, %v977, %v983
        %v986 = vsel %vm808, %v970, 0
        %v989 = vsel %vm808, %v974, 0
        %v992 = vsel %vm808, %v978, 0
        %v995 = vsel %vm808, %v984, 0
        %v998 = vand.u32 %v962, %v824
        %1000 = vmatpush.bf16.msra.mxu0 0
        %1001 = vmatpush.bf16.msra.mxu0 0
        %1002 = vmatpush.bf16.msra.mxu0 0
        %1003 = vmatpush.bf16.msra.mxu0 0
        %1004 = vmatpush.bf16.msra.mxu0 0
        %1005 = vmatpush.bf16.msra.mxu0 0
        %1006 = vmatpush.bf16.msra.mxu0 0
        %1007 = vmatpush.bf16.msra.mxu0 %v998
        %1008 = vmatmul.bf16.gmra.mxu0 %v986
        %v1009 = vpop.f32.mrf.mxu0
        %v1010 = vadd.f32 0.0, %v1009
        %v1011 = vpop.f32.mrf.mxu0
        %v1012 = vadd.f32 0.0, %v1011
        %1013 = vmatmul.bf16.gmra.mxu0 %v989
        %v1014 = vpop.f32.mrf.mxu0
        %v1015 = vadd.f32 0.0, %v1014
        %v1016 = vpop.f32.mrf.mxu0
        %v1017 = vadd.f32 0.0, %v1016
        %1018 = vmatmul.bf16.gmra.mxu0 %v992
        %v1019 = vpop.f32.mrf.mxu0
        %v1020 = vadd.f32 0.0, %v1019
        %v1021 = vpop.f32.mrf.mxu0
        %v1022 = vadd.f32 0.0, %v1021
        %1023 = vmatmul.bf16.gmra.mxu0 %v995
        %v1024 = vpop.f32.mrf.mxu0
        %v1025 = vadd.f32 0.0, %v1024
        %v1026 = vpop.f32.mrf.mxu0
        %v1027 = vadd.f32 0.0, %v1026
        %1028 = vdwg.mxu0
        %v1029 = vadd.f32 %v953, %v1010
        %v1030 = vadd.f32 %v954, %v1012
        %v1031 = vadd.f32 %v955, %v1015
        %v1032 = vadd.f32 %v956, %v1017
        %v1033 = vadd.f32 %v957, %v1020
        %v1034 = vadd.f32 %v958, %v1022
        %v1035 = vadd.f32 %v959, %v1025
        %v1036 = vadd.f32 %v960, %v1027
        %s1037 = scalar_lea.vmem %s728, 8
        %v1038 = vld [vmem:[%s1037] sm:$0x3]
        %vm1039 = vcmask 1045504
        %v1040 = vrot.slane %v766, 2
        %v1041 = vrot.slane %v767, 2
        %v1042 = vsel %vm1039, %v1040, %v1041
        %v1043 = vrot.slane %v768, 2
        %v1044 = vsel %vm1039, %v1041, %v1043
        %v1045 = vrot.slane %v769, 2
        %v1046 = vsel %vm1039, %v1043, %v1045
        %v1047 = vrot.slane %v770, 2
        %v1048 = vsel %vm1039, %v1045, %v1047
        %v1050 = vsel %vm808, %v1042, 0
        %v1053 = vsel %vm808, %v1044, 0
        %v1056 = vsel %vm808, %v1046, 0
        %v1059 = vsel %vm808, %v1048, 0
        %v1062 = vand.u32 %v1038, %v824
        %1064 = vmatpush.bf16.msra.mxu0 0
        %1065 = vmatpush.bf16.msra.mxu0 0
        %1066 = vmatpush.bf16.msra.mxu0 0
        %1067 = vmatpush.bf16.msra.mxu0 0
        %1068 = vmatpush.bf16.msra.mxu0 0
        %1069 = vmatpush.bf16.msra.mxu0 0
        %1070 = vmatpush.bf16.msra.mxu0 0
        %1071 = vmatpush.bf16.msra.mxu0 %v1062
        %1072 = vmatmul.bf16.gmra.mxu0 %v1050
        %v1073 = vpop.f32.mrf.mxu0
        %v1074 = vadd.f32 0.0, %v1073
        %v1075 = vpop.f32.mrf.mxu0
        %v1076 = vadd.f32 0.0, %v1075
        %1077 = vmatmul.bf16.gmra.mxu0 %v1053
        %v1078 = vpop.f32.mrf.mxu0
        %v1079 = vadd.f32 0.0, %v1078
        %v1080 = vpop.f32.mrf.mxu0
        %v1081 = vadd.f32 0.0, %v1080
        %1082 = vmatmul.bf16.gmra.mxu0 %v1056
        %v1083 = vpop.f32.mrf.mxu0
        %v1084 = vadd.f32 0.0, %v1083
        %v1085 = vpop.f32.mrf.mxu0
        %v1086 = vadd.f32 0.0, %v1085
        %1087 = vmatmul.bf16.gmra.mxu0 %v1059
        %v1088 = vpop.f32.mrf.mxu0
        %v1089 = vadd.f32 0.0, %v1088
        %v1090 = vpop.f32.mrf.mxu0
        %v1091 = vadd.f32 0.0, %v1090
        %1092 = vdwg.mxu0
        %v1093 = vadd.f32 %v1029, %v1074
        %v1094 = vadd.f32 %v1030, %v1076
        %v1095 = vadd.f32 %v1031, %v1079
        %v1096 = vadd.f32 %v1032, %v1081
        %v1097 = vadd.f32 %v1033, %v1084
        %v1098 = vadd.f32 %v1034, %v1086
        %v1099 = vadd.f32 %v1035, %v1089
        %v1100 = vadd.f32 %v1036, %v1091
        %s1101 = scalar_lea.vmem %s728, 10
        %v1102 = vld [vmem:[%s1101] sm:$0x3]
        %vm1103 = vsmask.f32 5376
        %v1104 = vrot.slane %v773, 2
        %v1105 = vrot.slane %v775, 3
        %v1106 = vor.u32 %v1104, %v1105
        %v1107 = vrot.slane %v784, 2
        %v1108 = vrot.slane %v780, 3
        %v1109 = vor.u32 %v1107, %v1108
        %v1110 = vsel %vm1103, %v1106, %v1109
        %v1111 = vrot.slane %v792, 2
        %v1112 = vrot.slane %v788, 3
        %v1113 = vor.u32 %v1111, %v1112
        %v1114 = vsel %vm1103, %v1109, %v1113
        %v1115 = vrot.slane %v800, 2
        %v1116 = vrot.slane %v796, 3
        %v1117 = vor.u32 %v1115, %v1116
        %v1118 = vsel %vm1103, %v1113, %v1117
        %v1119 = vrot.slane %v979, 2
        %v1120 = vrot.slane %v804, 3
        %v1121 = vor.u32 %v1119, %v1120
        %v1122 = vsel %vm1103, %v1117, %v1121
        %v1124 = vsel %vm808, %v1110, 0
        %v1127 = vsel %vm808, %v1114, 0
        %v1130 = vsel %vm808, %v1118, 0
        %v1133 = vsel %vm808, %v1122, 0
        %v1136 = vand.u32 %v1102, %v824
        %1138 = vmatpush.bf16.msra.mxu0 0
        %1139 = vmatpush.bf16.msra.mxu0 0
        %1140 = vmatpush.bf16.msra.mxu0 0
        %1141 = vmatpush.bf16.msra.mxu0 0
        %1142 = vmatpush.bf16.msra.mxu0 0
        %1143 = vmatpush.bf16.msra.mxu0 0
        %1144 = vmatpush.bf16.msra.mxu0 0
        %1145 = vmatpush.bf16.msra.mxu0 %v1136
        %1146 = vmatmul.bf16.gmra.mxu0 %v1124
        %v1147 = vpop.f32.mrf.mxu0
        %v1148 = vadd.f32 0.0, %v1147
        %v1149 = vpop.f32.mrf.mxu0
        %v1150 = vadd.f32 0.0, %v1149
        %1151 = vmatmul.bf16.gmra.mxu0 %v1127
        %v1152 = vpop.f32.mrf.mxu0
        %v1153 = vadd.f32 0.0, %v1152
        %v1154 = vpop.f32.mrf.mxu0
        %v1155 = vadd.f32 0.0, %v1154
        %1156 = vmatmul.bf16.gmra.mxu0 %v1130
        %v1157 = vpop.f32.mrf.mxu0
        %v1158 = vadd.f32 0.0, %v1157
        %v1159 = vpop.f32.mrf.mxu0
        %v1160 = vadd.f32 0.0, %v1159
        %1161 = vmatmul.bf16.gmra.mxu0 %v1133
        %v1162 = vpop.f32.mrf.mxu0
        %v1163 = vadd.f32 0.0, %v1162
        %v1164 = vpop.f32.mrf.mxu0
        %v1165 = vadd.f32 0.0, %v1164
        %1166 = vdwg.mxu0
        %v1167 = vadd.f32 %v1093, %v1148
        %v1168 = vadd.f32 %v1094, %v1150
        %v1169 = vadd.f32 %v1095, %v1153
        %v1170 = vadd.f32 %v1096, %v1155
        %v1171 = vadd.f32 %v1097, %v1158
        %v1172 = vadd.f32 %v1098, %v1160
        %v1173 = vadd.f32 %v1099, %v1163
        %v1174 = vadd.f32 %v1100, %v1165
        %s1175 = scalar_lea.vmem %s728, 12
        %v1176 = vld [vmem:[%s1175] sm:$0x3]
        %vm1177 = vcmask 1044480
        %v1178 = vrot.slane %v766, 3
        %v1179 = vrot.slane %v767, 3
        %v1180 = vsel %vm1177, %v1178, %v1179
        %v1181 = vrot.slane %v768, 3
        %v1182 = vsel %vm1177, %v1179, %v1181
        %v1183 = vrot.slane %v769, 3
        %v1184 = vsel %vm1177, %v1181, %v1183
        %v1185 = vrot.slane %v770, 3
        %v1186 = vsel %vm1177, %v1183, %v1185
        %v1188 = vsel %vm808, %v1180, 0
        %v1191 = vsel %vm808, %v1182, 0
        %v1194 = vsel %vm808, %v1184, 0
        %v1197 = vsel %vm808, %v1186, 0
        %v1200 = vand.u32 %v1176, %v824
        %1202 = vmatpush.bf16.msra.mxu0 0
        %1203 = vmatpush.bf16.msra.mxu0 0
        %1204 = vmatpush.bf16.msra.mxu0 0
        %1205 = vmatpush.bf16.msra.mxu0 0
        %1206 = vmatpush.bf16.msra.mxu0 0
        %1207 = vmatpush.bf16.msra.mxu0 0
        %1208 = vmatpush.bf16.msra.mxu0 0
        %1209 = vmatpush.bf16.msra.mxu0 %v1200
        %1210 = vmatmul.bf16.gmra.mxu0 %v1188
        %v1211 = vpop.f32.mrf.mxu0
        %v1212 = vadd.f32 0.0, %v1211
        %v1213 = vpop.f32.mrf.mxu0
        %v1214 = vadd.f32 0.0, %v1213
        %1215 = vmatmul.bf16.gmra.mxu0 %v1191
        %v1216 = vpop.f32.mrf.mxu0
        %v1217 = vadd.f32 0.0, %v1216
        %v1218 = vpop.f32.mrf.mxu0
        %v1219 = vadd.f32 0.0, %v1218
        %1220 = vmatmul.bf16.gmra.mxu0 %v1194
        %v1221 = vpop.f32.mrf.mxu0
        %v1222 = vadd.f32 0.0, %v1221
        %v1223 = vpop.f32.mrf.mxu0
        %v1224 = vadd.f32 0.0, %v1223
        %1225 = vmatmul.bf16.gmra.mxu0 %v1197
        %v1226 = vpop.f32.mrf.mxu0
        %v1227 = vadd.f32 0.0, %v1226
        %v1228 = vpop.f32.mrf.mxu0
        %v1229 = vadd.f32 0.0, %v1228
        %1230 = vdwg.mxu0
        %v1231 = vadd.f32 %v1167, %v1212
        %v1232 = vadd.f32 %v1168, %v1214
        %v1233 = vadd.f32 %v1169, %v1217
        %v1234 = vadd.f32 %v1170, %v1219
        %v1235 = vadd.f32 %v1171, %v1222
        %v1236 = vadd.f32 %v1172, %v1224
        %v1237 = vadd.f32 %v1173, %v1227
        %v1238 = vadd.f32 %v1174, %v1229
        %v1239 = vld [vmem:[%s655] sm:$0xf]
        %v1240 = vld [vmem:[%s655 + $0x4] sm:$0xf]
        %v1241 = vld [vmem:[%s655 + $0x8] sm:$0xf]
        %v1242 = vld [vmem:[%s655 + $0xc] sm:$0xf]
        %v1243 = vld [vmem:[%s655 + $0x10] sm:$0xf]
        %v1244 = vld [vmem:[%s655 + $0x14] sm:$0xf]
        %v1245 = vld [vmem:[%s655 + $0x18] sm:$0xf]
        %v1246 = vld [vmem:[%s655 + $0x1c] sm:$0xf]
        %v1247 = vld [vmem:[%s655 + $0x20] sm:$0x7]
        %s1248 = scalar_lea.vmem %s728, 14
        %v1249 = vld [vmem:[%s1248] sm:$0x3]
        %v1258 = vunpack.c.l.b16 %v1239
        %v1259 = vunpack.c.l.b16 %v1240
        %v1260 = vunpack.c.l.b16 %v1241
        %v1261 = vunpack.c.l.b16 %v1242
        %v1262 = vunpack.c.l.b16 %v1243
        %v1263 = vunpack.c.l.b16 %v1244
        %v1264 = vunpack.c.l.b16 %v1245
        %v1265 = vunpack.c.l.b16 %v1246
        %v1266 = vpack.c.b16 %v1259, %v1258
        %v1267 = vpack.c.b16 %v1261, %v1260
        %v1268 = vpack.c.b16 %v1263, %v1262
        %v1269 = vpack.c.b16 %v1265, %v1264
        %v1271 = vsel %vm808, %v1266, 0
        %v1274 = vsel %vm808, %v1267, 0
        %v1277 = vsel %vm808, %v1268, 0
        %v1280 = vsel %vm808, %v1269, 0
        %v1283 = vand.u32 %v1249, %v824
        %1285 = vmatpush.bf16.msra.mxu0 0
        %1286 = vmatpush.bf16.msra.mxu0 0
        %1287 = vmatpush.bf16.msra.mxu0 0
        %1288 = vmatpush.bf16.msra.mxu0 0
        %1289 = vmatpush.bf16.msra.mxu0 0
        %1290 = vmatpush.bf16.msra.mxu0 0
        %1291 = vmatpush.bf16.msra.mxu0 0
        %1292 = vmatpush.bf16.msra.mxu0 %v1283
        %1293 = vmatmul.bf16.gmra.mxu0 %v1271
        %v1294 = vpop.f32.mrf.mxu0
        %v1295 = vadd.f32 0.0, %v1294
        %v1296 = vpop.f32.mrf.mxu0
        %v1297 = vadd.f32 0.0, %v1296
        %1298 = vmatmul.bf16.gmra.mxu0 %v1274
        %v1299 = vpop.f32.mrf.mxu0
        %v1300 = vadd.f32 0.0, %v1299
        %v1301 = vpop.f32.mrf.mxu0
        %v1302 = vadd.f32 0.0, %v1301
        %1303 = vmatmul.bf16.gmra.mxu0 %v1277
        %v1304 = vpop.f32.mrf.mxu0
        %v1305 = vadd.f32 0.0, %v1304
        %v1306 = vpop.f32.mrf.mxu0
        %v1307 = vadd.f32 0.0, %v1306
        %1308 = vmatmul.bf16.gmra.mxu0 %v1280
        %v1309 = vpop.f32.mrf.mxu0
        %v1310 = vadd.f32 0.0, %v1309
        %v1311 = vpop.f32.mrf.mxu0
        %v1312 = vadd.f32 0.0, %v1311
        %1313 = vdwg.mxu0
        %v1314 = vadd.f32 %v1231, %v1295
        %v1315 = vadd.f32 %v1232, %v1297
        %v1316 = vadd.f32 %v1233, %v1300
        %v1317 = vadd.f32 %v1234, %v1302
        %v1318 = vadd.f32 %v1235, %v1305
        %v1319 = vadd.f32 %v1236, %v1307
        %v1320 = vadd.f32 %v1237, %v1310
        %v1321 = vadd.f32 %v1238, %v1312
        %s1322 = scalar_lea.vmem %s728, 16
        %v1323 = vld [vmem:[%s1322] sm:$0x3]
        %v1325 = vunpack.c.l.b16 %v1247
        %v1326 = vpack.c.b16 %v1325, %v1325
        %v1327 = vshrl.u32 %v1266, 16
        %v1329 = vshll.u32 %v1266, 16
        %v1331 = vrot.slane %v1329, 1
        %v1332 = vor.u32 %v1327, %v1331
        %v1333 = vshll.u32 %v1267, 16
        %v1335 = vrot.slane %v1333, 1
        %v1336 = vsel %vm771, %v1332, %v1335
        %v1337 = vshrl.u32 %v1267, 16
        %v1339 = vor.u32 %v1337, %v1335
        %v1340 = vshll.u32 %v1268, 16
        %v1342 = vrot.slane %v1340, 1
        %v1343 = vsel %vm771, %v1339, %v1342
        %v1344 = vshrl.u32 %v1268, 16
        %v1346 = vor.u32 %v1344, %v1342
        %v1347 = vshll.u32 %v1269, 16
        %v1349 = vrot.slane %v1347, 1
        %v1350 = vsel %vm771, %v1346, %v1349
        %v1351 = vshrl.u32 %v1269, 16
        %v1353 = vor.u32 %v1351, %v1349
        %v1355 = vshll.u32 %v1326, 16
        %v1357 = vrot.slane %v1355, 1
        %v1358 = vsel %vm771, %v1353, %v1357
        %v1360 = vsel %vm808, %v1336, 0
        %v1363 = vsel %vm808, %v1343, 0
        %v1366 = vsel %vm808, %v1350, 0
        %v1369 = vsel %vm808, %v1358, 0
        %v1372 = vand.u32 %v1323, %v824
        %1374 = vmatpush.bf16.msra.mxu0 0
        %1375 = vmatpush.bf16.msra.mxu0 0
        %1376 = vmatpush.bf16.msra.mxu0 0
        %1377 = vmatpush.bf16.msra.mxu0 0
        %1378 = vmatpush.bf16.msra.mxu0 0
        %1379 = vmatpush.bf16.msra.mxu0 0
        %1380 = vmatpush.bf16.msra.mxu0 0
        %1381 = vmatpush.bf16.msra.mxu0 %v1372
        %1382 = vmatmul.bf16.gmra.mxu0 %v1360
        %v1383 = vpop.f32.mrf.mxu0
        %v1384 = vadd.f32 0.0, %v1383
        %v1385 = vpop.f32.mrf.mxu0
        %v1386 = vadd.f32 0.0, %v1385
        %1387 = vmatmul.bf16.gmra.mxu0 %v1363
        %v1388 = vpop.f32.mrf.mxu0
        %v1389 = vadd.f32 0.0, %v1388
        %v1390 = vpop.f32.mrf.mxu0
        %v1391 = vadd.f32 0.0, %v1390
        %1392 = vmatmul.bf16.gmra.mxu0 %v1366
        %v1393 = vpop.f32.mrf.mxu0
        %v1394 = vadd.f32 0.0, %v1393
        %v1395 = vpop.f32.mrf.mxu0
        %v1396 = vadd.f32 0.0, %v1395
        %1397 = vmatmul.bf16.gmra.mxu0 %v1369
        %v1398 = vpop.f32.mrf.mxu0
        %v1399 = vadd.f32 0.0, %v1398
        %v1400 = vpop.f32.mrf.mxu0
        %v1401 = vadd.f32 0.0, %v1400
        %1402 = vdwg.mxu0
        %v1403 = vadd.f32 %v1314, %v1384
        %v1404 = vadd.f32 %v1315, %v1386
        %v1405 = vadd.f32 %v1316, %v1389
        %v1406 = vadd.f32 %v1317, %v1391
        %v1407 = vadd.f32 %v1318, %v1394
        %v1408 = vadd.f32 %v1319, %v1396
        %v1409 = vadd.f32 %v1320, %v1399
        %v1410 = vadd.f32 %v1321, %v1401
        %s1411 = scalar_lea.vmem %s728, 18
        %v1412 = vld [vmem:[%s1411] sm:$0x3]
        %v1413 = vrot.slane %v1266, 1
        %v1414 = vrot.slane %v1267, 1
        %v1415 = vsel %vm899, %v1413, %v1414
        %v1416 = vrot.slane %v1268, 1
        %v1417 = vsel %vm899, %v1414, %v1416
        %v1418 = vrot.slane %v1269, 1
        %v1419 = vsel %vm899, %v1416, %v1418
        %v1420 = vrot.slane %v1326, 1
        %v1421 = vsel %vm899, %v1418, %v1420
        %v1423 = vsel %vm808, %v1415, 0
        %v1426 = vsel %vm808, %v1417, 0
        %v1429 = vsel %vm808, %v1419, 0
        %v1432 = vsel %vm808, %v1421, 0
        %v1435 = vand.u32 %v1412, %v824
        %1437 = vmatpush.bf16.msra.mxu0 0
        %1438 = vmatpush.bf16.msra.mxu0 0
        %1439 = vmatpush.bf16.msra.mxu0 0
        %1440 = vmatpush.bf16.msra.mxu0 0
        %1441 = vmatpush.bf16.msra.mxu0 0
        %1442 = vmatpush.bf16.msra.mxu0 0
        %1443 = vmatpush.bf16.msra.mxu0 0
        %1444 = vmatpush.bf16.msra.mxu0 %v1435
        %1445 = vmatmul.bf16.gmra.mxu0 %v1423
        %v1446 = vpop.f32.mrf.mxu0
        %v1447 = vadd.f32 0.0, %v1446
        %v1448 = vpop.f32.mrf.mxu0
        %v1449 = vadd.f32 0.0, %v1448
        %1450 = vmatmul.bf16.gmra.mxu0 %v1426
        %v1451 = vpop.f32.mrf.mxu0
        %v1452 = vadd.f32 0.0, %v1451
        %v1453 = vpop.f32.mrf.mxu0
        %v1454 = vadd.f32 0.0, %v1453
        %1455 = vmatmul.bf16.gmra.mxu0 %v1429
        %v1456 = vpop.f32.mrf.mxu0
        %v1457 = vadd.f32 0.0, %v1456
        %v1458 = vpop.f32.mrf.mxu0
        %v1459 = vadd.f32 0.0, %v1458
        %1460 = vmatmul.bf16.gmra.mxu0 %v1432
        %v1461 = vpop.f32.mrf.mxu0
        %v1462 = vadd.f32 0.0, %v1461
        %v1463 = vpop.f32.mrf.mxu0
        %v1464 = vadd.f32 0.0, %v1463
        %1465 = vdwg.mxu0
        %v1466 = vadd.f32 %v1403, %v1447
        %v1467 = vadd.f32 %v1404, %v1449
        %v1468 = vadd.f32 %v1405, %v1452
        %v1469 = vadd.f32 %v1406, %v1454
        %v1470 = vadd.f32 %v1407, %v1457
        %v1471 = vadd.f32 %v1408, %v1459
        %v1472 = vadd.f32 %v1409, %v1462
        %v1473 = vadd.f32 %v1410, %v1464
        %s1474 = scalar_lea.vmem %s728, 20
        %v1475 = vld [vmem:[%s1474] sm:$0x3]
        %v1476 = vrot.slane %v1327, 1
        %v1477 = vrot.slane %v1329, 2
        %v1478 = vor.u32 %v1476, %v1477
        %v1479 = vrot.slane %v1337, 1
        %v1480 = vrot.slane %v1333, 2
        %v1481 = vor.u32 %v1479, %v1480
        %v1482 = vsel %vm963, %v1478, %v1481
        %v1483 = vrot.slane %v1344, 1
        %v1484 = vrot.slane %v1340, 2
        %v1485 = vor.u32 %v1483, %v1484
        %v1486 = vsel %vm963, %v1481, %v1485
        %v1487 = vrot.slane %v1351, 1
        %v1488 = vrot.slane %v1347, 2
        %v1489 = vor.u32 %v1487, %v1488
        %v1490 = vsel %vm963, %v1485, %v1489
        %v1491 = vshrl.u32 %v1326, 16
        %v1493 = vrot.slane %v1491, 1
        %v1494 = vrot.slane %v1355, 2
        %v1495 = vor.u32 %v1493, %v1494
        %v1496 = vsel %vm963, %v1489, %v1495
        %v1498 = vsel %vm808, %v1482, 0
        %v1501 = vsel %vm808, %v1486, 0
        %v1504 = vsel %vm808, %v1490, 0
        %v1507 = vsel %vm808, %v1496, 0
        %v1510 = vand.u32 %v1475, %v824
        %1512 = vmatpush.bf16.msra.mxu0 0
        %1513 = vmatpush.bf16.msra.mxu0 0
        %1514 = vmatpush.bf16.msra.mxu0 0
        %1515 = vmatpush.bf16.msra.mxu0 0
        %1516 = vmatpush.bf16.msra.mxu0 0
        %1517 = vmatpush.bf16.msra.mxu0 0
        %1518 = vmatpush.bf16.msra.mxu0 0
        %1519 = vmatpush.bf16.msra.mxu0 %v1510
        %1520 = vmatmul.bf16.gmra.mxu0 %v1498
        %v1521 = vpop.f32.mrf.mxu0
        %v1522 = vadd.f32 0.0, %v1521
        %v1523 = vpop.f32.mrf.mxu0
        %v1524 = vadd.f32 0.0, %v1523
        %1525 = vmatmul.bf16.gmra.mxu0 %v1501
        %v1526 = vpop.f32.mrf.mxu0
        %v1527 = vadd.f32 0.0, %v1526
        %v1528 = vpop.f32.mrf.mxu0
        %v1529 = vadd.f32 0.0, %v1528
        %1530 = vmatmul.bf16.gmra.mxu0 %v1504
        %v1531 = vpop.f32.mrf.mxu0
        %v1532 = vadd.f32 0.0, %v1531
        %v1533 = vpop.f32.mrf.mxu0
        %v1534 = vadd.f32 0.0, %v1533
        %1535 = vmatmul.bf16.gmra.mxu0 %v1507
        %v1536 = vpop.f32.mrf.mxu0
        %v1537 = vadd.f32 0.0, %v1536
        %v1538 = vpop.f32.mrf.mxu0
        %v1539 = vadd.f32 0.0, %v1538
        %1540 = vdwg.mxu0
        %v1541 = vadd.f32 %v1466, %v1522
        %v1542 = vadd.f32 %v1467, %v1524
        %v1543 = vadd.f32 %v1468, %v1527
        %v1544 = vadd.f32 %v1469, %v1529
        %v1545 = vadd.f32 %v1470, %v1532
        %v1546 = vadd.f32 %v1471, %v1534
        %v1547 = vadd.f32 %v1472, %v1537
        %v1548 = vadd.f32 %v1473, %v1539
        %s1549 = scalar_lea.vmem %s728, 22
        %v1550 = vld [vmem:[%s1549] sm:$0x3]
        %v1551 = vrot.slane %v1266, 2
        %v1552 = vrot.slane %v1267, 2
        %v1553 = vsel %vm1039, %v1551, %v1552
        %v1554 = vrot.slane %v1268, 2
        %v1555 = vsel %vm1039, %v1552, %v1554
        %v1556 = vrot.slane %v1269, 2
        %v1557 = vsel %vm1039, %v1554, %v1556
        %v1558 = vrot.slane %v1326, 2
        %v1559 = vsel %vm1039, %v1556, %v1558
        %v1561 = vsel %vm808, %v1553, 0
        %v1564 = vsel %vm808, %v1555, 0
        %v1567 = vsel %vm808, %v1557, 0
        %v1570 = vsel %vm808, %v1559, 0
        %v1573 = vand.u32 %v1550, %v824
        %1575 = vmatpush.bf16.msra.mxu0 0
        %1576 = vmatpush.bf16.msra.mxu0 0
        %1577 = vmatpush.bf16.msra.mxu0 0
        %1578 = vmatpush.bf16.msra.mxu0 0
        %1579 = vmatpush.bf16.msra.mxu0 0
        %1580 = vmatpush.bf16.msra.mxu0 0
        %1581 = vmatpush.bf16.msra.mxu0 0
        %1582 = vmatpush.bf16.msra.mxu0 %v1573
        %1583 = vmatmul.bf16.gmra.mxu0 %v1561
        %v1584 = vpop.f32.mrf.mxu0
        %v1585 = vadd.f32 0.0, %v1584
        %v1586 = vpop.f32.mrf.mxu0
        %v1587 = vadd.f32 0.0, %v1586
        %1588 = vmatmul.bf16.gmra.mxu0 %v1564
        %v1589 = vpop.f32.mrf.mxu0
        %v1590 = vadd.f32 0.0, %v1589
        %v1591 = vpop.f32.mrf.mxu0
        %v1592 = vadd.f32 0.0, %v1591
        %1593 = vmatmul.bf16.gmra.mxu0 %v1567
        %v1594 = vpop.f32.mrf.mxu0
        %v1595 = vadd.f32 0.0, %v1594
        %v1596 = vpop.f32.mrf.mxu0
        %v1597 = vadd.f32 0.0, %v1596
        %1598 = vmatmul.bf16.gmra.mxu0 %v1570
        %v1599 = vpop.f32.mrf.mxu0
        %v1600 = vadd.f32 0.0, %v1599
        %v1601 = vpop.f32.mrf.mxu0
        %v1602 = vadd.f32 0.0, %v1601
        %1603 = vdwg.mxu0
        %v1604 = vadd.f32 %v1541, %v1585
        %v1605 = vadd.f32 %v1542, %v1587
        %v1606 = vadd.f32 %v1543, %v1590
        %v1607 = vadd.f32 %v1544, %v1592
        %v1608 = vadd.f32 %v1545, %v1595
        %v1609 = vadd.f32 %v1546, %v1597
        %v1610 = vadd.f32 %v1547, %v1600
        %v1611 = vadd.f32 %v1548, %v1602
        %s1612 = scalar_lea.vmem %s728, 24
        %v1613 = vld [vmem:[%s1612] sm:$0x3]
        %v1614 = vrot.slane %v1327, 2
        %v1615 = vrot.slane %v1329, 3
        %v1616 = vor.u32 %v1614, %v1615
        %v1617 = vrot.slane %v1337, 2
        %v1618 = vrot.slane %v1333, 3
        %v1619 = vor.u32 %v1617, %v1618
        %v1620 = vsel %vm1103, %v1616, %v1619
        %v1621 = vrot.slane %v1344, 2
        %v1622 = vrot.slane %v1340, 3
        %v1623 = vor.u32 %v1621, %v1622
        %v1624 = vsel %vm1103, %v1619, %v1623
        %v1625 = vrot.slane %v1351, 2
        %v1626 = vrot.slane %v1347, 3
        %v1627 = vor.u32 %v1625, %v1626
        %v1628 = vsel %vm1103, %v1623, %v1627
        %v1629 = vrot.slane %v1491, 2
        %v1630 = vrot.slane %v1355, 3
        %v1631 = vor.u32 %v1629, %v1630
        %v1632 = vsel %vm1103, %v1627, %v1631
        %v1634 = vsel %vm808, %v1620, 0
        %v1637 = vsel %vm808, %v1624, 0
        %v1640 = vsel %vm808, %v1628, 0
        %v1643 = vsel %vm808, %v1632, 0
        %v1646 = vand.u32 %v1613, %v824
        %1648 = vmatpush.bf16.msra.mxu0 0
        %1649 = vmatpush.bf16.msra.mxu0 0
        %1650 = vmatpush.bf16.msra.mxu0 0
        %1651 = vmatpush.bf16.msra.mxu0 0
        %1652 = vmatpush.bf16.msra.mxu0 0
        %1653 = vmatpush.bf16.msra.mxu0 0
        %1654 = vmatpush.bf16.msra.mxu0 0
        %1655 = vmatpush.bf16.msra.mxu0 %v1646
        %1656 = vmatmul.bf16.gmra.mxu0 %v1634
        %v1657 = vpop.f32.mrf.mxu0
        %v1658 = vadd.f32 0.0, %v1657
        %v1659 = vpop.f32.mrf.mxu0
        %v1660 = vadd.f32 0.0, %v1659
        %1661 = vmatmul.bf16.gmra.mxu0 %v1637
        %v1662 = vpop.f32.mrf.mxu0
        %v1663 = vadd.f32 0.0, %v1662
        %v1664 = vpop.f32.mrf.mxu0
        %v1665 = vadd.f32 0.0, %v1664
        %1666 = vmatmul.bf16.gmra.mxu0 %v1640
        %v1667 = vpop.f32.mrf.mxu0
        %v1668 = vadd.f32 0.0, %v1667
        %v1669 = vpop.f32.mrf.mxu0
        %v1670 = vadd.f32 0.0, %v1669
        %1671 = vmatmul.bf16.gmra.mxu0 %v1643
        %v1672 = vpop.f32.mrf.mxu0
        %v1673 = vadd.f32 0.0, %v1672
        %v1674 = vpop.f32.mrf.mxu0
        %v1675 = vadd.f32 0.0, %v1674
        %1676 = vdwg.mxu0
        %v1677 = vadd.f32 %v1604, %v1658
        %v1678 = vadd.f32 %v1605, %v1660
        %v1679 = vadd.f32 %v1606, %v1663
        %v1680 = vadd.f32 %v1607, %v1665
        %v1681 = vadd.f32 %v1608, %v1668
        %v1682 = vadd.f32 %v1609, %v1670
        %v1683 = vadd.f32 %v1610, %v1673
        %v1684 = vadd.f32 %v1611, %v1675
        %s1685 = scalar_lea.vmem %s728, 26
        %v1686 = vld [vmem:[%s1685] sm:$0x3]
        %v1687 = vrot.slane %v1266, 3
        %v1688 = vrot.slane %v1267, 3
        %v1689 = vsel %vm1177, %v1687, %v1688
        %v1690 = vrot.slane %v1268, 3
        %v1691 = vsel %vm1177, %v1688, %v1690
        %v1692 = vrot.slane %v1269, 3
        %v1693 = vsel %vm1177, %v1690, %v1692
        %v1694 = vrot.slane %v1326, 3
        %v1695 = vsel %vm1177, %v1692, %v1694
        %v1697 = vsel %vm808, %v1689, 0
        %v1700 = vsel %vm808, %v1691, 0
        %v1703 = vsel %vm808, %v1693, 0
        %v1706 = vsel %vm808, %v1695, 0
        %v1709 = vand.u32 %v1686, %v824
        %1711 = vmatpush.bf16.msra.mxu0 0
        %1712 = vmatpush.bf16.msra.mxu0 0
        %1713 = vmatpush.bf16.msra.mxu0 0
        %1714 = vmatpush.bf16.msra.mxu0 0
        %1715 = vmatpush.bf16.msra.mxu0 0
        %1716 = vmatpush.bf16.msra.mxu0 0
        %1717 = vmatpush.bf16.msra.mxu0 0
        %1718 = vmatpush.bf16.msra.mxu0 %v1709
        %1719 = vmatmul.bf16.gmra.mxu0 %v1697
        %v1720 = vpop.f32.mrf.mxu0
        %v1721 = vadd.f32 0.0, %v1720
        %v1722 = vpop.f32.mrf.mxu0
        %v1723 = vadd.f32 0.0, %v1722
        %1724 = vmatmul.bf16.gmra.mxu0 %v1700
        %v1725 = vpop.f32.mrf.mxu0
        %v1726 = vadd.f32 0.0, %v1725
        %v1727 = vpop.f32.mrf.mxu0
        %v1728 = vadd.f32 0.0, %v1727
        %1729 = vmatmul.bf16.gmra.mxu0 %v1703
        %v1730 = vpop.f32.mrf.mxu0
        %v1731 = vadd.f32 0.0, %v1730
        %v1732 = vpop.f32.mrf.mxu0
        %v1733 = vadd.f32 0.0, %v1732
        %1734 = vmatmul.bf16.gmra.mxu0 %v1706
        %v1735 = vpop.f32.mrf.mxu0
        %v1736 = vadd.f32 0.0, %v1735
        %v1737 = vpop.f32.mrf.mxu0
        %v1738 = vadd.f32 0.0, %v1737
        %1739 = vdwg.mxu0
        %v1740 = vadd.f32 %v1677, %v1721
        %v1741 = vadd.f32 %v1678, %v1723
        %v1742 = vadd.f32 %v1679, %v1726
        %v1743 = vadd.f32 %v1680, %v1728
        %v1744 = vadd.f32 %v1681, %v1731
        %v1745 = vadd.f32 %v1682, %v1733
        %v1746 = vadd.f32 %v1683, %v1736
        %v1747 = vadd.f32 %v1684, %v1738
        %v1748 = vld [vmem:[%s668] sm:$0xf]
        %v1749 = vld [vmem:[%s668 + $0x4] sm:$0xf]
        %v1750 = vld [vmem:[%s668 + $0x8] sm:$0xf]
        %v1751 = vld [vmem:[%s668 + $0xc] sm:$0xf]
        %v1752 = vld [vmem:[%s668 + $0x10] sm:$0xf]
        %v1753 = vld [vmem:[%s668 + $0x14] sm:$0xf]
        %v1754 = vld [vmem:[%s668 + $0x18] sm:$0xf]
        %v1755 = vld [vmem:[%s668 + $0x1c] sm:$0xf]
        %v1756 = vld [vmem:[%s668 + $0x20] sm:$0x7]
        %s1757 = scalar_lea.vmem %s728, 28
        %v1758 = vld [vmem:[%s1757] sm:$0x3]
        %v1767 = vunpack.c.l.b16 %v1748
        %v1768 = vunpack.c.l.b16 %v1749
        %v1769 = vunpack.c.l.b16 %v1750
        %v1770 = vunpack.c.l.b16 %v1751
        %v1771 = vunpack.c.l.b16 %v1752
        %v1772 = vunpack.c.l.b16 %v1753
        %v1773 = vunpack.c.l.b16 %v1754
        %v1774 = vunpack.c.l.b16 %v1755
        %v1775 = vpack.c.b16 %v1768, %v1767
        %v1776 = vpack.c.b16 %v1770, %v1769
        %v1777 = vpack.c.b16 %v1772, %v1771
        %v1778 = vpack.c.b16 %v1774, %v1773
        %v1780 = vsel %vm808, %v1775, 0
        %v1783 = vsel %vm808, %v1776, 0
        %v1786 = vsel %vm808, %v1777, 0
        %v1789 = vsel %vm808, %v1778, 0
        %v1792 = vand.u32 %v1758, %v824
        %1794 = vmatpush.bf16.msra.mxu0 0
        %1795 = vmatpush.bf16.msra.mxu0 0
        %1796 = vmatpush.bf16.msra.mxu0 0
        %1797 = vmatpush.bf16.msra.mxu0 0
        %1798 = vmatpush.bf16.msra.mxu0 0
        %1799 = vmatpush.bf16.msra.mxu0 0
        %1800 = vmatpush.bf16.msra.mxu0 0
        %1801 = vmatpush.bf16.msra.mxu0 %v1792
        %1802 = vmatmul.bf16.gmra.mxu0 %v1780
        %v1803 = vpop.f32.mrf.mxu0
        %v1804 = vadd.f32 0.0, %v1803
        %v1805 = vpop.f32.mrf.mxu0
        %v1806 = vadd.f32 0.0, %v1805
        %1807 = vmatmul.bf16.gmra.mxu0 %v1783
        %v1808 = vpop.f32.mrf.mxu0
        %v1809 = vadd.f32 0.0, %v1808
        %v1810 = vpop.f32.mrf.mxu0
        %v1811 = vadd.f32 0.0, %v1810
        %1812 = vmatmul.bf16.gmra.mxu0 %v1786
        %v1813 = vpop.f32.mrf.mxu0
        %v1814 = vadd.f32 0.0, %v1813
        %v1815 = vpop.f32.mrf.mxu0
        %v1816 = vadd.f32 0.0, %v1815
        %1817 = vmatmul.bf16.gmra.mxu0 %v1789
        %v1818 = vpop.f32.mrf.mxu0
        %v1819 = vadd.f32 0.0, %v1818
        %v1820 = vpop.f32.mrf.mxu0
        %v1821 = vadd.f32 0.0, %v1820
        %1822 = vdwg.mxu0
        %v1823 = vadd.f32 %v1740, %v1804
        %v1824 = vadd.f32 %v1741, %v1806
        %v1825 = vadd.f32 %v1742, %v1809
        %v1826 = vadd.f32 %v1743, %v1811
        %v1827 = vadd.f32 %v1744, %v1814
        %v1828 = vadd.f32 %v1745, %v1816
        %v1829 = vadd.f32 %v1746, %v1819
        %v1830 = vadd.f32 %v1747, %v1821
        %s1831 = scalar_lea.vmem %s728, 30
        %v1832 = vld [vmem:[%s1831] sm:$0x3]
        %v1834 = vunpack.c.l.b16 %v1756
        %v1835 = vpack.c.b16 %v1834, %v1834
        %v1836 = vshrl.u32 %v1775, 16
        %v1838 = vshll.u32 %v1775, 16
        %v1840 = vrot.slane %v1838, 1
        %v1841 = vor.u32 %v1836, %v1840
        %v1842 = vshll.u32 %v1776, 16
        %v1844 = vrot.slane %v1842, 1
        %v1845 = vsel %vm771, %v1841, %v1844
        %v1846 = vshrl.u32 %v1776, 16
        %v1848 = vor.u32 %v1846, %v1844
        %v1849 = vshll.u32 %v1777, 16
        %v1851 = vrot.slane %v1849, 1
        %v1852 = vsel %vm771, %v1848, %v1851
        %v1853 = vshrl.u32 %v1777, 16
        %v1855 = vor.u32 %v1853, %v1851
        %v1856 = vshll.u32 %v1778, 16
        %v1858 = vrot.slane %v1856, 1
        %v1859 = vsel %vm771, %v1855, %v1858
        %v1860 = vshrl.u32 %v1778, 16
        %v1862 = vor.u32 %v1860, %v1858
        %v1864 = vshll.u32 %v1835, 16
        %v1866 = vrot.slane %v1864, 1
        %v1867 = vsel %vm771, %v1862, %v1866
        %v1869 = vsel %vm808, %v1845, 0
        %v1872 = vsel %vm808, %v1852, 0
        %v1875 = vsel %vm808, %v1859, 0
        %v1878 = vsel %vm808, %v1867, 0
        %v1881 = vand.u32 %v1832, %v824
        %1883 = vmatpush.bf16.msra.mxu0 0
        %1884 = vmatpush.bf16.msra.mxu0 0
        %1885 = vmatpush.bf16.msra.mxu0 0
        %1886 = vmatpush.bf16.msra.mxu0 0
        %1887 = vmatpush.bf16.msra.mxu0 0
        %1888 = vmatpush.bf16.msra.mxu0 0
        %1889 = vmatpush.bf16.msra.mxu0 0
        %1890 = vmatpush.bf16.msra.mxu0 %v1881
        %1891 = vmatmul.bf16.gmra.mxu0 %v1869
        %v1892 = vpop.f32.mrf.mxu0
        %v1893 = vadd.f32 0.0, %v1892
        %v1894 = vpop.f32.mrf.mxu0
        %v1895 = vadd.f32 0.0, %v1894
        %1896 = vmatmul.bf16.gmra.mxu0 %v1872
        %v1897 = vpop.f32.mrf.mxu0
        %v1898 = vadd.f32 0.0, %v1897
        %v1899 = vpop.f32.mrf.mxu0
        %v1900 = vadd.f32 0.0, %v1899
        %1901 = vmatmul.bf16.gmra.mxu0 %v1875
        %v1902 = vpop.f32.mrf.mxu0
        %v1903 = vadd.f32 0.0, %v1902
        %v1904 = vpop.f32.mrf.mxu0
        %v1905 = vadd.f32 0.0, %v1904
        %1906 = vmatmul.bf16.gmra.mxu0 %v1878
        %v1907 = vpop.f32.mrf.mxu0
        %v1908 = vadd.f32 0.0, %v1907
        %v1909 = vpop.f32.mrf.mxu0
        %v1910 = vadd.f32 0.0, %v1909
        %1911 = vdwg.mxu0
        %v1912 = vadd.f32 %v1823, %v1893
        %v1913 = vadd.f32 %v1824, %v1895
        %v1914 = vadd.f32 %v1825, %v1898
        %v1915 = vadd.f32 %v1826, %v1900
        %v1916 = vadd.f32 %v1827, %v1903
        %v1917 = vadd.f32 %v1828, %v1905
        %v1918 = vadd.f32 %v1829, %v1908
        %v1919 = vadd.f32 %v1830, %v1910
        %s1920 = scalar_lea.vmem %s728, 32
        %v1921 = vld [vmem:[%s1920] sm:$0x3]
        %v1922 = vrot.slane %v1775, 1
        %v1923 = vrot.slane %v1776, 1
        %v1924 = vsel %vm899, %v1922, %v1923
        %v1925 = vrot.slane %v1777, 1
        %v1926 = vsel %vm899, %v1923, %v1925
        %v1927 = vrot.slane %v1778, 1
        %v1928 = vsel %vm899, %v1925, %v1927
        %v1929 = vrot.slane %v1835, 1
        %v1930 = vsel %vm899, %v1927, %v1929
        %v1932 = vsel %vm808, %v1924, 0
        %v1935 = vsel %vm808, %v1926, 0
        %v1938 = vsel %vm808, %v1928, 0
        %v1941 = vsel %vm808, %v1930, 0
        %v1944 = vand.u32 %v1921, %v824
        %1946 = vmatpush.bf16.msra.mxu0 0
        %1947 = vmatpush.bf16.msra.mxu0 0
        %1948 = vmatpush.bf16.msra.mxu0 0
        %1949 = vmatpush.bf16.msra.mxu0 0
        %1950 = vmatpush.bf16.msra.mxu0 0
        %1951 = vmatpush.bf16.msra.mxu0 0
        %1952 = vmatpush.bf16.msra.mxu0 0
        %1953 = vmatpush.bf16.msra.mxu0 %v1944
        %1954 = vmatmul.bf16.gmra.mxu0 %v1932
        %v1955 = vpop.f32.mrf.mxu0
        %v1956 = vadd.f32 0.0, %v1955
        %v1957 = vpop.f32.mrf.mxu0
        %v1958 = vadd.f32 0.0, %v1957
        %1959 = vmatmul.bf16.gmra.mxu0 %v1935
        %v1960 = vpop.f32.mrf.mxu0
        %v1961 = vadd.f32 0.0, %v1960
        %v1962 = vpop.f32.mrf.mxu0
        %v1963 = vadd.f32 0.0, %v1962
        %1964 = vmatmul.bf16.gmra.mxu0 %v1938
        %v1965 = vpop.f32.mrf.mxu0
        %v1966 = vadd.f32 0.0, %v1965
        %v1967 = vpop.f32.mrf.mxu0
        %v1968 = vadd.f32 0.0, %v1967
        %1969 = vmatmul.bf16.gmra.mxu0 %v1941
        %v1970 = vpop.f32.mrf.mxu0
        %v1971 = vadd.f32 0.0, %v1970
        %v1972 = vpop.f32.mrf.mxu0
        %v1973 = vadd.f32 0.0, %v1972
        %1974 = vdwg.mxu0
        %v1975 = vadd.f32 %v1912, %v1956
        %v1976 = vadd.f32 %v1913, %v1958
        %v1977 = vadd.f32 %v1914, %v1961
        %v1978 = vadd.f32 %v1915, %v1963
        %v1979 = vadd.f32 %v1916, %v1966
        %v1980 = vadd.f32 %v1917, %v1968
        %v1981 = vadd.f32 %v1918, %v1971
        %v1982 = vadd.f32 %v1919, %v1973
        %s1983 = scalar_lea.vmem %s728, 34
        %v1984 = vld [vmem:[%s1983] sm:$0x3]
        %v1985 = vrot.slane %v1836, 1
        %v1986 = vrot.slane %v1838, 2
        %v1987 = vor.u32 %v1985, %v1986
        %v1988 = vrot.slane %v1846, 1
        %v1989 = vrot.slane %v1842, 2
        %v1990 = vor.u32 %v1988, %v1989
        %v1991 = vsel %vm963, %v1987, %v1990
        %v1992 = vrot.slane %v1853, 1
        %v1993 = vrot.slane %v1849, 2
        %v1994 = vor.u32 %v1992, %v1993
        %v1995 = vsel %vm963, %v1990, %v1994
        %v1996 = vrot.slane %v1860, 1
        %v1997 = vrot.slane %v1856, 2
        %v1998 = vor.u32 %v1996, %v1997
        %v1999 = vsel %vm963, %v1994, %v1998
        %v2000 = vshrl.u32 %v1835, 16
        %v2002 = vrot.slane %v2000, 1
        %v2003 = vrot.slane %v1864, 2
        %v2004 = vor.u32 %v2002, %v2003
        %v2005 = vsel %vm963, %v1998, %v2004
        %v2007 = vsel %vm808, %v1991, 0
        %v2010 = vsel %vm808, %v1995, 0
        %v2013 = vsel %vm808, %v1999, 0
        %v2016 = vsel %vm808, %v2005, 0
        %v2019 = vand.u32 %v1984, %v824
        %2021 = vmatpush.bf16.msra.mxu0 0
        %2022 = vmatpush.bf16.msra.mxu0 0
        %2023 = vmatpush.bf16.msra.mxu0 0
        %2024 = vmatpush.bf16.msra.mxu0 0
        %2025 = vmatpush.bf16.msra.mxu0 0
        %2026 = vmatpush.bf16.msra.mxu0 0
        %2027 = vmatpush.bf16.msra.mxu0 0
        %2028 = vmatpush.bf16.msra.mxu0 %v2019
        %2029 = vmatmul.bf16.gmra.mxu0 %v2007
        %v2030 = vpop.f32.mrf.mxu0
        %v2031 = vadd.f32 0.0, %v2030
        %v2032 = vpop.f32.mrf.mxu0
        %v2033 = vadd.f32 0.0, %v2032
        %2034 = vmatmul.bf16.gmra.mxu0 %v2010
        %v2035 = vpop.f32.mrf.mxu0
        %v2036 = vadd.f32 0.0, %v2035
        %v2037 = vpop.f32.mrf.mxu0
        %v2038 = vadd.f32 0.0, %v2037
        %2039 = vmatmul.bf16.gmra.mxu0 %v2013
        %v2040 = vpop.f32.mrf.mxu0
        %v2041 = vadd.f32 0.0, %v2040
        %v2042 = vpop.f32.mrf.mxu0
        %v2043 = vadd.f32 0.0, %v2042
        %2044 = vmatmul.bf16.gmra.mxu0 %v2016
        %v2045 = vpop.f32.mrf.mxu0
        %v2046 = vadd.f32 0.0, %v2045
        %v2047 = vpop.f32.mrf.mxu0
        %v2048 = vadd.f32 0.0, %v2047
        %2049 = vdwg.mxu0
        %v2050 = vadd.f32 %v1975, %v2031
        %v2051 = vadd.f32 %v1976, %v2033
        %v2052 = vadd.f32 %v1977, %v2036
        %v2053 = vadd.f32 %v1978, %v2038
        %v2054 = vadd.f32 %v1979, %v2041
        %v2055 = vadd.f32 %v1980, %v2043
        %v2056 = vadd.f32 %v1981, %v2046
        %v2057 = vadd.f32 %v1982, %v2048
        %s2058 = scalar_lea.vmem %s728, 36
        %v2059 = vld [vmem:[%s2058] sm:$0x3]
        %v2060 = vrot.slane %v1775, 2
        %v2061 = vrot.slane %v1776, 2
        %v2062 = vsel %vm1039, %v2060, %v2061
        %v2063 = vrot.slane %v1777, 2
        %v2064 = vsel %vm1039, %v2061, %v2063
        %v2065 = vrot.slane %v1778, 2
        %v2066 = vsel %vm1039, %v2063, %v2065
        %v2067 = vrot.slane %v1835, 2
        %v2068 = vsel %vm1039, %v2065, %v2067
        %v2070 = vsel %vm808, %v2062, 0
        %v2073 = vsel %vm808, %v2064, 0
        %v2076 = vsel %vm808, %v2066, 0
        %v2079 = vsel %vm808, %v2068, 0
        %v2082 = vand.u32 %v2059, %v824
        %2084 = vmatpush.bf16.msra.mxu0 0
        %2085 = vmatpush.bf16.msra.mxu0 0
        %2086 = vmatpush.bf16.msra.mxu0 0
        %2087 = vmatpush.bf16.msra.mxu0 0
        %2088 = vmatpush.bf16.msra.mxu0 0
        %2089 = vmatpush.bf16.msra.mxu0 0
        %2090 = vmatpush.bf16.msra.mxu0 0
        %2091 = vmatpush.bf16.msra.mxu0 %v2082
        %2092 = vmatmul.bf16.gmra.mxu0 %v2070
        %v2093 = vpop.f32.mrf.mxu0
        %v2094 = vadd.f32 0.0, %v2093
        %v2095 = vpop.f32.mrf.mxu0
        %v2096 = vadd.f32 0.0, %v2095
        %2097 = vmatmul.bf16.gmra.mxu0 %v2073
        %v2098 = vpop.f32.mrf.mxu0
        %v2099 = vadd.f32 0.0, %v2098
        %v2100 = vpop.f32.mrf.mxu0
        %v2101 = vadd.f32 0.0, %v2100
        %2102 = vmatmul.bf16.gmra.mxu0 %v2076
        %v2103 = vpop.f32.mrf.mxu0
        %v2104 = vadd.f32 0.0, %v2103
        %v2105 = vpop.f32.mrf.mxu0
        %v2106 = vadd.f32 0.0, %v2105
        %2107 = vmatmul.bf16.gmra.mxu0 %v2079
        %v2108 = vpop.f32.mrf.mxu0
        %v2109 = vadd.f32 0.0, %v2108
        %v2110 = vpop.f32.mrf.mxu0
        %v2111 = vadd.f32 0.0, %v2110
        %2112 = vdwg.mxu0
        %v2113 = vadd.f32 %v2050, %v2094
        %v2114 = vadd.f32 %v2051, %v2096
        %v2115 = vadd.f32 %v2052, %v2099
        %v2116 = vadd.f32 %v2053, %v2101
        %v2117 = vadd.f32 %v2054, %v2104
        %v2118 = vadd.f32 %v2055, %v2106
        %v2119 = vadd.f32 %v2056, %v2109
        %v2120 = vadd.f32 %v2057, %v2111
        %s2121 = scalar_lea.vmem %s728, 38
        %v2122 = vld [vmem:[%s2121] sm:$0x3]
        %v2123 = vrot.slane %v1836, 2
        %v2124 = vrot.slane %v1838, 3
        %v2125 = vor.u32 %v2123, %v2124
        %v2126 = vrot.slane %v1846, 2
        %v2127 = vrot.slane %v1842, 3
        %v2128 = vor.u32 %v2126, %v2127
        %v2129 = vsel %vm1103, %v2125, %v2128
        %v2130 = vrot.slane %v1853, 2
        %v2131 = vrot.slane %v1849, 3
        %v2132 = vor.u32 %v2130, %v2131
        %v2133 = vsel %vm1103, %v2128, %v2132
        %v2134 = vrot.slane %v1860, 2
        %v2135 = vrot.slane %v1856, 3
        %v2136 = vor.u32 %v2134, %v2135
        %v2137 = vsel %vm1103, %v2132, %v2136
        %v2138 = vrot.slane %v2000, 2
        %v2139 = vrot.slane %v1864, 3
        %v2140 = vor.u32 %v2138, %v2139
        %v2141 = vsel %vm1103, %v2136, %v2140
        %v2143 = vsel %vm808, %v2129, 0
        %v2146 = vsel %vm808, %v2133, 0
        %v2149 = vsel %vm808, %v2137, 0
        %v2152 = vsel %vm808, %v2141, 0
        %v2155 = vand.u32 %v2122, %v824
        %2157 = vmatpush.bf16.msra.mxu0 0
        %2158 = vmatpush.bf16.msra.mxu0 0
        %2159 = vmatpush.bf16.msra.mxu0 0
        %2160 = vmatpush.bf16.msra.mxu0 0
        %2161 = vmatpush.bf16.msra.mxu0 0
        %2162 = vmatpush.bf16.msra.mxu0 0
        %2163 = vmatpush.bf16.msra.mxu0 0
        %2164 = vmatpush.bf16.msra.mxu0 %v2155
        %2165 = vmatmul.bf16.gmra.mxu0 %v2143
        %v2166 = vpop.f32.mrf.mxu0
        %v2167 = vadd.f32 0.0, %v2166
        %v2168 = vpop.f32.mrf.mxu0
        %v2169 = vadd.f32 0.0, %v2168
        %2170 = vmatmul.bf16.gmra.mxu0 %v2146
        %v2171 = vpop.f32.mrf.mxu0
        %v2172 = vadd.f32 0.0, %v2171
        %v2173 = vpop.f32.mrf.mxu0
        %v2174 = vadd.f32 0.0, %v2173
        %2175 = vmatmul.bf16.gmra.mxu0 %v2149
        %v2176 = vpop.f32.mrf.mxu0
        %v2177 = vadd.f32 0.0, %v2176
        %v2178 = vpop.f32.mrf.mxu0
        %v2179 = vadd.f32 0.0, %v2178
        %2180 = vmatmul.bf16.gmra.mxu0 %v2152
        %v2181 = vpop.f32.mrf.mxu0
        %v2182 = vadd.f32 0.0, %v2181
        %v2183 = vpop.f32.mrf.mxu0
        %v2184 = vadd.f32 0.0, %v2183
        %2185 = vdwg.mxu0
        %v2186 = vadd.f32 %v2113, %v2167
        %v2187 = vadd.f32 %v2114, %v2169
        %v2188 = vadd.f32 %v2115, %v2172
        %v2189 = vadd.f32 %v2116, %v2174
        %v2190 = vadd.f32 %v2117, %v2177
        %v2191 = vadd.f32 %v2118, %v2179
        %v2192 = vadd.f32 %v2119, %v2182
        %v2193 = vadd.f32 %v2120, %v2184
        %s2194 = scalar_lea.vmem %s728, 40
        %v2195 = vld [vmem:[%s2194] sm:$0x3]
        %v2196 = vrot.slane %v1775, 3
        %v2197 = vrot.slane %v1776, 3
        %v2198 = vsel %vm1177, %v2196, %v2197
        %v2199 = vrot.slane %v1777, 3
        %v2200 = vsel %vm1177, %v2197, %v2199
        %v2201 = vrot.slane %v1778, 3
        %v2202 = vsel %vm1177, %v2199, %v2201
        %v2203 = vrot.slane %v1835, 3
        %v2204 = vsel %vm1177, %v2201, %v2203
        %v2206 = vsel %vm808, %v2198, 0
        %v2209 = vsel %vm808, %v2200, 0
        %v2212 = vsel %vm808, %v2202, 0
        %v2215 = vsel %vm808, %v2204, 0
        %v2218 = vand.u32 %v2195, %v824
        %2220 = vmatpush.bf16.msra.mxu0 0
        %2221 = vmatpush.bf16.msra.mxu0 0
        %2222 = vmatpush.bf16.msra.mxu0 0
        %2223 = vmatpush.bf16.msra.mxu0 0
        %2224 = vmatpush.bf16.msra.mxu0 0
        %2225 = vmatpush.bf16.msra.mxu0 0
        %2226 = vmatpush.bf16.msra.mxu0 0
        %2227 = vmatpush.bf16.msra.mxu0 %v2218
        %2228 = vmatmul.bf16.gmra.mxu0 %v2206
        %v2229 = vpop.f32.mrf.mxu0
        %v2230 = vadd.f32 0.0, %v2229
        %v2231 = vpop.f32.mrf.mxu0
        %v2232 = vadd.f32 0.0, %v2231
        %2233 = vmatmul.bf16.gmra.mxu0 %v2209
        %v2234 = vpop.f32.mrf.mxu0
        %v2235 = vadd.f32 0.0, %v2234
        %v2236 = vpop.f32.mrf.mxu0
        %v2237 = vadd.f32 0.0, %v2236
        %2238 = vmatmul.bf16.gmra.mxu0 %v2212
        %v2239 = vpop.f32.mrf.mxu0
        %v2240 = vadd.f32 0.0, %v2239
        %v2241 = vpop.f32.mrf.mxu0
        %v2242 = vadd.f32 0.0, %v2241
        %2243 = vmatmul.bf16.gmra.mxu0 %v2215
        %v2244 = vpop.f32.mrf.mxu0
        %v2245 = vadd.f32 0.0, %v2244
        %v2246 = vpop.f32.mrf.mxu0
        %v2247 = vadd.f32 0.0, %v2246
        %2248 = vdwg.mxu0
        %v2249 = vadd.f32 %v2186, %v2230
        %v2250 = vadd.f32 %v2187, %v2232
        %v2251 = vadd.f32 %v2188, %v2235
        %v2252 = vadd.f32 %v2189, %v2237
        %v2253 = vadd.f32 %v2190, %v2240
        %v2254 = vadd.f32 %v2191, %v2242
        %v2255 = vadd.f32 %v2192, %v2245
        %v2256 = vadd.f32 %v2193, %v2247
        %v2257 = vld [vmem:[%s681] sm:$0xf]
        %v2258 = vld [vmem:[%s681 + $0x4] sm:$0xf]
        %v2259 = vld [vmem:[%s681 + $0x8] sm:$0xf]
        %v2260 = vld [vmem:[%s681 + $0xc] sm:$0xf]
        %v2261 = vld [vmem:[%s681 + $0x10] sm:$0xf]
        %v2262 = vld [vmem:[%s681 + $0x14] sm:$0xf]
        %v2263 = vld [vmem:[%s681 + $0x18] sm:$0xf]
        %v2264 = vld [vmem:[%s681 + $0x1c] sm:$0xf]
        %v2265 = vld [vmem:[%s681 + $0x20] sm:$0x7]
        %s2266 = scalar_lea.vmem %s728, 42
        %v2267 = vld [vmem:[%s2266] sm:$0x3]
        %v2276 = vunpack.c.l.b16 %v2257
        %v2277 = vunpack.c.l.b16 %v2258
        %v2278 = vunpack.c.l.b16 %v2259
        %v2279 = vunpack.c.l.b16 %v2260
        %v2280 = vunpack.c.l.b16 %v2261
        %v2281 = vunpack.c.l.b16 %v2262
        %v2282 = vunpack.c.l.b16 %v2263
        %v2283 = vunpack.c.l.b16 %v2264
        %v2284 = vpack.c.b16 %v2277, %v2276
        %v2285 = vpack.c.b16 %v2279, %v2278
        %v2286 = vpack.c.b16 %v2281, %v2280
        %v2287 = vpack.c.b16 %v2283, %v2282
        %v2289 = vsel %vm808, %v2284, 0
        %v2292 = vsel %vm808, %v2285, 0
        %v2295 = vsel %vm808, %v2286, 0
        %v2298 = vsel %vm808, %v2287, 0
        %v2301 = vand.u32 %v2267, %v824
        %2303 = vmatpush.bf16.msra.mxu0 0
        %2304 = vmatpush.bf16.msra.mxu0 0
        %2305 = vmatpush.bf16.msra.mxu0 0
        %2306 = vmatpush.bf16.msra.mxu0 0
        %2307 = vmatpush.bf16.msra.mxu0 0
        %2308 = vmatpush.bf16.msra.mxu0 0
        %2309 = vmatpush.bf16.msra.mxu0 0
        %2310 = vmatpush.bf16.msra.mxu0 %v2301
        %2311 = vmatmul.bf16.gmra.mxu0 %v2289
        %v2312 = vpop.f32.mrf.mxu0
        %v2313 = vadd.f32 0.0, %v2312
        %v2314 = vpop.f32.mrf.mxu0
        %v2315 = vadd.f32 0.0, %v2314
        %2316 = vmatmul.bf16.gmra.mxu0 %v2292
        %v2317 = vpop.f32.mrf.mxu0
        %v2318 = vadd.f32 0.0, %v2317
        %v2319 = vpop.f32.mrf.mxu0
        %v2320 = vadd.f32 0.0, %v2319
        %2321 = vmatmul.bf16.gmra.mxu0 %v2295
        %v2322 = vpop.f32.mrf.mxu0
        %v2323 = vadd.f32 0.0, %v2322
        %v2324 = vpop.f32.mrf.mxu0
        %v2325 = vadd.f32 0.0, %v2324
        %2326 = vmatmul.bf16.gmra.mxu0 %v2298
        %v2327 = vpop.f32.mrf.mxu0
        %v2328 = vadd.f32 0.0, %v2327
        %v2329 = vpop.f32.mrf.mxu0
        %v2330 = vadd.f32 0.0, %v2329
        %2331 = vdwg.mxu0
        %v2332 = vadd.f32 %v2249, %v2313
        %v2333 = vadd.f32 %v2250, %v2315
        %v2334 = vadd.f32 %v2251, %v2318
        %v2335 = vadd.f32 %v2252, %v2320
        %v2336 = vadd.f32 %v2253, %v2323
        %v2337 = vadd.f32 %v2254, %v2325
        %v2338 = vadd.f32 %v2255, %v2328
        %v2339 = vadd.f32 %v2256, %v2330
        %s2340 = scalar_lea.vmem %s728, 44
        %v2341 = vld [vmem:[%s2340] sm:$0x3]
        %v2343 = vunpack.c.l.b16 %v2265
        %v2344 = vpack.c.b16 %v2343, %v2343
        %v2345 = vshrl.u32 %v2284, 16
        %v2347 = vshll.u32 %v2284, 16
        %v2349 = vrot.slane %v2347, 1
        %v2350 = vor.u32 %v2345, %v2349
        %v2351 = vshll.u32 %v2285, 16
        %v2353 = vrot.slane %v2351, 1
        %v2354 = vsel %vm771, %v2350, %v2353
        %v2355 = vshrl.u32 %v2285, 16
        %v2357 = vor.u32 %v2355, %v2353
        %v2358 = vshll.u32 %v2286, 16
        %v2360 = vrot.slane %v2358, 1
        %v2361 = vsel %vm771, %v2357, %v2360
        %v2362 = vshrl.u32 %v2286, 16
        %v2364 = vor.u32 %v2362, %v2360
        %v2365 = vshll.u32 %v2287, 16
        %v2367 = vrot.slane %v2365, 1
        %v2368 = vsel %vm771, %v2364, %v2367
        %v2369 = vshrl.u32 %v2287, 16
        %v2371 = vor.u32 %v2369, %v2367
        %v2373 = vshll.u32 %v2344, 16
        %v2375 = vrot.slane %v2373, 1
        %v2376 = vsel %vm771, %v2371, %v2375
        %v2378 = vsel %vm808, %v2354, 0
        %v2381 = vsel %vm808, %v2361, 0
        %v2384 = vsel %vm808, %v2368, 0
        %v2387 = vsel %vm808, %v2376, 0
        %v2390 = vand.u32 %v2341, %v824
        %2392 = vmatpush.bf16.msra.mxu0 0
        %2393 = vmatpush.bf16.msra.mxu0 0
        %2394 = vmatpush.bf16.msra.mxu0 0
        %2395 = vmatpush.bf16.msra.mxu0 0
        %2396 = vmatpush.bf16.msra.mxu0 0
        %2397 = vmatpush.bf16.msra.mxu0 0
        %2398 = vmatpush.bf16.msra.mxu0 0
        %2399 = vmatpush.bf16.msra.mxu0 %v2390
        %2400 = vmatmul.bf16.gmra.mxu0 %v2378
        %v2401 = vpop.f32.mrf.mxu0
        %v2402 = vadd.f32 0.0, %v2401
        %v2403 = vpop.f32.mrf.mxu0
        %v2404 = vadd.f32 0.0, %v2403
        %2405 = vmatmul.bf16.gmra.mxu0 %v2381
        %v2406 = vpop.f32.mrf.mxu0
        %v2407 = vadd.f32 0.0, %v2406
        %v2408 = vpop.f32.mrf.mxu0
        %v2409 = vadd.f32 0.0, %v2408
        %2410 = vmatmul.bf16.gmra.mxu0 %v2384
        %v2411 = vpop.f32.mrf.mxu0
        %v2412 = vadd.f32 0.0, %v2411
        %v2413 = vpop.f32.mrf.mxu0
        %v2414 = vadd.f32 0.0, %v2413
        %2415 = vmatmul.bf16.gmra.mxu0 %v2387
        %v2416 = vpop.f32.mrf.mxu0
        %v2417 = vadd.f32 0.0, %v2416
        %v2418 = vpop.f32.mrf.mxu0
        %v2419 = vadd.f32 0.0, %v2418
        %2420 = vdwg.mxu0
        %v2421 = vadd.f32 %v2332, %v2402
        %v2422 = vadd.f32 %v2333, %v2404
        %v2423 = vadd.f32 %v2334, %v2407
        %v2424 = vadd.f32 %v2335, %v2409
        %v2425 = vadd.f32 %v2336, %v2412
        %v2426 = vadd.f32 %v2337, %v2414
        %v2427 = vadd.f32 %v2338, %v2417
        %v2428 = vadd.f32 %v2339, %v2419
        %s2429 = scalar_lea.vmem %s728, 46
        %v2430 = vld [vmem:[%s2429] sm:$0x3]
        %v2431 = vrot.slane %v2284, 1
        %v2432 = vrot.slane %v2285, 1
        %v2433 = vsel %vm899, %v2431, %v2432
        %v2434 = vrot.slane %v2286, 1
        %v2435 = vsel %vm899, %v2432, %v2434
        %v2436 = vrot.slane %v2287, 1
        %v2437 = vsel %vm899, %v2434, %v2436
        %v2438 = vrot.slane %v2344, 1
        %v2439 = vsel %vm899, %v2436, %v2438
        %v2441 = vsel %vm808, %v2433, 0
        %v2444 = vsel %vm808, %v2435, 0
        %v2447 = vsel %vm808, %v2437, 0
        %v2450 = vsel %vm808, %v2439, 0
        %v2453 = vand.u32 %v2430, %v824
        %2455 = vmatpush.bf16.msra.mxu0 0
        %2456 = vmatpush.bf16.msra.mxu0 0
        %2457 = vmatpush.bf16.msra.mxu0 0
        %2458 = vmatpush.bf16.msra.mxu0 0
        %2459 = vmatpush.bf16.msra.mxu0 0
        %2460 = vmatpush.bf16.msra.mxu0 0
        %2461 = vmatpush.bf16.msra.mxu0 0
        %2462 = vmatpush.bf16.msra.mxu0 %v2453
        %2463 = vmatmul.bf16.gmra.mxu0 %v2441
        %v2464 = vpop.f32.mrf.mxu0
        %v2465 = vadd.f32 0.0, %v2464
        %v2466 = vpop.f32.mrf.mxu0
        %v2467 = vadd.f32 0.0, %v2466
        %2468 = vmatmul.bf16.gmra.mxu0 %v2444
        %v2469 = vpop.f32.mrf.mxu0
        %v2470 = vadd.f32 0.0, %v2469
        %v2471 = vpop.f32.mrf.mxu0
        %v2472 = vadd.f32 0.0, %v2471
        %2473 = vmatmul.bf16.gmra.mxu0 %v2447
        %v2474 = vpop.f32.mrf.mxu0
        %v2475 = vadd.f32 0.0, %v2474
        %v2476 = vpop.f32.mrf.mxu0
        %v2477 = vadd.f32 0.0, %v2476
        %2478 = vmatmul.bf16.gmra.mxu0 %v2450
        %v2479 = vpop.f32.mrf.mxu0
        %v2480 = vadd.f32 0.0, %v2479
        %v2481 = vpop.f32.mrf.mxu0
        %v2482 = vadd.f32 0.0, %v2481
        %2483 = vdwg.mxu0
        %v2484 = vadd.f32 %v2421, %v2465
        %v2485 = vadd.f32 %v2422, %v2467
        %v2486 = vadd.f32 %v2423, %v2470
        %v2487 = vadd.f32 %v2424, %v2472
        %v2488 = vadd.f32 %v2425, %v2475
        %v2489 = vadd.f32 %v2426, %v2477
        %v2490 = vadd.f32 %v2427, %v2480
        %v2491 = vadd.f32 %v2428, %v2482
        %s2492 = scalar_lea.vmem %s728, 48
        %v2493 = vld [vmem:[%s2492] sm:$0x3]
        %v2494 = vrot.slane %v2345, 1
        %v2495 = vrot.slane %v2347, 2
        %v2496 = vor.u32 %v2494, %v2495
        %v2497 = vrot.slane %v2355, 1
        %v2498 = vrot.slane %v2351, 2
        %v2499 = vor.u32 %v2497, %v2498
        %v2500 = vsel %vm963, %v2496, %v2499
        %v2501 = vrot.slane %v2362, 1
        %v2502 = vrot.slane %v2358, 2
        %v2503 = vor.u32 %v2501, %v2502
        %v2504 = vsel %vm963, %v2499, %v2503
        %v2505 = vrot.slane %v2369, 1
        %v2506 = vrot.slane %v2365, 2
        %v2507 = vor.u32 %v2505, %v2506
        %v2508 = vsel %vm963, %v2503, %v2507
        %v2509 = vshrl.u32 %v2344, 16
        %v2511 = vrot.slane %v2509, 1
        %v2512 = vrot.slane %v2373, 2
        %v2513 = vor.u32 %v2511, %v2512
        %v2514 = vsel %vm963, %v2507, %v2513
        %v2516 = vsel %vm808, %v2500, 0
        %v2519 = vsel %vm808, %v2504, 0
        %v2522 = vsel %vm808, %v2508, 0
        %v2525 = vsel %vm808, %v2514, 0
        %v2528 = vand.u32 %v2493, %v824
        %2530 = vmatpush.bf16.msra.mxu0 0
        %2531 = vmatpush.bf16.msra.mxu0 0
        %2532 = vmatpush.bf16.msra.mxu0 0
        %2533 = vmatpush.bf16.msra.mxu0 0
        %2534 = vmatpush.bf16.msra.mxu0 0
        %2535 = vmatpush.bf16.msra.mxu0 0
        %2536 = vmatpush.bf16.msra.mxu0 0
        %2537 = vmatpush.bf16.msra.mxu0 %v2528
        %2538 = vmatmul.bf16.gmra.mxu0 %v2516
        %v2539 = vpop.f32.mrf.mxu0
        %v2540 = vadd.f32 0.0, %v2539
        %v2541 = vpop.f32.mrf.mxu0
        %v2542 = vadd.f32 0.0, %v2541
        %2543 = vmatmul.bf16.gmra.mxu0 %v2519
        %v2544 = vpop.f32.mrf.mxu0
        %v2545 = vadd.f32 0.0, %v2544
        %v2546 = vpop.f32.mrf.mxu0
        %v2547 = vadd.f32 0.0, %v2546
        %2548 = vmatmul.bf16.gmra.mxu0 %v2522
        %v2549 = vpop.f32.mrf.mxu0
        %v2550 = vadd.f32 0.0, %v2549
        %v2551 = vpop.f32.mrf.mxu0
        %v2552 = vadd.f32 0.0, %v2551
        %2553 = vmatmul.bf16.gmra.mxu0 %v2525
        %v2554 = vpop.f32.mrf.mxu0
        %v2555 = vadd.f32 0.0, %v2554
        %v2556 = vpop.f32.mrf.mxu0
        %v2557 = vadd.f32 0.0, %v2556
        %2558 = vdwg.mxu0
        %v2559 = vadd.f32 %v2484, %v2540
        %v2560 = vadd.f32 %v2485, %v2542
        %v2561 = vadd.f32 %v2486, %v2545
        %v2562 = vadd.f32 %v2487, %v2547
        %v2563 = vadd.f32 %v2488, %v2550
        %v2564 = vadd.f32 %v2489, %v2552
        %v2565 = vadd.f32 %v2490, %v2555
        %v2566 = vadd.f32 %v2491, %v2557
        %s2567 = scalar_lea.vmem %s728, 50
        %v2568 = vld [vmem:[%s2567] sm:$0x3]
        %v2569 = vrot.slane %v2284, 2
        %v2570 = vrot.slane %v2285, 2
        %v2571 = vsel %vm1039, %v2569, %v2570
        %v2572 = vrot.slane %v2286, 2
        %v2573 = vsel %vm1039, %v2570, %v2572
        %v2574 = vrot.slane %v2287, 2
        %v2575 = vsel %vm1039, %v2572, %v2574
        %v2576 = vrot.slane %v2344, 2
        %v2577 = vsel %vm1039, %v2574, %v2576
        %v2579 = vsel %vm808, %v2571, 0
        %v2582 = vsel %vm808, %v2573, 0
        %v2585 = vsel %vm808, %v2575, 0
        %v2588 = vsel %vm808, %v2577, 0
        %v2591 = vand.u32 %v2568, %v824
        %2593 = vmatpush.bf16.msra.mxu0 0
        %2594 = vmatpush.bf16.msra.mxu0 0
        %2595 = vmatpush.bf16.msra.mxu0 0
        %2596 = vmatpush.bf16.msra.mxu0 0
        %2597 = vmatpush.bf16.msra.mxu0 0
        %2598 = vmatpush.bf16.msra.mxu0 0
        %2599 = vmatpush.bf16.msra.mxu0 0
        %2600 = vmatpush.bf16.msra.mxu0 %v2591
        %2601 = vmatmul.bf16.gmra.mxu0 %v2579
        %v2602 = vpop.f32.mrf.mxu0
        %v2603 = vadd.f32 0.0, %v2602
        %v2604 = vpop.f32.mrf.mxu0
        %v2605 = vadd.f32 0.0, %v2604
        %2606 = vmatmul.bf16.gmra.mxu0 %v2582
        %v2607 = vpop.f32.mrf.mxu0
        %v2608 = vadd.f32 0.0, %v2607
        %v2609 = vpop.f32.mrf.mxu0
        %v2610 = vadd.f32 0.0, %v2609
        %2611 = vmatmul.bf16.gmra.mxu0 %v2585
        %v2612 = vpop.f32.mrf.mxu0
        %v2613 = vadd.f32 0.0, %v2612
        %v2614 = vpop.f32.mrf.mxu0
        %v2615 = vadd.f32 0.0, %v2614
        %2616 = vmatmul.bf16.gmra.mxu0 %v2588
        %v2617 = vpop.f32.mrf.mxu0
        %v2618 = vadd.f32 0.0, %v2617
        %v2619 = vpop.f32.mrf.mxu0
        %v2620 = vadd.f32 0.0, %v2619
        %2621 = vdwg.mxu0
        %v2622 = vadd.f32 %v2559, %v2603
        %v2623 = vadd.f32 %v2560, %v2605
        %v2624 = vadd.f32 %v2561, %v2608
        %v2625 = vadd.f32 %v2562, %v2610
        %v2626 = vadd.f32 %v2563, %v2613
        %v2627 = vadd.f32 %v2564, %v2615
        %v2628 = vadd.f32 %v2565, %v2618
        %v2629 = vadd.f32 %v2566, %v2620
        %s2630 = scalar_lea.vmem %s728, 52
        %v2631 = vld [vmem:[%s2630] sm:$0x3]
        %v2632 = vrot.slane %v2345, 2
        %v2633 = vrot.slane %v2347, 3
        %v2634 = vor.u32 %v2632, %v2633
        %v2635 = vrot.slane %v2355, 2
        %v2636 = vrot.slane %v2351, 3
        %v2637 = vor.u32 %v2635, %v2636
        %v2638 = vsel %vm1103, %v2634, %v2637
        %v2639 = vrot.slane %v2362, 2
        %v2640 = vrot.slane %v2358, 3
        %v2641 = vor.u32 %v2639, %v2640
        %v2642 = vsel %vm1103, %v2637, %v2641
        %v2643 = vrot.slane %v2369, 2
        %v2644 = vrot.slane %v2365, 3
        %v2645 = vor.u32 %v2643, %v2644
        %v2646 = vsel %vm1103, %v2641, %v2645
        %v2647 = vrot.slane %v2509, 2
        %v2648 = vrot.slane %v2373, 3
        %v2649 = vor.u32 %v2647, %v2648
        %v2650 = vsel %vm1103, %v2645, %v2649
        %v2652 = vsel %vm808, %v2638, 0
        %v2655 = vsel %vm808, %v2642, 0
        %v2658 = vsel %vm808, %v2646, 0
        %v2661 = vsel %vm808, %v2650, 0
        %v2664 = vand.u32 %v2631, %v824
        %2666 = vmatpush.bf16.msra.mxu0 0
        %2667 = vmatpush.bf16.msra.mxu0 0
        %2668 = vmatpush.bf16.msra.mxu0 0
        %2669 = vmatpush.bf16.msra.mxu0 0
        %2670 = vmatpush.bf16.msra.mxu0 0
        %2671 = vmatpush.bf16.msra.mxu0 0
        %2672 = vmatpush.bf16.msra.mxu0 0
        %2673 = vmatpush.bf16.msra.mxu0 %v2664
        %2674 = vmatmul.bf16.gmra.mxu0 %v2652
        %v2675 = vpop.f32.mrf.mxu0
        %v2676 = vadd.f32 0.0, %v2675
        %v2677 = vpop.f32.mrf.mxu0
        %v2678 = vadd.f32 0.0, %v2677
        %2679 = vmatmul.bf16.gmra.mxu0 %v2655
        %v2680 = vpop.f32.mrf.mxu0
        %v2681 = vadd.f32 0.0, %v2680
        %v2682 = vpop.f32.mrf.mxu0
        %v2683 = vadd.f32 0.0, %v2682
        %2684 = vmatmul.bf16.gmra.mxu0 %v2658
        %v2685 = vpop.f32.mrf.mxu0
        %v2686 = vadd.f32 0.0, %v2685
        %v2687 = vpop.f32.mrf.mxu0
        %v2688 = vadd.f32 0.0, %v2687
        %2689 = vmatmul.bf16.gmra.mxu0 %v2661
        %v2690 = vpop.f32.mrf.mxu0
        %v2691 = vadd.f32 0.0, %v2690
        %v2692 = vpop.f32.mrf.mxu0
        %v2693 = vadd.f32 0.0, %v2692
        %2694 = vdwg.mxu0
        %v2695 = vadd.f32 %v2622, %v2676
        %v2696 = vadd.f32 %v2623, %v2678
        %v2697 = vadd.f32 %v2624, %v2681
        %v2698 = vadd.f32 %v2625, %v2683
        %v2699 = vadd.f32 %v2626, %v2686
        %v2700 = vadd.f32 %v2627, %v2688
        %v2701 = vadd.f32 %v2628, %v2691
        %v2702 = vadd.f32 %v2629, %v2693
        %s2703 = scalar_lea.vmem %s728, 54
        %v2704 = vld [vmem:[%s2703] sm:$0x3]
        %v2705 = vrot.slane %v2284, 3
        %v2706 = vrot.slane %v2285, 3
        %v2707 = vsel %vm1177, %v2705, %v2706
        %v2708 = vrot.slane %v2286, 3
        %v2709 = vsel %vm1177, %v2706, %v2708
        %v2710 = vrot.slane %v2287, 3
        %v2711 = vsel %vm1177, %v2708, %v2710
        %v2712 = vrot.slane %v2344, 3
        %v2713 = vsel %vm1177, %v2710, %v2712
        %v2715 = vsel %vm808, %v2707, 0
        %v2718 = vsel %vm808, %v2709, 0
        %v2721 = vsel %vm808, %v2711, 0
        %v2724 = vsel %vm808, %v2713, 0
        %v2727 = vand.u32 %v2704, %v824
        %2729 = vmatpush.bf16.msra.mxu0 0
        %2730 = vmatpush.bf16.msra.mxu0 0
        %2731 = vmatpush.bf16.msra.mxu0 0
        %2732 = vmatpush.bf16.msra.mxu0 0
        %2733 = vmatpush.bf16.msra.mxu0 0
        %2734 = vmatpush.bf16.msra.mxu0 0
        %2735 = vmatpush.bf16.msra.mxu0 0
        %2736 = vmatpush.bf16.msra.mxu0 %v2727
        %2737 = vmatmul.bf16.gmra.mxu0 %v2715
        %v2738 = vpop.f32.mrf.mxu0
        %v2739 = vadd.f32 0.0, %v2738
        %v2740 = vpop.f32.mrf.mxu0
        %v2741 = vadd.f32 0.0, %v2740
        %2742 = vmatmul.bf16.gmra.mxu0 %v2718
        %v2743 = vpop.f32.mrf.mxu0
        %v2744 = vadd.f32 0.0, %v2743
        %v2745 = vpop.f32.mrf.mxu0
        %v2746 = vadd.f32 0.0, %v2745
        %2747 = vmatmul.bf16.gmra.mxu0 %v2721
        %v2748 = vpop.f32.mrf.mxu0
        %v2749 = vadd.f32 0.0, %v2748
        %v2750 = vpop.f32.mrf.mxu0
        %v2751 = vadd.f32 0.0, %v2750
        %2752 = vmatmul.bf16.gmra.mxu0 %v2724
        %v2753 = vpop.f32.mrf.mxu0
        %v2754 = vadd.f32 0.0, %v2753
        %v2755 = vpop.f32.mrf.mxu0
        %v2756 = vadd.f32 0.0, %v2755
        %2757 = vdwg.mxu0
        %v2758 = vadd.f32 %v2695, %v2739
        %v2759 = vadd.f32 %v2696, %v2741
        %v2760 = vadd.f32 %v2697, %v2744
        %v2761 = vadd.f32 %v2698, %v2746
        %v2762 = vadd.f32 %v2699, %v2749
        %v2763 = vadd.f32 %v2700, %v2751
        %v2764 = vadd.f32 %v2701, %v2754
        %v2765 = vadd.f32 %v2702, %v2756
        %v2766 = vld [vmem:[%s694] sm:$0xf]
        %v2767 = vld [vmem:[%s694 + $0x4] sm:$0xf]
        %v2768 = vld [vmem:[%s694 + $0x8] sm:$0xf]
        %v2769 = vld [vmem:[%s694 + $0xc] sm:$0xf]
        %v2770 = vld [vmem:[%s694 + $0x10] sm:$0xf]
        %v2771 = vld [vmem:[%s694 + $0x14] sm:$0xf]
        %v2772 = vld [vmem:[%s694 + $0x18] sm:$0xf]
        %v2773 = vld [vmem:[%s694 + $0x1c] sm:$0xf]
        %v2774 = vld [vmem:[%s694 + $0x20] sm:$0x7]
        %s2775 = scalar_lea.vmem %s728, 56
        %v2776 = vld [vmem:[%s2775] sm:$0x3]
        %v2785 = vunpack.c.l.b16 %v2766
        %v2786 = vunpack.c.l.b16 %v2767
        %v2787 = vunpack.c.l.b16 %v2768
        %v2788 = vunpack.c.l.b16 %v2769
        %v2789 = vunpack.c.l.b16 %v2770
        %v2790 = vunpack.c.l.b16 %v2771
        %v2791 = vunpack.c.l.b16 %v2772
        %v2792 = vunpack.c.l.b16 %v2773
        %v2793 = vpack.c.b16 %v2786, %v2785
        %v2794 = vpack.c.b16 %v2788, %v2787
        %v2795 = vpack.c.b16 %v2790, %v2789
        %v2796 = vpack.c.b16 %v2792, %v2791
        %v2798 = vsel %vm808, %v2793, 0
        %v2801 = vsel %vm808, %v2794, 0
        %v2804 = vsel %vm808, %v2795, 0
        %v2807 = vsel %vm808, %v2796, 0
        %v2810 = vand.u32 %v2776, %v824
        %2812 = vmatpush.bf16.msra.mxu0 0
        %2813 = vmatpush.bf16.msra.mxu0 0
        %2814 = vmatpush.bf16.msra.mxu0 0
        %2815 = vmatpush.bf16.msra.mxu0 0
        %2816 = vmatpush.bf16.msra.mxu0 0
        %2817 = vmatpush.bf16.msra.mxu0 0
        %2818 = vmatpush.bf16.msra.mxu0 0
        %2819 = vmatpush.bf16.msra.mxu0 %v2810
        %2820 = vmatmul.bf16.gmra.mxu0 %v2798
        %v2821 = vpop.f32.mrf.mxu0
        %v2822 = vadd.f32 0.0, %v2821
        %v2823 = vpop.f32.mrf.mxu0
        %v2824 = vadd.f32 0.0, %v2823
        %2825 = vmatmul.bf16.gmra.mxu0 %v2801
        %v2826 = vpop.f32.mrf.mxu0
        %v2827 = vadd.f32 0.0, %v2826
        %v2828 = vpop.f32.mrf.mxu0
        %v2829 = vadd.f32 0.0, %v2828
        %2830 = vmatmul.bf16.gmra.mxu0 %v2804
        %v2831 = vpop.f32.mrf.mxu0
        %v2832 = vadd.f32 0.0, %v2831
        %v2833 = vpop.f32.mrf.mxu0
        %v2834 = vadd.f32 0.0, %v2833
        %2835 = vmatmul.bf16.gmra.mxu0 %v2807
        %v2836 = vpop.f32.mrf.mxu0
        %v2837 = vadd.f32 0.0, %v2836
        %v2838 = vpop.f32.mrf.mxu0
        %v2839 = vadd.f32 0.0, %v2838
        %2840 = vdwg.mxu0
        %v2841 = vadd.f32 %v2758, %v2822
        %v2842 = vadd.f32 %v2759, %v2824
        %v2843 = vadd.f32 %v2760, %v2827
        %v2844 = vadd.f32 %v2761, %v2829
        %v2845 = vadd.f32 %v2762, %v2832
        %v2846 = vadd.f32 %v2763, %v2834
        %v2847 = vadd.f32 %v2764, %v2837
        %v2848 = vadd.f32 %v2765, %v2839
        %s2849 = scalar_lea.vmem %s728, 58
        %v2850 = vld [vmem:[%s2849] sm:$0x3]
        %v2852 = vunpack.c.l.b16 %v2774
        %v2853 = vpack.c.b16 %v2852, %v2852
        %v2854 = vshrl.u32 %v2793, 16
        %v2856 = vshll.u32 %v2793, 16
        %v2858 = vrot.slane %v2856, 1
        %v2859 = vor.u32 %v2854, %v2858
        %v2860 = vshll.u32 %v2794, 16
        %v2862 = vrot.slane %v2860, 1
        %v2863 = vsel %vm771, %v2859, %v2862
        %v2864 = vshrl.u32 %v2794, 16
        %v2866 = vor.u32 %v2864, %v2862
        %v2867 = vshll.u32 %v2795, 16
        %v2869 = vrot.slane %v2867, 1
        %v2870 = vsel %vm771, %v2866, %v2869
        %v2871 = vshrl.u32 %v2795, 16
        %v2873 = vor.u32 %v2871, %v2869
        %v2874 = vshll.u32 %v2796, 16
        %v2876 = vrot.slane %v2874, 1
        %v2877 = vsel %vm771, %v2873, %v2876
        %v2878 = vshrl.u32 %v2796, 16
        %v2880 = vor.u32 %v2878, %v2876
        %v2882 = vshll.u32 %v2853, 16
        %v2884 = vrot.slane %v2882, 1
        %v2885 = vsel %vm771, %v2880, %v2884
        %v2887 = vsel %vm808, %v2863, 0
        %v2890 = vsel %vm808, %v2870, 0
        %v2893 = vsel %vm808, %v2877, 0
        %v2896 = vsel %vm808, %v2885, 0
        %v2899 = vand.u32 %v2850, %v824
        %2901 = vmatpush.bf16.msra.mxu0 0
        %2902 = vmatpush.bf16.msra.mxu0 0
        %2903 = vmatpush.bf16.msra.mxu0 0
        %2904 = vmatpush.bf16.msra.mxu0 0
        %2905 = vmatpush.bf16.msra.mxu0 0
        %2906 = vmatpush.bf16.msra.mxu0 0
        %2907 = vmatpush.bf16.msra.mxu0 0
        %2908 = vmatpush.bf16.msra.mxu0 %v2899
        %2909 = vmatmul.bf16.gmra.mxu0 %v2887
        %v2910 = vpop.f32.mrf.mxu0
        %v2911 = vadd.f32 0.0, %v2910
        %v2912 = vpop.f32.mrf.mxu0
        %v2913 = vadd.f32 0.0, %v2912
        %2914 = vmatmul.bf16.gmra.mxu0 %v2890
        %v2915 = vpop.f32.mrf.mxu0
        %v2916 = vadd.f32 0.0, %v2915
        %v2917 = vpop.f32.mrf.mxu0
        %v2918 = vadd.f32 0.0, %v2917
        %2919 = vmatmul.bf16.gmra.mxu0 %v2893
        %v2920 = vpop.f32.mrf.mxu0
        %v2921 = vadd.f32 0.0, %v2920
        %v2922 = vpop.f32.mrf.mxu0
        %v2923 = vadd.f32 0.0, %v2922
        %2924 = vmatmul.bf16.gmra.mxu0 %v2896
        %v2925 = vpop.f32.mrf.mxu0
        %v2926 = vadd.f32 0.0, %v2925
        %v2927 = vpop.f32.mrf.mxu0
        %v2928 = vadd.f32 0.0, %v2927
        %2929 = vdwg.mxu0
        %v2930 = vadd.f32 %v2841, %v2911
        %v2931 = vadd.f32 %v2842, %v2913
        %v2932 = vadd.f32 %v2843, %v2916
        %v2933 = vadd.f32 %v2844, %v2918
        %v2934 = vadd.f32 %v2845, %v2921
        %v2935 = vadd.f32 %v2846, %v2923
        %v2936 = vadd.f32 %v2847, %v2926
        %v2937 = vadd.f32 %v2848, %v2928
        %s2938 = scalar_lea.vmem %s728, 60
        %v2939 = vld [vmem:[%s2938] sm:$0x3]
        %v2940 = vrot.slane %v2793, 1
        %v2941 = vrot.slane %v2794, 1
        %v2942 = vsel %vm899, %v2940, %v2941
        %v2943 = vrot.slane %v2795, 1
        %v2944 = vsel %vm899, %v2941, %v2943
        %v2945 = vrot.slane %v2796, 1
        %v2946 = vsel %vm899, %v2943, %v2945
        %v2947 = vrot.slane %v2853, 1
        %v2948 = vsel %vm899, %v2945, %v2947
        %v2950 = vsel %vm808, %v2942, 0
        %v2953 = vsel %vm808, %v2944, 0
        %v2956 = vsel %vm808, %v2946, 0
        %v2959 = vsel %vm808, %v2948, 0
        %v2962 = vand.u32 %v2939, %v824
        %2964 = vmatpush.bf16.msra.mxu0 0
        %2965 = vmatpush.bf16.msra.mxu0 0
        %2966 = vmatpush.bf16.msra.mxu0 0
        %2967 = vmatpush.bf16.msra.mxu0 0
        %2968 = vmatpush.bf16.msra.mxu0 0
        %2969 = vmatpush.bf16.msra.mxu0 0
        %2970 = vmatpush.bf16.msra.mxu0 0
        %2971 = vmatpush.bf16.msra.mxu0 %v2962
        %2972 = vmatmul.bf16.gmra.mxu0 %v2950
        %v2973 = vpop.f32.mrf.mxu0
        %v2974 = vadd.f32 0.0, %v2973
        %v2975 = vpop.f32.mrf.mxu0
        %v2976 = vadd.f32 0.0, %v2975
        %2977 = vmatmul.bf16.gmra.mxu0 %v2953
        %v2978 = vpop.f32.mrf.mxu0
        %v2979 = vadd.f32 0.0, %v2978
        %v2980 = vpop.f32.mrf.mxu0
        %v2981 = vadd.f32 0.0, %v2980
        %2982 = vmatmul.bf16.gmra.mxu0 %v2956
        %v2983 = vpop.f32.mrf.mxu0
        %v2984 = vadd.f32 0.0, %v2983
        %v2985 = vpop.f32.mrf.mxu0
        %v2986 = vadd.f32 0.0, %v2985
        %2987 = vmatmul.bf16.gmra.mxu0 %v2959
        %v2988 = vpop.f32.mrf.mxu0
        %v2989 = vadd.f32 0.0, %v2988
        %v2990 = vpop.f32.mrf.mxu0
        %v2991 = vadd.f32 0.0, %v2990
        %2992 = vdwg.mxu0
        %v2993 = vadd.f32 %v2930, %v2974
        %v2994 = vadd.f32 %v2931, %v2976
        %v2995 = vadd.f32 %v2932, %v2979
        %v2996 = vadd.f32 %v2933, %v2981
        %v2997 = vadd.f32 %v2934, %v2984
        %v2998 = vadd.f32 %v2935, %v2986
        %v2999 = vadd.f32 %v2936, %v2989
        %v3000 = vadd.f32 %v2937, %v2991
        %s3001 = scalar_lea.vmem %s728, 62
        %v3002 = vld [vmem:[%s3001] sm:$0x3]
        %v3003 = vrot.slane %v2854, 1
        %v3004 = vrot.slane %v2856, 2
        %v3005 = vor.u32 %v3003, %v3004
        %v3006 = vrot.slane %v2864, 1
        %v3007 = vrot.slane %v2860, 2
        %v3008 = vor.u32 %v3006, %v3007
        %v3009 = vsel %vm963, %v3005, %v3008
        %v3010 = vrot.slane %v2871, 1
        %v3011 = vrot.slane %v2867, 2
        %v3012 = vor.u32 %v3010, %v3011
        %v3013 = vsel %vm963, %v3008, %v3012
        %v3014 = vrot.slane %v2878, 1
        %v3015 = vrot.slane %v2874, 2
        %v3016 = vor.u32 %v3014, %v3015
        %v3017 = vsel %vm963, %v3012, %v3016
        %v3018 = vshrl.u32 %v2853, 16
        %v3020 = vrot.slane %v3018, 1
        %v3021 = vrot.slane %v2882, 2
        %v3022 = vor.u32 %v3020, %v3021
        %v3023 = vsel %vm963, %v3016, %v3022
        %v3025 = vsel %vm808, %v3009, 0
        %v3028 = vsel %vm808, %v3013, 0
        %v3031 = vsel %vm808, %v3017, 0
        %v3034 = vsel %vm808, %v3023, 0
        %v3037 = vand.u32 %v3002, %v824
        %3039 = vmatpush.bf16.msra.mxu0 0
        %3040 = vmatpush.bf16.msra.mxu0 0
        %3041 = vmatpush.bf16.msra.mxu0 0
        %3042 = vmatpush.bf16.msra.mxu0 0
        %3043 = vmatpush.bf16.msra.mxu0 0
        %3044 = vmatpush.bf16.msra.mxu0 0
        %3045 = vmatpush.bf16.msra.mxu0 0
        %3046 = vmatpush.bf16.msra.mxu0 %v3037
        %3047 = vmatmul.bf16.gmra.mxu0 %v3025
        %v3048 = vpop.f32.mrf.mxu0
        %v3049 = vadd.f32 0.0, %v3048
        %v3050 = vpop.f32.mrf.mxu0
        %v3051 = vadd.f32 0.0, %v3050
        %3052 = vmatmul.bf16.gmra.mxu0 %v3028
        %v3053 = vpop.f32.mrf.mxu0
        %v3054 = vadd.f32 0.0, %v3053
        %v3055 = vpop.f32.mrf.mxu0
        %v3056 = vadd.f32 0.0, %v3055
        %3057 = vmatmul.bf16.gmra.mxu0 %v3031
        %v3058 = vpop.f32.mrf.mxu0
        %v3059 = vadd.f32 0.0, %v3058
        %v3060 = vpop.f32.mrf.mxu0
        %v3061 = vadd.f32 0.0, %v3060
        %3062 = vmatmul.bf16.gmra.mxu0 %v3034
        %v3063 = vpop.f32.mrf.mxu0
        %v3064 = vadd.f32 0.0, %v3063
        %v3065 = vpop.f32.mrf.mxu0
        %v3066 = vadd.f32 0.0, %v3065
        %3067 = vdwg.mxu0
        %v3068 = vadd.f32 %v2993, %v3049
        %v3069 = vadd.f32 %v2994, %v3051
        %v3070 = vadd.f32 %v2995, %v3054
        %v3071 = vadd.f32 %v2996, %v3056
        %v3072 = vadd.f32 %v2997, %v3059
        %v3073 = vadd.f32 %v2998, %v3061
        %v3074 = vadd.f32 %v2999, %v3064
        %v3075 = vadd.f32 %v3000, %v3066
        %s3076 = scalar_lea.vmem %s728, 64
        %v3077 = vld [vmem:[%s3076] sm:$0x3]
        %v3078 = vrot.slane %v2793, 2
        %v3079 = vrot.slane %v2794, 2
        %v3080 = vsel %vm1039, %v3078, %v3079
        %v3081 = vrot.slane %v2795, 2
        %v3082 = vsel %vm1039, %v3079, %v3081
        %v3083 = vrot.slane %v2796, 2
        %v3084 = vsel %vm1039, %v3081, %v3083
        %v3085 = vrot.slane %v2853, 2
        %v3086 = vsel %vm1039, %v3083, %v3085
        %v3088 = vsel %vm808, %v3080, 0
        %v3091 = vsel %vm808, %v3082, 0
        %v3094 = vsel %vm808, %v3084, 0
        %v3097 = vsel %vm808, %v3086, 0
        %v3100 = vand.u32 %v3077, %v824
        %3102 = vmatpush.bf16.msra.mxu0 0
        %3103 = vmatpush.bf16.msra.mxu0 0
        %3104 = vmatpush.bf16.msra.mxu0 0
        %3105 = vmatpush.bf16.msra.mxu0 0
        %3106 = vmatpush.bf16.msra.mxu0 0
        %3107 = vmatpush.bf16.msra.mxu0 0
        %3108 = vmatpush.bf16.msra.mxu0 0
        %3109 = vmatpush.bf16.msra.mxu0 %v3100
        %3110 = vmatmul.bf16.gmra.mxu0 %v3088
        %v3111 = vpop.f32.mrf.mxu0
        %v3112 = vadd.f32 0.0, %v3111
        %v3113 = vpop.f32.mrf.mxu0
        %v3114 = vadd.f32 0.0, %v3113
        %3115 = vmatmul.bf16.gmra.mxu0 %v3091
        %v3116 = vpop.f32.mrf.mxu0
        %v3117 = vadd.f32 0.0, %v3116
        %v3118 = vpop.f32.mrf.mxu0
        %v3119 = vadd.f32 0.0, %v3118
        %3120 = vmatmul.bf16.gmra.mxu0 %v3094
        %v3121 = vpop.f32.mrf.mxu0
        %v3122 = vadd.f32 0.0, %v3121
        %v3123 = vpop.f32.mrf.mxu0
        %v3124 = vadd.f32 0.0, %v3123
        %3125 = vmatmul.bf16.gmra.mxu0 %v3097
        %v3126 = vpop.f32.mrf.mxu0
        %v3127 = vadd.f32 0.0, %v3126
        %v3128 = vpop.f32.mrf.mxu0
        %v3129 = vadd.f32 0.0, %v3128
        %3130 = vdwg.mxu0
        %v3131 = vadd.f32 %v3068, %v3112
        %v3132 = vadd.f32 %v3069, %v3114
        %v3133 = vadd.f32 %v3070, %v3117
        %v3134 = vadd.f32 %v3071, %v3119
        %v3135 = vadd.f32 %v3072, %v3122
        %v3136 = vadd.f32 %v3073, %v3124
        %v3137 = vadd.f32 %v3074, %v3127
        %v3138 = vadd.f32 %v3075, %v3129
        %s3139 = scalar_lea.vmem %s728, 66
        %v3140 = vld [vmem:[%s3139] sm:$0x3]
        %v3141 = vrot.slane %v2854, 2
        %v3142 = vrot.slane %v2856, 3
        %v3143 = vor.u32 %v3141, %v3142
        %v3144 = vrot.slane %v2864, 2
        %v3145 = vrot.slane %v2860, 3
        %v3146 = vor.u32 %v3144, %v3145
        %v3147 = vsel %vm1103, %v3143, %v3146
        %v3148 = vrot.slane %v2871, 2
        %v3149 = vrot.slane %v2867, 3
        %v3150 = vor.u32 %v3148, %v3149
        %v3151 = vsel %vm1103, %v3146, %v3150
        %v3152 = vrot.slane %v2878, 2
        %v3153 = vrot.slane %v2874, 3
        %v3154 = vor.u32 %v3152, %v3153
        %v3155 = vsel %vm1103, %v3150, %v3154
        %v3156 = vrot.slane %v3018, 2
        %v3157 = vrot.slane %v2882, 3
        %v3158 = vor.u32 %v3156, %v3157
        %v3159 = vsel %vm1103, %v3154, %v3158
        %v3161 = vsel %vm808, %v3147, 0
        %v3164 = vsel %vm808, %v3151, 0
        %v3167 = vsel %vm808, %v3155, 0
        %v3170 = vsel %vm808, %v3159, 0
        %v3173 = vand.u32 %v3140, %v824
        %3175 = vmatpush.bf16.msra.mxu0 0
        %3176 = vmatpush.bf16.msra.mxu0 0
        %3177 = vmatpush.bf16.msra.mxu0 0
        %3178 = vmatpush.bf16.msra.mxu0 0
        %3179 = vmatpush.bf16.msra.mxu0 0
        %3180 = vmatpush.bf16.msra.mxu0 0
        %3181 = vmatpush.bf16.msra.mxu0 0
        %3182 = vmatpush.bf16.msra.mxu0 %v3173
        %3183 = vmatmul.bf16.gmra.mxu0 %v3161
        %v3184 = vpop.f32.mrf.mxu0
        %v3185 = vadd.f32 0.0, %v3184
        %v3186 = vpop.f32.mrf.mxu0
        %v3187 = vadd.f32 0.0, %v3186
        %3188 = vmatmul.bf16.gmra.mxu0 %v3164
        %v3189 = vpop.f32.mrf.mxu0
        %v3190 = vadd.f32 0.0, %v3189
        %v3191 = vpop.f32.mrf.mxu0
        %v3192 = vadd.f32 0.0, %v3191
        %3193 = vmatmul.bf16.gmra.mxu0 %v3167
        %v3194 = vpop.f32.mrf.mxu0
        %v3195 = vadd.f32 0.0, %v3194
        %v3196 = vpop.f32.mrf.mxu0
        %v3197 = vadd.f32 0.0, %v3196
        %3198 = vmatmul.bf16.gmra.mxu0 %v3170
        %v3199 = vpop.f32.mrf.mxu0
        %v3200 = vadd.f32 0.0, %v3199
        %v3201 = vpop.f32.mrf.mxu0
        %v3202 = vadd.f32 0.0, %v3201
        %3203 = vdwg.mxu0
        %v3204 = vadd.f32 %v3131, %v3185
        %v3205 = vadd.f32 %v3132, %v3187
        %v3206 = vadd.f32 %v3133, %v3190
        %v3207 = vadd.f32 %v3134, %v3192
        %v3208 = vadd.f32 %v3135, %v3195
        %v3209 = vadd.f32 %v3136, %v3197
        %v3210 = vadd.f32 %v3137, %v3200
        %v3211 = vadd.f32 %v3138, %v3202
        %s3212 = scalar_lea.vmem %s728, 68
        %v3213 = vld [vmem:[%s3212] sm:$0x3]
        %v3214 = vrot.slane %v2793, 3
        %v3215 = vrot.slane %v2794, 3
        %v3216 = vsel %vm1177, %v3214, %v3215
        %v3217 = vrot.slane %v2795, 3
        %v3218 = vsel %vm1177, %v3215, %v3217
        %v3219 = vrot.slane %v2796, 3
        %v3220 = vsel %vm1177, %v3217, %v3219
        %v3221 = vrot.slane %v2853, 3
        %v3222 = vsel %vm1177, %v3219, %v3221
        %v3224 = vsel %vm808, %v3216, 0
        %v3227 = vsel %vm808, %v3218, 0
        %v3230 = vsel %vm808, %v3220, 0
        %v3233 = vsel %vm808, %v3222, 0
        %v3236 = vand.u32 %v3213, %v824
        %3238 = vmatpush.bf16.msra.mxu0 0
        %3239 = vmatpush.bf16.msra.mxu0 0
        %3240 = vmatpush.bf16.msra.mxu0 0
        %3241 = vmatpush.bf16.msra.mxu0 0
        %3242 = vmatpush.bf16.msra.mxu0 0
        %3243 = vmatpush.bf16.msra.mxu0 0
        %3244 = vmatpush.bf16.msra.mxu0 0
        %3245 = vmatpush.bf16.msra.mxu0 %v3236
        %3246 = vmatmul.bf16.gmra.mxu0 %v3224
        %v3247 = vpop.f32.mrf.mxu0
        %v3248 = vadd.f32 0.0, %v3247
        %v3249 = vpop.f32.mrf.mxu0
        %v3250 = vadd.f32 0.0, %v3249
        %3251 = vmatmul.bf16.gmra.mxu0 %v3227
        %v3252 = vpop.f32.mrf.mxu0
        %v3253 = vadd.f32 0.0, %v3252
        %v3254 = vpop.f32.mrf.mxu0
        %v3255 = vadd.f32 0.0, %v3254
        %3256 = vmatmul.bf16.gmra.mxu0 %v3230
        %v3257 = vpop.f32.mrf.mxu0
        %v3258 = vadd.f32 0.0, %v3257
        %v3259 = vpop.f32.mrf.mxu0
        %v3260 = vadd.f32 0.0, %v3259
        %3261 = vmatmul.bf16.gmra.mxu0 %v3233
        %v3262 = vpop.f32.mrf.mxu0
        %v3263 = vadd.f32 0.0, %v3262
        %v3264 = vpop.f32.mrf.mxu0
        %v3265 = vadd.f32 0.0, %v3264
        %3266 = vdwg.mxu0
        %v3267 = vadd.f32 %v3204, %v3248
        %v3268 = vadd.f32 %v3205, %v3250
        %v3269 = vadd.f32 %v3206, %v3253
        %v3270 = vadd.f32 %v3207, %v3255
        %v3271 = vadd.f32 %v3208, %v3258
        %v3272 = vadd.f32 %v3209, %v3260
        %v3273 = vadd.f32 %v3210, %v3263
        %v3274 = vadd.f32 %v3211, %v3265
        %v3275 = vld [vmem:[%s707] sm:$0xf]
        %v3276 = vld [vmem:[%s707 + $0x4] sm:$0xf]
        %v3277 = vld [vmem:[%s707 + $0x8] sm:$0xf]
        %v3278 = vld [vmem:[%s707 + $0xc] sm:$0xf]
        %v3279 = vld [vmem:[%s707 + $0x10] sm:$0xf]
        %v3280 = vld [vmem:[%s707 + $0x14] sm:$0xf]
        %v3281 = vld [vmem:[%s707 + $0x18] sm:$0xf]
        %v3282 = vld [vmem:[%s707 + $0x1c] sm:$0xf]
        %v3283 = vld [vmem:[%s707 + $0x20] sm:$0x7]
        %s3284 = scalar_lea.vmem %s728, 70
        %v3285 = vld [vmem:[%s3284] sm:$0x3]
        %v3294 = vunpack.c.l.b16 %v3275
        %v3295 = vunpack.c.l.b16 %v3276
        %v3296 = vunpack.c.l.b16 %v3277
        %v3297 = vunpack.c.l.b16 %v3278
        %v3298 = vunpack.c.l.b16 %v3279
        %v3299 = vunpack.c.l.b16 %v3280
        %v3300 = vunpack.c.l.b16 %v3281
        %v3301 = vunpack.c.l.b16 %v3282
        %v3302 = vpack.c.b16 %v3295, %v3294
        %v3303 = vpack.c.b16 %v3297, %v3296
        %v3304 = vpack.c.b16 %v3299, %v3298
        %v3305 = vpack.c.b16 %v3301, %v3300
        %v3307 = vsel %vm808, %v3302, 0
        %v3310 = vsel %vm808, %v3303, 0
        %v3313 = vsel %vm808, %v3304, 0
        %v3316 = vsel %vm808, %v3305, 0
        %v3319 = vand.u32 %v3285, %v824
        %3321 = vmatpush.bf16.msra.mxu0 0
        %3322 = vmatpush.bf16.msra.mxu0 0
        %3323 = vmatpush.bf16.msra.mxu0 0
        %3324 = vmatpush.bf16.msra.mxu0 0
        %3325 = vmatpush.bf16.msra.mxu0 0
        %3326 = vmatpush.bf16.msra.mxu0 0
        %3327 = vmatpush.bf16.msra.mxu0 0
        %3328 = vmatpush.bf16.msra.mxu0 %v3319
        %3329 = vmatmul.bf16.gmra.mxu0 %v3307
        %v3330 = vpop.f32.mrf.mxu0
        %v3331 = vadd.f32 0.0, %v3330
        %v3332 = vpop.f32.mrf.mxu0
        %v3333 = vadd.f32 0.0, %v3332
        %3334 = vmatmul.bf16.gmra.mxu0 %v3310
        %v3335 = vpop.f32.mrf.mxu0
        %v3336 = vadd.f32 0.0, %v3335
        %v3337 = vpop.f32.mrf.mxu0
        %v3338 = vadd.f32 0.0, %v3337
        %3339 = vmatmul.bf16.gmra.mxu0 %v3313
        %v3340 = vpop.f32.mrf.mxu0
        %v3341 = vadd.f32 0.0, %v3340
        %v3342 = vpop.f32.mrf.mxu0
        %v3343 = vadd.f32 0.0, %v3342
        %3344 = vmatmul.bf16.gmra.mxu0 %v3316
        %v3345 = vpop.f32.mrf.mxu0
        %v3346 = vadd.f32 0.0, %v3345
        %v3347 = vpop.f32.mrf.mxu0
        %v3348 = vadd.f32 0.0, %v3347
        %3349 = vdwg.mxu0
        %v3350 = vadd.f32 %v3267, %v3331
        %v3351 = vadd.f32 %v3268, %v3333
        %v3352 = vadd.f32 %v3269, %v3336
        %v3353 = vadd.f32 %v3270, %v3338
        %v3354 = vadd.f32 %v3271, %v3341
        %v3355 = vadd.f32 %v3272, %v3343
        %v3356 = vadd.f32 %v3273, %v3346
        %v3357 = vadd.f32 %v3274, %v3348
        %s3358 = scalar_lea.vmem %s728, 72
        %v3359 = vld [vmem:[%s3358] sm:$0x3]
        %v3361 = vunpack.c.l.b16 %v3283
        %v3362 = vpack.c.b16 %v3361, %v3361
        %v3363 = vshrl.u32 %v3302, 16
        %v3365 = vshll.u32 %v3302, 16
        %v3367 = vrot.slane %v3365, 1
        %v3368 = vor.u32 %v3363, %v3367
        %v3369 = vshll.u32 %v3303, 16
        %v3371 = vrot.slane %v3369, 1
        %v3372 = vsel %vm771, %v3368, %v3371
        %v3373 = vshrl.u32 %v3303, 16
        %v3375 = vor.u32 %v3373, %v3371
        %v3376 = vshll.u32 %v3304, 16
        %v3378 = vrot.slane %v3376, 1
        %v3379 = vsel %vm771, %v3375, %v3378
        %v3380 = vshrl.u32 %v3304, 16
        %v3382 = vor.u32 %v3380, %v3378
        %v3383 = vshll.u32 %v3305, 16
        %v3385 = vrot.slane %v3383, 1
        %v3386 = vsel %vm771, %v3382, %v3385
        %v3387 = vshrl.u32 %v3305, 16
        %v3389 = vor.u32 %v3387, %v3385
        %v3391 = vshll.u32 %v3362, 16
        %v3393 = vrot.slane %v3391, 1
        %v3394 = vsel %vm771, %v3389, %v3393
        %v3396 = vsel %vm808, %v3372, 0
        %v3399 = vsel %vm808, %v3379, 0
        %v3402 = vsel %vm808, %v3386, 0
        %v3405 = vsel %vm808, %v3394, 0
        %v3408 = vand.u32 %v3359, %v824
        %3410 = vmatpush.bf16.msra.mxu0 0
        %3411 = vmatpush.bf16.msra.mxu0 0
        %3412 = vmatpush.bf16.msra.mxu0 0
        %3413 = vmatpush.bf16.msra.mxu0 0
        %3414 = vmatpush.bf16.msra.mxu0 0
        %3415 = vmatpush.bf16.msra.mxu0 0
        %3416 = vmatpush.bf16.msra.mxu0 0
        %3417 = vmatpush.bf16.msra.mxu0 %v3408
        %3418 = vmatmul.bf16.gmra.mxu0 %v3396
        %v3419 = vpop.f32.mrf.mxu0
        %v3420 = vadd.f32 0.0, %v3419
        %v3421 = vpop.f32.mrf.mxu0
        %v3422 = vadd.f32 0.0, %v3421
        %3423 = vmatmul.bf16.gmra.mxu0 %v3399
        %v3424 = vpop.f32.mrf.mxu0
        %v3425 = vadd.f32 0.0, %v3424
        %v3426 = vpop.f32.mrf.mxu0
        %v3427 = vadd.f32 0.0, %v3426
        %3428 = vmatmul.bf16.gmra.mxu0 %v3402
        %v3429 = vpop.f32.mrf.mxu0
        %v3430 = vadd.f32 0.0, %v3429
        %v3431 = vpop.f32.mrf.mxu0
        %v3432 = vadd.f32 0.0, %v3431
        %3433 = vmatmul.bf16.gmra.mxu0 %v3405
        %v3434 = vpop.f32.mrf.mxu0
        %v3435 = vadd.f32 0.0, %v3434
        %v3436 = vpop.f32.mrf.mxu0
        %v3437 = vadd.f32 0.0, %v3436
        %3438 = vdwg.mxu0
        %v3439 = vadd.f32 %v3350, %v3420
        %v3440 = vadd.f32 %v3351, %v3422
        %v3441 = vadd.f32 %v3352, %v3425
        %v3442 = vadd.f32 %v3353, %v3427
        %v3443 = vadd.f32 %v3354, %v3430
        %v3444 = vadd.f32 %v3355, %v3432
        %v3445 = vadd.f32 %v3356, %v3435
        %v3446 = vadd.f32 %v3357, %v3437
        %s3447 = scalar_lea.vmem %s728, 74
        %v3448 = vld [vmem:[%s3447] sm:$0x3]
        %v3449 = vrot.slane %v3302, 1
        %v3450 = vrot.slane %v3303, 1
        %v3451 = vsel %vm899, %v3449, %v3450
        %v3452 = vrot.slane %v3304, 1
        %v3453 = vsel %vm899, %v3450, %v3452
        %v3454 = vrot.slane %v3305, 1
        %v3455 = vsel %vm899, %v3452, %v3454
        %v3456 = vrot.slane %v3362, 1
        %v3457 = vsel %vm899, %v3454, %v3456
        %v3459 = vsel %vm808, %v3451, 0
        %v3462 = vsel %vm808, %v3453, 0
        %v3465 = vsel %vm808, %v3455, 0
        %v3468 = vsel %vm808, %v3457, 0
        %v3471 = vand.u32 %v3448, %v824
        %3473 = vmatpush.bf16.msra.mxu0 0
        %3474 = vmatpush.bf16.msra.mxu0 0
        %3475 = vmatpush.bf16.msra.mxu0 0
        %3476 = vmatpush.bf16.msra.mxu0 0
        %3477 = vmatpush.bf16.msra.mxu0 0
        %3478 = vmatpush.bf16.msra.mxu0 0
        %3479 = vmatpush.bf16.msra.mxu0 0
        %3480 = vmatpush.bf16.msra.mxu0 %v3471
        %3481 = vmatmul.bf16.gmra.mxu0 %v3459
        %v3482 = vpop.f32.mrf.mxu0
        %v3483 = vadd.f32 0.0, %v3482
        %v3484 = vpop.f32.mrf.mxu0
        %v3485 = vadd.f32 0.0, %v3484
        %3486 = vmatmul.bf16.gmra.mxu0 %v3462
        %v3487 = vpop.f32.mrf.mxu0
        %v3488 = vadd.f32 0.0, %v3487
        %v3489 = vpop.f32.mrf.mxu0
        %v3490 = vadd.f32 0.0, %v3489
        %3491 = vmatmul.bf16.gmra.mxu0 %v3465
        %v3492 = vpop.f32.mrf.mxu0
        %v3493 = vadd.f32 0.0, %v3492
        %v3494 = vpop.f32.mrf.mxu0
        %v3495 = vadd.f32 0.0, %v3494
        %3496 = vmatmul.bf16.gmra.mxu0 %v3468
        %v3497 = vpop.f32.mrf.mxu0
        %v3498 = vadd.f32 0.0, %v3497
        %v3499 = vpop.f32.mrf.mxu0
        %v3500 = vadd.f32 0.0, %v3499
        %3501 = vdwg.mxu0
        %v3502 = vadd.f32 %v3439, %v3483
        %v3503 = vadd.f32 %v3440, %v3485
        %v3504 = vadd.f32 %v3441, %v3488
        %v3505 = vadd.f32 %v3442, %v3490
        %v3506 = vadd.f32 %v3443, %v3493
        %v3507 = vadd.f32 %v3444, %v3495
        %v3508 = vadd.f32 %v3445, %v3498
        %v3509 = vadd.f32 %v3446, %v3500
        %s3510 = scalar_lea.vmem %s728, 76
        %v3511 = vld [vmem:[%s3510] sm:$0x3]
        %v3512 = vrot.slane %v3363, 1
        %v3513 = vrot.slane %v3365, 2
        %v3514 = vor.u32 %v3512, %v3513
        %v3515 = vrot.slane %v3373, 1
        %v3516 = vrot.slane %v3369, 2
        %v3517 = vor.u32 %v3515, %v3516
        %v3518 = vsel %vm963, %v3514, %v3517
        %v3519 = vrot.slane %v3380, 1
        %v3520 = vrot.slane %v3376, 2
        %v3521 = vor.u32 %v3519, %v3520
        %v3522 = vsel %vm963, %v3517, %v3521
        %v3523 = vrot.slane %v3387, 1
        %v3524 = vrot.slane %v3383, 2
        %v3525 = vor.u32 %v3523, %v3524
        %v3526 = vsel %vm963, %v3521, %v3525
        %v3527 = vshrl.u32 %v3362, 16
        %v3529 = vrot.slane %v3527, 1
        %v3530 = vrot.slane %v3391, 2
        %v3531 = vor.u32 %v3529, %v3530
        %v3532 = vsel %vm963, %v3525, %v3531
        %v3534 = vsel %vm808, %v3518, 0
        %v3537 = vsel %vm808, %v3522, 0
        %v3540 = vsel %vm808, %v3526, 0
        %v3543 = vsel %vm808, %v3532, 0
        %v3546 = vand.u32 %v3511, %v824
        %3548 = vmatpush.bf16.msra.mxu0 0
        %3549 = vmatpush.bf16.msra.mxu0 0
        %3550 = vmatpush.bf16.msra.mxu0 0
        %3551 = vmatpush.bf16.msra.mxu0 0
        %3552 = vmatpush.bf16.msra.mxu0 0
        %3553 = vmatpush.bf16.msra.mxu0 0
        %3554 = vmatpush.bf16.msra.mxu0 0
        %3555 = vmatpush.bf16.msra.mxu0 %v3546
        %3556 = vmatmul.bf16.gmra.mxu0 %v3534
        %v3557 = vpop.f32.mrf.mxu0
        %v3558 = vadd.f32 0.0, %v3557
        %v3559 = vpop.f32.mrf.mxu0
        %v3560 = vadd.f32 0.0, %v3559
        %3561 = vmatmul.bf16.gmra.mxu0 %v3537
        %v3562 = vpop.f32.mrf.mxu0
        %v3563 = vadd.f32 0.0, %v3562
        %v3564 = vpop.f32.mrf.mxu0
        %v3565 = vadd.f32 0.0, %v3564
        %3566 = vmatmul.bf16.gmra.mxu0 %v3540
        %v3567 = vpop.f32.mrf.mxu0
        %v3568 = vadd.f32 0.0, %v3567
        %v3569 = vpop.f32.mrf.mxu0
        %v3570 = vadd.f32 0.0, %v3569
        %3571 = vmatmul.bf16.gmra.mxu0 %v3543
        %v3572 = vpop.f32.mrf.mxu0
        %v3573 = vadd.f32 0.0, %v3572
        %v3574 = vpop.f32.mrf.mxu0
        %v3575 = vadd.f32 0.0, %v3574
        %3576 = vdwg.mxu0
        %v3577 = vadd.f32 %v3502, %v3558
        %v3578 = vadd.f32 %v3503, %v3560
        %v3579 = vadd.f32 %v3504, %v3563
        %v3580 = vadd.f32 %v3505, %v3565
        %v3581 = vadd.f32 %v3506, %v3568
        %v3582 = vadd.f32 %v3507, %v3570
        %v3583 = vadd.f32 %v3508, %v3573
        %v3584 = vadd.f32 %v3509, %v3575
        %s3585 = scalar_lea.vmem %s728, 78
        %v3586 = vld [vmem:[%s3585] sm:$0x3]
        %v3587 = vrot.slane %v3302, 2
        %v3588 = vrot.slane %v3303, 2
        %v3589 = vsel %vm1039, %v3587, %v3588
        %v3590 = vrot.slane %v3304, 2
        %v3591 = vsel %vm1039, %v3588, %v3590
        %v3592 = vrot.slane %v3305, 2
        %v3593 = vsel %vm1039, %v3590, %v3592
        %v3594 = vrot.slane %v3362, 2
        %v3595 = vsel %vm1039, %v3592, %v3594
        %v3597 = vsel %vm808, %v3589, 0
        %v3600 = vsel %vm808, %v3591, 0
        %v3603 = vsel %vm808, %v3593, 0
        %v3606 = vsel %vm808, %v3595, 0
        %v3609 = vand.u32 %v3586, %v824
        %3611 = vmatpush.bf16.msra.mxu0 0
        %3612 = vmatpush.bf16.msra.mxu0 0
        %3613 = vmatpush.bf16.msra.mxu0 0
        %3614 = vmatpush.bf16.msra.mxu0 0
        %3615 = vmatpush.bf16.msra.mxu0 0
        %3616 = vmatpush.bf16.msra.mxu0 0
        %3617 = vmatpush.bf16.msra.mxu0 0
        %3618 = vmatpush.bf16.msra.mxu0 %v3609
        %3619 = vmatmul.bf16.gmra.mxu0 %v3597
        %v3620 = vpop.f32.mrf.mxu0
        %v3621 = vadd.f32 0.0, %v3620
        %v3622 = vpop.f32.mrf.mxu0
        %v3623 = vadd.f32 0.0, %v3622
        %3624 = vmatmul.bf16.gmra.mxu0 %v3600
        %v3625 = vpop.f32.mrf.mxu0
        %v3626 = vadd.f32 0.0, %v3625
        %v3627 = vpop.f32.mrf.mxu0
        %v3628 = vadd.f32 0.0, %v3627
        %3629 = vmatmul.bf16.gmra.mxu0 %v3603
        %v3630 = vpop.f32.mrf.mxu0
        %v3631 = vadd.f32 0.0, %v3630
        %v3632 = vpop.f32.mrf.mxu0
        %v3633 = vadd.f32 0.0, %v3632
        %3634 = vmatmul.bf16.gmra.mxu0 %v3606
        %v3635 = vpop.f32.mrf.mxu0
        %v3636 = vadd.f32 0.0, %v3635
        %v3637 = vpop.f32.mrf.mxu0
        %v3638 = vadd.f32 0.0, %v3637
        %3639 = vdwg.mxu0
        %v3640 = vadd.f32 %v3577, %v3621
        %v3641 = vadd.f32 %v3578, %v3623
        %v3642 = vadd.f32 %v3579, %v3626
        %v3643 = vadd.f32 %v3580, %v3628
        %v3644 = vadd.f32 %v3581, %v3631
        %v3645 = vadd.f32 %v3582, %v3633
        %v3646 = vadd.f32 %v3583, %v3636
        %v3647 = vadd.f32 %v3584, %v3638
        %s3648 = scalar_lea.vmem %s728, 80
        %v3649 = vld [vmem:[%s3648] sm:$0x3]
        %v3650 = vrot.slane %v3363, 2
        %v3651 = vrot.slane %v3365, 3
        %v3652 = vor.u32 %v3650, %v3651
        %v3653 = vrot.slane %v3373, 2
        %v3654 = vrot.slane %v3369, 3
        %v3655 = vor.u32 %v3653, %v3654
        %v3656 = vsel %vm1103, %v3652, %v3655
        %v3657 = vrot.slane %v3380, 2
        %v3658 = vrot.slane %v3376, 3
        %v3659 = vor.u32 %v3657, %v3658
        %v3660 = vsel %vm1103, %v3655, %v3659
        %v3661 = vrot.slane %v3387, 2
        %v3662 = vrot.slane %v3383, 3
        %v3663 = vor.u32 %v3661, %v3662
        %v3664 = vsel %vm1103, %v3659, %v3663
        %v3665 = vrot.slane %v3527, 2
        %v3666 = vrot.slane %v3391, 3
        %v3667 = vor.u32 %v3665, %v3666
        %v3668 = vsel %vm1103, %v3663, %v3667
        %v3670 = vsel %vm808, %v3656, 0
        %v3673 = vsel %vm808, %v3660, 0
        %v3676 = vsel %vm808, %v3664, 0
        %v3679 = vsel %vm808, %v3668, 0
        %v3682 = vand.u32 %v3649, %v824
        %3684 = vmatpush.bf16.msra.mxu0 0
        %3685 = vmatpush.bf16.msra.mxu0 0
        %3686 = vmatpush.bf16.msra.mxu0 0
        %3687 = vmatpush.bf16.msra.mxu0 0
        %3688 = vmatpush.bf16.msra.mxu0 0
        %3689 = vmatpush.bf16.msra.mxu0 0
        %3690 = vmatpush.bf16.msra.mxu0 0
        %3691 = vmatpush.bf16.msra.mxu0 %v3682
        %3692 = vmatmul.bf16.gmra.mxu0 %v3670
        %v3693 = vpop.f32.mrf.mxu0
        %v3694 = vadd.f32 0.0, %v3693
        %v3695 = vpop.f32.mrf.mxu0
        %v3696 = vadd.f32 0.0, %v3695
        %3697 = vmatmul.bf16.gmra.mxu0 %v3673
        %v3698 = vpop.f32.mrf.mxu0
        %v3699 = vadd.f32 0.0, %v3698
        %v3700 = vpop.f32.mrf.mxu0
        %v3701 = vadd.f32 0.0, %v3700
        %3702 = vmatmul.bf16.gmra.mxu0 %v3676
        %v3703 = vpop.f32.mrf.mxu0
        %v3704 = vadd.f32 0.0, %v3703
        %v3705 = vpop.f32.mrf.mxu0
        %v3706 = vadd.f32 0.0, %v3705
        %3707 = vmatmul.bf16.gmra.mxu0 %v3679
        %v3708 = vpop.f32.mrf.mxu0
        %v3709 = vadd.f32 0.0, %v3708
        %v3710 = vpop.f32.mrf.mxu0
        %v3711 = vadd.f32 0.0, %v3710
        %3712 = vdwg.mxu0
        %v3713 = vadd.f32 %v3640, %v3694
        %v3714 = vadd.f32 %v3641, %v3696
        %v3715 = vadd.f32 %v3642, %v3699
        %v3716 = vadd.f32 %v3643, %v3701
        %v3717 = vadd.f32 %v3644, %v3704
        %v3718 = vadd.f32 %v3645, %v3706
        %v3719 = vadd.f32 %v3646, %v3709
        %v3720 = vadd.f32 %v3647, %v3711
        %s3721 = scalar_lea.vmem %s728, 82
        %v3722 = vld [vmem:[%s3721] sm:$0x3]
        %v3723 = vrot.slane %v3302, 3
        %v3724 = vrot.slane %v3303, 3
        %v3725 = vsel %vm1177, %v3723, %v3724
        %v3726 = vrot.slane %v3304, 3
        %v3727 = vsel %vm1177, %v3724, %v3726
        %v3728 = vrot.slane %v3305, 3
        %v3729 = vsel %vm1177, %v3726, %v3728
        %v3730 = vrot.slane %v3362, 3
        %v3731 = vsel %vm1177, %v3728, %v3730
        %v3733 = vsel %vm808, %v3725, 0
        %v3736 = vsel %vm808, %v3727, 0
        %v3739 = vsel %vm808, %v3729, 0
        %v3742 = vsel %vm808, %v3731, 0
        %v3745 = vand.u32 %v3722, %v824
        %3747 = vmatpush.bf16.msra.mxu0 0
        %3748 = vmatpush.bf16.msra.mxu0 0
        %3749 = vmatpush.bf16.msra.mxu0 0
        %3750 = vmatpush.bf16.msra.mxu0 0
        %3751 = vmatpush.bf16.msra.mxu0 0
        %3752 = vmatpush.bf16.msra.mxu0 0
        %3753 = vmatpush.bf16.msra.mxu0 0
        %3754 = vmatpush.bf16.msra.mxu0 %v3745
        %3755 = vmatmul.bf16.gmra.mxu0 %v3733
        %v3756 = vpop.f32.mrf.mxu0
        %v3757 = vadd.f32 0.0, %v3756
        %v3758 = vpop.f32.mrf.mxu0
        %v3759 = vadd.f32 0.0, %v3758
        %3760 = vmatmul.bf16.gmra.mxu0 %v3736
        %v3761 = vpop.f32.mrf.mxu0
        %v3762 = vadd.f32 0.0, %v3761
        %v3763 = vpop.f32.mrf.mxu0
        %v3764 = vadd.f32 0.0, %v3763
        %3765 = vmatmul.bf16.gmra.mxu0 %v3739
        %v3766 = vpop.f32.mrf.mxu0
        %v3767 = vadd.f32 0.0, %v3766
        %v3768 = vpop.f32.mrf.mxu0
        %v3769 = vadd.f32 0.0, %v3768
        %3770 = vmatmul.bf16.gmra.mxu0 %v3742
        %v3771 = vpop.f32.mrf.mxu0
        %v3772 = vadd.f32 0.0, %v3771
        %v3773 = vpop.f32.mrf.mxu0
        %v3774 = vadd.f32 0.0, %v3773
        %3775 = vdwg.mxu0
        %v3776 = vadd.f32 %v3713, %v3757
        %v3777 = vadd.f32 %v3714, %v3759
        %v3778 = vadd.f32 %v3715, %v3762
        %v3779 = vadd.f32 %v3716, %v3764
        %v3780 = vadd.f32 %v3717, %v3767
        %v3781 = vadd.f32 %v3718, %v3769
        %v3782 = vadd.f32 %v3719, %v3772
        %v3783 = vadd.f32 %v3720, %v3774
        %v3784 = vld [vmem:[%s720] sm:$0xf]
        %v3785 = vld [vmem:[%s720 + $0x4] sm:$0xf]
        %v3786 = vld [vmem:[%s720 + $0x8] sm:$0xf]
        %v3787 = vld [vmem:[%s720 + $0xc] sm:$0xf]
        %v3788 = vld [vmem:[%s720 + $0x10] sm:$0xf]
        %v3789 = vld [vmem:[%s720 + $0x14] sm:$0xf]
        %v3790 = vld [vmem:[%s720 + $0x18] sm:$0xf]
        %v3791 = vld [vmem:[%s720 + $0x1c] sm:$0xf]
        %v3792 = vld [vmem:[%s720 + $0x20] sm:$0x7]
        %s3793 = scalar_lea.vmem %s728, 84
        %v3794 = vld [vmem:[%s3793] sm:$0x3]
        %v3803 = vunpack.c.l.b16 %v3784
        %v3804 = vunpack.c.l.b16 %v3785
        %v3805 = vunpack.c.l.b16 %v3786
        %v3806 = vunpack.c.l.b16 %v3787
        %v3807 = vunpack.c.l.b16 %v3788
        %v3808 = vunpack.c.l.b16 %v3789
        %v3809 = vunpack.c.l.b16 %v3790
        %v3810 = vunpack.c.l.b16 %v3791
        %v3811 = vpack.c.b16 %v3804, %v3803
        %v3812 = vpack.c.b16 %v3806, %v3805
        %v3813 = vpack.c.b16 %v3808, %v3807
        %v3814 = vpack.c.b16 %v3810, %v3809
        %v3816 = vsel %vm808, %v3811, 0
        %v3819 = vsel %vm808, %v3812, 0
        %v3822 = vsel %vm808, %v3813, 0
        %v3825 = vsel %vm808, %v3814, 0
        %v3828 = vand.u32 %v3794, %v824
        %3830 = vmatpush.bf16.msra.mxu0 0
        %3831 = vmatpush.bf16.msra.mxu0 0
        %3832 = vmatpush.bf16.msra.mxu0 0
        %3833 = vmatpush.bf16.msra.mxu0 0
        %3834 = vmatpush.bf16.msra.mxu0 0
        %3835 = vmatpush.bf16.msra.mxu0 0
        %3836 = vmatpush.bf16.msra.mxu0 0
        %3837 = vmatpush.bf16.msra.mxu0 %v3828
        %3838 = vmatmul.bf16.gmra.mxu0 %v3816
        %v3839 = vpop.f32.mrf.mxu0
        %v3840 = vadd.f32 0.0, %v3839
        %v3841 = vpop.f32.mrf.mxu0
        %v3842 = vadd.f32 0.0, %v3841
        %3843 = vmatmul.bf16.gmra.mxu0 %v3819
        %v3844 = vpop.f32.mrf.mxu0
        %v3845 = vadd.f32 0.0, %v3844
        %v3846 = vpop.f32.mrf.mxu0
        %v3847 = vadd.f32 0.0, %v3846
        %3848 = vmatmul.bf16.gmra.mxu0 %v3822
        %v3849 = vpop.f32.mrf.mxu0
        %v3850 = vadd.f32 0.0, %v3849
        %v3851 = vpop.f32.mrf.mxu0
        %v3852 = vadd.f32 0.0, %v3851
        %3853 = vmatmul.bf16.gmra.mxu0 %v3825
        %v3854 = vpop.f32.mrf.mxu0
        %v3855 = vadd.f32 0.0, %v3854
        %v3856 = vpop.f32.mrf.mxu0
        %v3857 = vadd.f32 0.0, %v3856
        %3858 = vdwg.mxu0
        %v3859 = vadd.f32 %v3776, %v3840
        %v3860 = vadd.f32 %v3777, %v3842
        %v3861 = vadd.f32 %v3778, %v3845
        %v3862 = vadd.f32 %v3779, %v3847
        %v3863 = vadd.f32 %v3780, %v3850
        %v3864 = vadd.f32 %v3781, %v3852
        %v3865 = vadd.f32 %v3782, %v3855
        %v3866 = vadd.f32 %v3783, %v3857
        %s3867 = scalar_lea.vmem %s728, 86
        %v3868 = vld [vmem:[%s3867] sm:$0x3]
        %v3870 = vunpack.c.l.b16 %v3792
        %v3871 = vpack.c.b16 %v3870, %v3870
        %v3872 = vshrl.u32 %v3811, 16
        %v3874 = vshll.u32 %v3811, 16
        %v3876 = vrot.slane %v3874, 1
        %v3877 = vor.u32 %v3872, %v3876
        %v3878 = vshll.u32 %v3812, 16
        %v3880 = vrot.slane %v3878, 1
        %v3881 = vsel %vm771, %v3877, %v3880
        %v3882 = vshrl.u32 %v3812, 16
        %v3884 = vor.u32 %v3882, %v3880
        %v3885 = vshll.u32 %v3813, 16
        %v3887 = vrot.slane %v3885, 1
        %v3888 = vsel %vm771, %v3884, %v3887
        %v3889 = vshrl.u32 %v3813, 16
        %v3891 = vor.u32 %v3889, %v3887
        %v3892 = vshll.u32 %v3814, 16
        %v3894 = vrot.slane %v3892, 1
        %v3895 = vsel %vm771, %v3891, %v3894
        %v3896 = vshrl.u32 %v3814, 16
        %v3898 = vor.u32 %v3896, %v3894
        %v3900 = vshll.u32 %v3871, 16
        %v3902 = vrot.slane %v3900, 1
        %v3903 = vsel %vm771, %v3898, %v3902
        %v3905 = vsel %vm808, %v3881, 0
        %v3908 = vsel %vm808, %v3888, 0
        %v3911 = vsel %vm808, %v3895, 0
        %v3914 = vsel %vm808, %v3903, 0
        %v3917 = vand.u32 %v3868, %v824
        %3919 = vmatpush.bf16.msra.mxu0 0
        %3920 = vmatpush.bf16.msra.mxu0 0
        %3921 = vmatpush.bf16.msra.mxu0 0
        %3922 = vmatpush.bf16.msra.mxu0 0
        %3923 = vmatpush.bf16.msra.mxu0 0
        %3924 = vmatpush.bf16.msra.mxu0 0
        %3925 = vmatpush.bf16.msra.mxu0 0
        %3926 = vmatpush.bf16.msra.mxu0 %v3917
        %3927 = vmatmul.bf16.gmra.mxu0 %v3905
        %v3928 = vpop.f32.mrf.mxu0
        %v3929 = vadd.f32 0.0, %v3928
        %v3930 = vpop.f32.mrf.mxu0
        %v3931 = vadd.f32 0.0, %v3930
        %3932 = vmatmul.bf16.gmra.mxu0 %v3908
        %v3933 = vpop.f32.mrf.mxu0
        %v3934 = vadd.f32 0.0, %v3933
        %v3935 = vpop.f32.mrf.mxu0
        %v3936 = vadd.f32 0.0, %v3935
        %3937 = vmatmul.bf16.gmra.mxu0 %v3911
        %v3938 = vpop.f32.mrf.mxu0
        %v3939 = vadd.f32 0.0, %v3938
        %v3940 = vpop.f32.mrf.mxu0
        %v3941 = vadd.f32 0.0, %v3940
        %3942 = vmatmul.bf16.gmra.mxu0 %v3914
        %v3943 = vpop.f32.mrf.mxu0
        %v3944 = vadd.f32 0.0, %v3943
        %v3945 = vpop.f32.mrf.mxu0
        %v3946 = vadd.f32 0.0, %v3945
        %3947 = vdwg.mxu0
        %v3948 = vadd.f32 %v3859, %v3929
        %v3949 = vadd.f32 %v3860, %v3931
        %v3950 = vadd.f32 %v3861, %v3934
        %v3951 = vadd.f32 %v3862, %v3936
        %v3952 = vadd.f32 %v3863, %v3939
        %v3953 = vadd.f32 %v3864, %v3941
        %v3954 = vadd.f32 %v3865, %v3944
        %v3955 = vadd.f32 %v3866, %v3946
        %s3956 = scalar_lea.vmem %s728, 88
        %v3957 = vld [vmem:[%s3956] sm:$0x3]
        %v3958 = vrot.slane %v3811, 1
        %v3959 = vrot.slane %v3812, 1
        %v3960 = vsel %vm899, %v3958, %v3959
        %v3961 = vrot.slane %v3813, 1
        %v3962 = vsel %vm899, %v3959, %v3961
        %v3963 = vrot.slane %v3814, 1
        %v3964 = vsel %vm899, %v3961, %v3963
        %v3965 = vrot.slane %v3871, 1
        %v3966 = vsel %vm899, %v3963, %v3965
        %v3968 = vsel %vm808, %v3960, 0
        %v3971 = vsel %vm808, %v3962, 0
        %v3974 = vsel %vm808, %v3964, 0
        %v3977 = vsel %vm808, %v3966, 0
        %v3980 = vand.u32 %v3957, %v824
        %3982 = vmatpush.bf16.msra.mxu0 0
        %3983 = vmatpush.bf16.msra.mxu0 0
        %3984 = vmatpush.bf16.msra.mxu0 0
        %3985 = vmatpush.bf16.msra.mxu0 0
        %3986 = vmatpush.bf16.msra.mxu0 0
        %3987 = vmatpush.bf16.msra.mxu0 0
        %3988 = vmatpush.bf16.msra.mxu0 0
        %3989 = vmatpush.bf16.msra.mxu0 %v3980
        %3990 = vmatmul.bf16.gmra.mxu0 %v3968
        %v3991 = vpop.f32.mrf.mxu0
        %v3992 = vadd.f32 0.0, %v3991
        %v3993 = vpop.f32.mrf.mxu0
        %v3994 = vadd.f32 0.0, %v3993
        %3995 = vmatmul.bf16.gmra.mxu0 %v3971
        %v3996 = vpop.f32.mrf.mxu0
        %v3997 = vadd.f32 0.0, %v3996
        %v3998 = vpop.f32.mrf.mxu0
        %v3999 = vadd.f32 0.0, %v3998
        %4000 = vmatmul.bf16.gmra.mxu0 %v3974
        %v4001 = vpop.f32.mrf.mxu0
        %v4002 = vadd.f32 0.0, %v4001
        %v4003 = vpop.f32.mrf.mxu0
        %v4004 = vadd.f32 0.0, %v4003
        %4005 = vmatmul.bf16.gmra.mxu0 %v3977
        %v4006 = vpop.f32.mrf.mxu0
        %v4007 = vadd.f32 0.0, %v4006
        %v4008 = vpop.f32.mrf.mxu0
        %v4009 = vadd.f32 0.0, %v4008
        %4010 = vdwg.mxu0
        %v4011 = vadd.f32 %v3948, %v3992
        %v4012 = vadd.f32 %v3949, %v3994
        %v4013 = vadd.f32 %v3950, %v3997
        %v4014 = vadd.f32 %v3951, %v3999
        %v4015 = vadd.f32 %v3952, %v4002
        %v4016 = vadd.f32 %v3953, %v4004
        %v4017 = vadd.f32 %v3954, %v4007
        %v4018 = vadd.f32 %v3955, %v4009
        %s4019 = scalar_lea.vmem %s728, 90
        %v4020 = vld [vmem:[%s4019] sm:$0x3]
        %v4021 = vrot.slane %v3872, 1
        %v4022 = vrot.slane %v3874, 2
        %v4023 = vor.u32 %v4021, %v4022
        %v4024 = vrot.slane %v3882, 1
        %v4025 = vrot.slane %v3878, 2
        %v4026 = vor.u32 %v4024, %v4025
        %v4027 = vsel %vm963, %v4023, %v4026
        %v4028 = vrot.slane %v3889, 1
        %v4029 = vrot.slane %v3885, 2
        %v4030 = vor.u32 %v4028, %v4029
        %v4031 = vsel %vm963, %v4026, %v4030
        %v4032 = vrot.slane %v3896, 1
        %v4033 = vrot.slane %v3892, 2
        %v4034 = vor.u32 %v4032, %v4033
        %v4035 = vsel %vm963, %v4030, %v4034
        %v4036 = vshrl.u32 %v3871, 16
        %v4038 = vrot.slane %v4036, 1
        %v4039 = vrot.slane %v3900, 2
        %v4040 = vor.u32 %v4038, %v4039
        %v4041 = vsel %vm963, %v4034, %v4040
        %v4043 = vsel %vm808, %v4027, 0
        %v4046 = vsel %vm808, %v4031, 0
        %v4049 = vsel %vm808, %v4035, 0
        %v4052 = vsel %vm808, %v4041, 0
        %v4055 = vand.u32 %v4020, %v824
        %4057 = vmatpush.bf16.msra.mxu0 0
        %4058 = vmatpush.bf16.msra.mxu0 0
        %4059 = vmatpush.bf16.msra.mxu0 0
        %4060 = vmatpush.bf16.msra.mxu0 0
        %4061 = vmatpush.bf16.msra.mxu0 0
        %4062 = vmatpush.bf16.msra.mxu0 0
        %4063 = vmatpush.bf16.msra.mxu0 0
        %4064 = vmatpush.bf16.msra.mxu0 %v4055
        %4065 = vmatmul.bf16.gmra.mxu0 %v4043
        %v4066 = vpop.f32.mrf.mxu0
        %v4067 = vadd.f32 0.0, %v4066
        %v4068 = vpop.f32.mrf.mxu0
        %v4069 = vadd.f32 0.0, %v4068
        %4070 = vmatmul.bf16.gmra.mxu0 %v4046
        %v4071 = vpop.f32.mrf.mxu0
        %v4072 = vadd.f32 0.0, %v4071
        %v4073 = vpop.f32.mrf.mxu0
        %v4074 = vadd.f32 0.0, %v4073
        %4075 = vmatmul.bf16.gmra.mxu0 %v4049
        %v4076 = vpop.f32.mrf.mxu0
        %v4077 = vadd.f32 0.0, %v4076
        %v4078 = vpop.f32.mrf.mxu0
        %v4079 = vadd.f32 0.0, %v4078
        %4080 = vmatmul.bf16.gmra.mxu0 %v4052
        %v4081 = vpop.f32.mrf.mxu0
        %v4082 = vadd.f32 0.0, %v4081
        %v4083 = vpop.f32.mrf.mxu0
        %v4084 = vadd.f32 0.0, %v4083
        %4085 = vdwg.mxu0
        %v4086 = vadd.f32 %v4011, %v4067
        %v4087 = vadd.f32 %v4012, %v4069
        %v4088 = vadd.f32 %v4013, %v4072
        %v4089 = vadd.f32 %v4014, %v4074
        %v4090 = vadd.f32 %v4015, %v4077
        %v4091 = vadd.f32 %v4016, %v4079
        %v4092 = vadd.f32 %v4017, %v4082
        %v4093 = vadd.f32 %v4018, %v4084
        %s4094 = scalar_lea.vmem %s728, 92
        %v4095 = vld [vmem:[%s4094] sm:$0x3]
        %v4096 = vrot.slane %v3811, 2
        %v4097 = vrot.slane %v3812, 2
        %v4098 = vsel %vm1039, %v4096, %v4097
        %v4099 = vrot.slane %v3813, 2
        %v4100 = vsel %vm1039, %v4097, %v4099
        %v4101 = vrot.slane %v3814, 2
        %v4102 = vsel %vm1039, %v4099, %v4101
        %v4103 = vrot.slane %v3871, 2
        %v4104 = vsel %vm1039, %v4101, %v4103
        %v4106 = vsel %vm808, %v4098, 0
        %v4109 = vsel %vm808, %v4100, 0
        %v4112 = vsel %vm808, %v4102, 0
        %v4115 = vsel %vm808, %v4104, 0
        %v4118 = vand.u32 %v4095, %v824
        %4120 = vmatpush.bf16.msra.mxu0 0
        %4121 = vmatpush.bf16.msra.mxu0 0
        %4122 = vmatpush.bf16.msra.mxu0 0
        %4123 = vmatpush.bf16.msra.mxu0 0
        %4124 = vmatpush.bf16.msra.mxu0 0
        %4125 = vmatpush.bf16.msra.mxu0 0
        %4126 = vmatpush.bf16.msra.mxu0 0
        %4127 = vmatpush.bf16.msra.mxu0 %v4118
        %4128 = vmatmul.bf16.gmra.mxu0 %v4106
        %v4129 = vpop.f32.mrf.mxu0
        %v4130 = vadd.f32 0.0, %v4129
        %v4131 = vpop.f32.mrf.mxu0
        %v4132 = vadd.f32 0.0, %v4131
        %4133 = vmatmul.bf16.gmra.mxu0 %v4109
        %v4134 = vpop.f32.mrf.mxu0
        %v4135 = vadd.f32 0.0, %v4134
        %v4136 = vpop.f32.mrf.mxu0
        %v4137 = vadd.f32 0.0, %v4136
        %4138 = vmatmul.bf16.gmra.mxu0 %v4112
        %v4139 = vpop.f32.mrf.mxu0
        %v4140 = vadd.f32 0.0, %v4139
        %v4141 = vpop.f32.mrf.mxu0
        %v4142 = vadd.f32 0.0, %v4141
        %4143 = vmatmul.bf16.gmra.mxu0 %v4115
        %v4144 = vpop.f32.mrf.mxu0
        %v4145 = vadd.f32 0.0, %v4144
        %v4146 = vpop.f32.mrf.mxu0
        %v4147 = vadd.f32 0.0, %v4146
        %4148 = vdwg.mxu0
        %v4149 = vadd.f32 %v4086, %v4130
        %v4150 = vadd.f32 %v4087, %v4132
        %v4151 = vadd.f32 %v4088, %v4135
        %v4152 = vadd.f32 %v4089, %v4137
        %v4153 = vadd.f32 %v4090, %v4140
        %v4154 = vadd.f32 %v4091, %v4142
        %v4155 = vadd.f32 %v4092, %v4145
        %v4156 = vadd.f32 %v4093, %v4147
        %s4157 = scalar_lea.vmem %s728, 94
        %v4158 = vld [vmem:[%s4157] sm:$0x3]
        %v4159 = vrot.slane %v3872, 2
        %v4160 = vrot.slane %v3874, 3
        %v4161 = vor.u32 %v4159, %v4160
        %v4162 = vrot.slane %v3882, 2
        %v4163 = vrot.slane %v3878, 3
        %v4164 = vor.u32 %v4162, %v4163
        %v4165 = vsel %vm1103, %v4161, %v4164
        %v4166 = vrot.slane %v3889, 2
        %v4167 = vrot.slane %v3885, 3
        %v4168 = vor.u32 %v4166, %v4167
        %v4169 = vsel %vm1103, %v4164, %v4168
        %v4170 = vrot.slane %v3896, 2
        %v4171 = vrot.slane %v3892, 3
        %v4172 = vor.u32 %v4170, %v4171
        %v4173 = vsel %vm1103, %v4168, %v4172
        %v4174 = vrot.slane %v4036, 2
        %v4175 = vrot.slane %v3900, 3
        %v4176 = vor.u32 %v4174, %v4175
        %v4177 = vsel %vm1103, %v4172, %v4176
        %v4179 = vsel %vm808, %v4165, 0
        %v4182 = vsel %vm808, %v4169, 0
        %v4185 = vsel %vm808, %v4173, 0
        %v4188 = vsel %vm808, %v4177, 0
        %v4191 = vand.u32 %v4158, %v824
        %4193 = vmatpush.bf16.msra.mxu0 0
        %4194 = vmatpush.bf16.msra.mxu0 0
        %4195 = vmatpush.bf16.msra.mxu0 0
        %4196 = vmatpush.bf16.msra.mxu0 0
        %4197 = vmatpush.bf16.msra.mxu0 0
        %4198 = vmatpush.bf16.msra.mxu0 0
        %4199 = vmatpush.bf16.msra.mxu0 0
        %4200 = vmatpush.bf16.msra.mxu0 %v4191
        %4201 = vmatmul.bf16.gmra.mxu0 %v4179
        %v4202 = vpop.f32.mrf.mxu0
        %v4203 = vadd.f32 0.0, %v4202
        %v4204 = vpop.f32.mrf.mxu0
        %v4205 = vadd.f32 0.0, %v4204
        %4206 = vmatmul.bf16.gmra.mxu0 %v4182
        %v4207 = vpop.f32.mrf.mxu0
        %v4208 = vadd.f32 0.0, %v4207
        %v4209 = vpop.f32.mrf.mxu0
        %v4210 = vadd.f32 0.0, %v4209
        %4211 = vmatmul.bf16.gmra.mxu0 %v4185
        %v4212 = vpop.f32.mrf.mxu0
        %v4213 = vadd.f32 0.0, %v4212
        %v4214 = vpop.f32.mrf.mxu0
        %v4215 = vadd.f32 0.0, %v4214
        %4216 = vmatmul.bf16.gmra.mxu0 %v4188
        %v4217 = vpop.f32.mrf.mxu0
        %v4218 = vadd.f32 0.0, %v4217
        %v4219 = vpop.f32.mrf.mxu0
        %v4220 = vadd.f32 0.0, %v4219
        %4221 = vdwg.mxu0
        %v4222 = vadd.f32 %v4149, %v4203
        %v4223 = vadd.f32 %v4150, %v4205
        %v4224 = vadd.f32 %v4151, %v4208
        %v4225 = vadd.f32 %v4152, %v4210
        %v4226 = vadd.f32 %v4153, %v4213
        %v4227 = vadd.f32 %v4154, %v4215
        %v4228 = vadd.f32 %v4155, %v4218
        %v4229 = vadd.f32 %v4156, %v4220
        %s4230 = scalar_lea.vmem %s728, 96
        %v4231 = vld [vmem:[%s4230] sm:$0x3]
        %v4232 = vrot.slane %v3811, 3
        %v4233 = vrot.slane %v3812, 3
        %v4234 = vsel %vm1177, %v4232, %v4233
        %v4235 = vrot.slane %v3813, 3
        %v4236 = vsel %vm1177, %v4233, %v4235
        %v4237 = vrot.slane %v3814, 3
        %v4238 = vsel %vm1177, %v4235, %v4237
        %v4239 = vrot.slane %v3871, 3
        %v4240 = vsel %vm1177, %v4237, %v4239
        %v4242 = vsel %vm808, %v4234, 0
        %v4245 = vsel %vm808, %v4236, 0
        %v4248 = vsel %vm808, %v4238, 0
        %v4251 = vsel %vm808, %v4240, 0
        %v4254 = vand.u32 %v4231, %v824
        %4256 = vmatpush.bf16.msra.mxu0 0
        %4257 = vmatpush.bf16.msra.mxu0 0
        %4258 = vmatpush.bf16.msra.mxu0 0
        %4259 = vmatpush.bf16.msra.mxu0 0
        %4260 = vmatpush.bf16.msra.mxu0 0
        %4261 = vmatpush.bf16.msra.mxu0 0
        %4262 = vmatpush.bf16.msra.mxu0 0
        %4263 = vmatpush.bf16.msra.mxu0 %v4254
        %4264 = vmatmul.bf16.gmra.mxu0 %v4242
        %v4265 = vpop.f32.mrf.mxu0
        %v4266 = vadd.f32 0.0, %v4265
        %v4267 = vpop.f32.mrf.mxu0
        %v4268 = vadd.f32 0.0, %v4267
        %4269 = vmatmul.bf16.gmra.mxu0 %v4245
        %v4270 = vpop.f32.mrf.mxu0
        %v4271 = vadd.f32 0.0, %v4270
        %v4272 = vpop.f32.mrf.mxu0
        %v4273 = vadd.f32 0.0, %v4272
        %4274 = vmatmul.bf16.gmra.mxu0 %v4248
        %v4275 = vpop.f32.mrf.mxu0
        %v4276 = vadd.f32 0.0, %v4275
        %v4277 = vpop.f32.mrf.mxu0
        %v4278 = vadd.f32 0.0, %v4277
        %4279 = vmatmul.bf16.gmra.mxu0 %v4251
        %v4280 = vpop.f32.mrf.mxu0
        %v4281 = vadd.f32 0.0, %v4280
        %v4282 = vpop.f32.mrf.mxu0
        %v4283 = vadd.f32 0.0, %v4282
        %4284 = vdwg.mxu0
        %v4285 = vadd.f32 %v4222, %v4266
        %v4286 = vadd.f32 %v4223, %v4268
        %v4287 = vadd.f32 %v4224, %v4271
        %v4288 = vadd.f32 %v4225, %v4273
        %v4289 = vadd.f32 %v4226, %v4276
        %v4290 = vadd.f32 %v4227, %v4278
        %v4291 = vadd.f32 %v4228, %v4281
        %v4292 = vadd.f32 %v4229, %v4283
        %v4293 = vld [vmem:[%s731] sm:$0x1]
        %v4295 = vperm.slane %v4293, 0
        %v4297 = vmul.f32 %v4285, %v4295
        %v4298 = vmul.f32 %v4286, %v4295
        %v4299 = vmul.f32 %v4287, %v4295
        %v4300 = vmul.f32 %v4288, %v4295
        %v4301 = vmul.f32 %v4289, %v4295
        %v4302 = vmul.f32 %v4290, %v4295
        %v4303 = vmul.f32 %v4291, %v4295
        %v4304 = vmul.f32 %v4292, %v4295
        %v4305 = vld [vmem:[%s734] sm:$0x1]
        %v4307 = vperm.slane %v4305, 0
        %v4309 = vadd.f32 %v4297, %v4307
        %v4310 = vadd.f32 %v4298, %v4307
        %v4311 = vadd.f32 %v4299, %v4307
        %v4312 = vadd.f32 %v4300, %v4307
        %v4313 = vadd.f32 %v4301, %v4307
        %v4314 = vadd.f32 %v4302, %v4307
        %v4315 = vadd.f32 %v4303, %v4307
        %v4316 = vadd.f32 %v4304, %v4307
        %v4317 = vmax.f32 %v4309, 0.0
        %v4318 = vmax.f32 %v4310, 0.0
        %v4319 = vmax.f32 %v4311, 0.0
        %v4320 = vmax.f32 %v4312, 0.0
        %v4321 = vmax.f32 %v4313, 0.0
        %v4322 = vmax.f32 %v4314, 0.0
        %v4323 = vmax.f32 %v4315, 0.0
        %v4324 = vmax.f32 %v4316, 0.0
        %v4325 = vpack.c.bf16 %v4317, %v4317
        %v4326 = vpack.c.bf16 %v4318, %v4318
        %v4327 = vpack.c.bf16 %v4319, %v4319
        %v4328 = vpack.c.bf16 %v4320, %v4320
        %v4329 = vpack.c.bf16 %v4321, %v4321
        %v4330 = vpack.c.bf16 %v4322, %v4322
        %v4331 = vpack.c.bf16 %v4323, %v4323
        %v4332 = vpack.c.bf16 %v4324, %v4324
        %vm4333 = vcmask 519168
        %4334 = vst.msk [vmem:[%s635] sm:$0xf] %vm4333, %v4325
        %4335 = vst.msk [vmem:[%s635 + $0x4] sm:$0xf] %vm4333, %v4326
        %4336 = vst.msk [vmem:[%s635 + $0x8] sm:$0xf] %vm4333, %v4327
        %4337 = vst.msk [vmem:[%s635 + $0xc] sm:$0xf] %vm4333, %v4328
        %4338 = vst.msk [vmem:[%s635 + $0x10] sm:$0xf] %vm4333, %v4329
        %4339 = vst.msk [vmem:[%s635 + $0x14] sm:$0xf] %vm4333, %v4330
        %4340 = vst.msk [vmem:[%s635 + $0x18] sm:$0xf] %vm4333, %v4331
        %4341 = vst.msk [vmem:[%s635 + $0x1c] sm:$0xf] %vm4333, %v4332
        %s4342 = sand.u32 %s369, 1
        %s4343 = scalar_lea.sflag [#allocation3], %s4342
        %s4344 = sand.u32 %s369, 1
        %s4345 = smul.addr %s4344, 32
        %s4346 = scalar_lea.vmem [#allocation2], %s4345
        // Predicated region
        $region61: #{tpu_custom_call.1} parent=59 // pred_check
          %p4347 = pneg %p379
        $region62: #{tpu_custom_call.1} parent=59 // pred_check_branch
          %4349 = sbr.rel (%p4347) target = $region64
        $region63: #{tpu_custom_call.1} parent=59 // pred_region
          %4351 = vsyncadd %s4343, 0
          %s4352 = smul.addr %s31, 8
          %s4353 = sadd.s32 %s29, %s4352
          %s4354 = smul.addr %s30, 256
          %s4355 = sadd.s32 %s4353, %s4354
          %s4356 = smul.addr %s4355, 4
          %s4357 = scalar_lea.hbm %s10, %s4356
          %s4358 = sshll.u32 %s4346, 4
          %s4359 = int_to_ptr.vmem [resolvable:$true] %s4358
          %s4360 = sshll.u32 %s4357, 4
          %s4361 = int_to_ptr.hbm [resolvable:$true] %s4360
          %4366 = dma.vmem_to_hbm [thread:$0]  %s4359, 512, %s4361, %s4343, 64, 64, 4
        $region64: #{tpu_custom_call.1} parent=59 // pred_fallthru
          _
      $region60: #{tpu_custom_call.1} parent=5 // pred_fallthru
        _
      %p4367 = scmp.le.s32.totalorder 2, %s19
      // Predicated region
      $region65: #{tpu_custom_call.1} parent=5 // pred_check
        %p4368 = pneg %p4367
      $region66: #{tpu_custom_call.1} parent=5 // pred_check_branch
        %4370 = sbr.rel (%p4368) target = $region68
      $region67: #{tpu_custom_call.1} parent=5 // pred_region
        %s4371 = ssub.s32 %s19, 2
        // Predicated region
        $region69: #{tpu_custom_call.1} parent=67 // pred_check
          %p4372 = pneg %p385
        $region70: #{tpu_custom_call.1} parent=67 // pred_check_branch
          %4374 = sbr.rel (%p4372) target = $region72
        $region71: #{tpu_custom_call.1} parent=67 // pred_region
          %s4375 = sand.u32 %s370, 1
          %s4376 = scalar_lea.sflag [#allocation3], %s4375
          %s4377 = sand.u32 %s370, 1
          %s4378 = smul.addr %s4377, 32
          %s4379 = scalar_lea.vmem [#allocation2], %s4378
          %4381 = dma.done %s4376, 512
        $region72: #{tpu_custom_call.1} parent=67 // pred_fallthru
          _
      $region68: #{tpu_custom_call.1} parent=5 // pred_fallthru
        _
    $region6: #{tpu_custom_call.1} parent=1 // loop_footer
      %s23 = sadd.s32 1, %s19
    $region7: #{tpu_custom_call.1} parent=1 // loop_footer_branch
      %18 = sbr.rel target = $region3
    $region8: #{tpu_custom_call.1} parent=1 // loop_exit
      _
    %4382 = vsyncpa [#allocation3], 1
    %s4383 = scalar_lea.sflag [#allocation3], 1
    %4384 = vsyncpa %s4383, 1

</llo_original>
